<compile_context>
chip_gen: v6e
topology: v6e:2x2x1
jax: 0.10.0
libtpu: 0.0.40
codegen_flags: <defaults>
</compile_context>

<pallas_src>
import jax
import jax.numpy as jnp
from jax import lax
from jax.experimental import pallas as pl
from jax.experimental.pallas import tpu as pltpu


# ----------------------------- Pallas kernel --------------------------------
def greedy_decode_kernel(
    onehot0_ref, prop_ref, h0_ref, c0_ref,
    w_hh_ref, w_tg_ref, w_pg_ref, b_g_ref,
    w_fch_ref, w_tf_ref, w_fcp_ref, b_fc_ref,
    preds_ref, h_out_ref, c_out_ref,
):
    B, H = h0_ref.shape
    V = onehot0_ref.shape[1]
    T = preds_ref.shape[0]

    # Proposal-dependent contributions are constant across the whole sequence:
    # compute once, keep in vregs/VMEM values.
    prop = prop_ref[...]                                                 # (B, H) bf16
    gprop = jnp.dot(prop, w_pg_ref[...],
                    preferred_element_type=jnp.float32) + b_g_ref[...]   # (B, 4H) f32
    fcprop = jnp.dot(prop, w_fcp_ref[...],
                     preferred_element_type=jnp.float32) + b_fc_ref[...]  # (B, V) f32

    w_hh = w_hh_ref[...]        # (H, 4H) bf16
    w_tg = w_tg_ref[...]        # (V, 4H) bf16  (embed @ W_ih_emb, token-folded)
    w_fch = w_fch_ref[...]      # (H, V)  bf16
    w_tf = w_tf_ref[...]        # (V, V)  bf16  (embed @ W_fc_emb, token-folded)

    # Packed-key argmax constants (single cross-lane reduce per step).
    nbits = max(1, (V - 1).bit_length())
    high_mask = jnp.int32(~((1 << nbits) - 1))
    sign_fix = jnp.int32(0x7FFFFFFF)
    iota = lax.broadcasted_iota(jnp.int32, (B, V), 1)
    idx_rev = jnp.int32(V - 1) - iota            # larger == smaller index

    def step(t, carry):
        h_prev, c_prev, onehot = carry

        # Token-dependent partials (embedding folded into tables): independent
        # of h_prev/h_new, so the MXU can issue them ahead of the h matmuls.
        g_tok = jnp.dot(onehot, w_tg, preferred_element_type=jnp.float32)   # (B, 4H)
        p_tok = jnp.dot(onehot, w_tf, preferred_element_type=jnp.float32)   # (B, V)

        gates = gprop + g_tok + jnp.dot(h_prev.astype(jnp.bfloat16), w_hh,
                                        preferred_element_type=jnp.float32)
        i_g = jax.nn.sigmoid(gates[:, 0 * H:1 * H])
        f_g = jax.nn.sigmoid(gates[:, 1 * H:2 * H])
        g_g = jnp.tanh(gates[:, 2 * H:3 * H])
        o_g = jax.nn.sigmoid(gates[:, 3 * H:4 * H])

        c_new = f_g * c_prev + i_g * g_g
        h_new = o_g * jnp.tanh(c_new)

        pred = fcprop + p_tok + jnp.dot(h_new.astype(jnp.bfloat16), w_fch,
                                        preferred_element_type=jnp.float32)  # (B, V)
        preds_ref[t] = pred

        # Greedy feedback: single max-reduce over a sortable packed key.
        # key = sign-corrected f32 bits with the low nbits replaced by the
        # reversed lane index -> unique per lane, max == first arg-max.
        bits = pltpu.bitcast(pred, jnp.int32)
        skey = jnp.where(bits < 0, bits ^ sign_fix, bits)
        ukey = (skey & high_mask) | idx_rev
        m = jnp.max(ukey, axis=1, keepdims=True)                 # one XLU reduce
        onehot_new = (ukey == m).astype(jnp.bfloat16)            # exactly one 1/row
        return h_new, c_new, onehot_new

    h_fin, c_fin, _ = lax.fori_loop(
        0, T, step, (h0_ref[...], c0_ref[...], onehot0_ref[...]), unroll=True)
    h_out_ref[...] = h_fin
    c_out_ref[...] = c_fin


# ------------------------------- JAX wrapper ---------------------------------
def greedy_decode(params, init_tokens, proposals, h0, c0, num_steps):
    """Full greedy decode loop in one pallas_call (no grid, everything VMEM-resident)."""
    B, H = h0.shape
    V = params["w_tok_fc"].shape[0]

    onehot0 = jax.nn.one_hot(init_tokens, V, dtype=jnp.bfloat16)   # (B, V)
    prop_bf = proposals.astype(jnp.bfloat16)

    operands = (
        onehot0, prop_bf, h0, c0,
        params["w_hh"],        # (H, 4H)  bf16
        params["w_tok_gates"],  # (V, 4H)  bf16
        params["w_p_gates"],   # (H, 4H)  bf16
        params["b_gates"],     # (1, 4H)  f32
        params["w_fc_h"],      # (H, V)   bf16
        params["w_tok_fc"],    # (V, V)   bf16
        params["w_fc_p"],      # (H, V)   bf16
        params["b_fc"],        # (1, V)   f32
    )

    vmem = lambda: pl.BlockSpec(memory_space=pltpu.MemorySpace.VMEM)

    out_shape = (
        jax.ShapeDtypeStruct((num_steps, B, V), jnp.float32),   # per-step predictions
        jax.ShapeDtypeStruct((B, H), jnp.float32),              # final h
        jax.ShapeDtypeStruct((B, H), jnp.float32),              # final c
    )

    # Advisory cost model (latency-bound kernel; numbers are rough).
    flops_per_step = 2 * B * (V * 4 * H + V * V + H * 4 * H + H * V)
    flops = flops_per_step * num_steps + 2 * B * (H * 4 * H + H * V)
    transcendentals = num_steps * B * 5 * H
    bytes_accessed = sum(int(x.size) * x.dtype.itemsize for x in operands)
    bytes_accessed += num_steps * B * V * 4 + 2 * B * H * 4
    cost = pl.CostEstimate(flops=int(flops),
                           transcendentals=int(transcendentals),
                           bytes_accessed=int(bytes_accessed))

    preds, h_fin, c_fin = pl.pallas_call(
        greedy_decode_kernel,
        out_shape=out_shape,
        in_specs=[vmem() for _ in operands],
        out_specs=(vmem(), vmem(), vmem()),
        cost_estimate=cost,
    )(*operands)
    return preds, h_fin, c_fin


# --------------------------- parameter construction --------------------------
def init_params(key, *, linear_dim, embed_dim, vocab_size, pad_idx, len_recent):
    H = linear_dim * 2 * len_recent          # LSTM hidden size
    E = embed_dim
    IN = E + H                               # LSTM input size (emb first, then prop)
    V = vocab_size

    ks = jax.random.split(key, 7)
    scale = 0.05

    embed_w = scale * jax.random.normal(ks[0], (V, E), jnp.float32)
    embed_w = embed_w.at[pad_idx].set(0.0)   # padding_idx row is zero

    # PyTorch LSTM weights: W_ih (4H, IN), W_hh (4H, H); gate order i,f,g,o.
    w_ih = scale * jax.random.normal(ks[1], (4 * H, IN), jnp.float32)
    w_hh = scale * jax.random.normal(ks[2], (4 * H, H), jnp.float32)
    b_ih = scale * jax.random.normal(ks[3], (4 * H,), jnp.float32)
    b_hh = scale * jax.random.normal(ks[4], (4 * H,), jnp.float32)

    # fc: Linear(2H + E -> V); input order concat([output_cap, proposals, embedded]).
    w_fc = scale * jax.random.normal(ks[5], (V, 2 * H + E), jnp.float32)
    b_fc = scale * jax.random.normal(ks[6], (V,), jnp.float32)

    wih_e_T = jnp.transpose(w_ih[:, :E])          # (E, 4H)
    wih_p_T = jnp.transpose(w_ih[:, E:])          # (H, 4H)
    whh_T = jnp.transpose(w_hh)                   # (H, 4H)
    wfc_h_T = jnp.transpose(w_fc[:, :H])          # (H, V)
    wfc_p_T = jnp.transpose(w_fc[:, H:2 * H])     # (H, V)
    wfc_e_T = jnp.transpose(w_fc[:, 2 * H:])      # (E, V)

    # Token-folded tables: embedding gather + emb@W collapse to one row-select.
    w_tok_gates = (embed_w @ wih_e_T).astype(jnp.bfloat16)   # (V, 4H)
    w_tok_fc = (embed_w @ wfc_e_T).astype(jnp.bfloat16)      # (V, V)

    return {
        "embed_bf16": embed_w.astype(jnp.bfloat16),
        "w_hh": whh_T.astype(jnp.bfloat16),
        "w_e_gates": wih_e_T.astype(jnp.bfloat16),
        "w_p_gates": wih_p_T.astype(jnp.bfloat16),
        "b_gates": (b_ih + b_hh).reshape(1, 4 * H),
        "w_fc_h": wfc_h_T.astype(jnp.bfloat16),
        "w_fc_p": wfc_p_T.astype(jnp.bfloat16),
        "w_fc_e": wfc_e_T.astype(jnp.bfloat16),
        "b_fc": b_fc.reshape(1, V),
        "w_tok_gates": w_tok_gates,
        "w_tok_fc": w_tok_fc,
    }


# ------------------------------ pure-JAX references ---------------------------
def reference_greedy_decode(params, init_tokens, proposals, h0, c0, num_steps):
    """Same folded math as the kernel, but plain XLA ops + jnp.argmax feedback."""
    B, H = h0.shape
    prop_bf = proposals.astype(jnp.bfloat16)
    gprop = jnp.dot(prop_bf, params["w_p_gates"],
                    preferred_element_type=jnp.float32) + params["b_gates"]
    fcprop = jnp.dot(prop_bf, params["w_fc_p"],
                     preferred_element_type=jnp.float32) + params["b_fc"]
    h, c = h0, c0
    tok = init_tokens
    preds = []
    for _ in range(num_steps):
        g_tok = jnp.take(params["w_tok_gates"], tok, axis=0).astype(jnp.float32)
        p_tok = jnp.take(params["w_tok_fc"], tok, axis=0).astype(jnp.float32)
        gates = gprop + g_tok + jnp.dot(h.astype(jnp.bfloat16), params["w_hh"],
                                        preferred_element_type=jnp.float32)
        i = jax.nn.sigmoid(gates[:, :H])
        f = jax.nn.sigmoid(gates[:, H:2 * H])
        g = jnp.tanh(gates[:, 2 * H:3 * H])
        o = jax.nn.sigmoid(gates[:, 3 * H:])
        c = f * c + i * g
        h = o * jnp.tanh(c)
        pred = fcprop + p_tok + jnp.dot(h.astype(jnp.bfloat16), params["w_fc_h"],
                                        preferred_element_type=jnp.float32)
        preds.append(pred)
        tok = jnp.argmax(pred, axis=1)
    return jnp.stack(preds, axis=0), h, c


def reference_unfolded_first_step(params, init_tokens, proposals, h0, c0):
    """First decode step with the explicit (unfolded) embedding path, matching
    the original module structure — validates the token-fold numerically."""
    H = h0.shape[1]
    prop_bf = proposals.astype(jnp.bfloat16)
    emb = jnp.take(params["embed_bf16"], init_tokens, axis=0)          # (B, E)
    gates = (jnp.dot(emb, params["w_e_gates"], preferred_element_type=jnp.float32)
             + jnp.dot(prop_bf, params["w_p_gates"], preferred_element_type=jnp.float32)
             + jnp.dot(h0.astype(jnp.bfloat16), params["w_hh"],
                       preferred_element_type=jnp.float32)
             + params["b_gates"])
    i = jax.nn.sigmoid(gates[:, :H])
    f = jax.nn.sigmoid(gates[:, H:2 * H])
    g = jnp.tanh(gates[:, 2 * H:3 * H])
    o = jax.nn.sigmoid(gates[:, 3 * H:])
    c = f * c0 + i * g
    h = o * jnp.tanh(c)
    pred = (jnp.dot(h.astype(jnp.bfloat16), params["w_fc_h"],
                    preferred_element_type=jnp.float32)
            + jnp.dot(prop_bf, params["w_fc_p"], preferred_element_type=jnp.float32)
            + jnp.dot(emb, params["w_fc_e"], preferred_element_type=jnp.float32)
            + params["b_fc"])
    return pred


# ----------------------------------- main -------------------------------------
if __name__ == "__main__":
    # Shapes consistent with the module:
    #   linear_dim=32, len_recent=2  -> H = 32*2*2 = 128
    #   embed_dim=32, vocab_size=128, batch=8, max_sent_len=8
    max_proposals = 10          # unused in the decoder forward
    linear_dim = 32
    embed_dim = 32
    vocab_size = 128
    pad_idx = 0
    len_recent = 2
    max_sent_len = 8
    init_token = 1              # stand-in for vocab.stoi['<init>']
    B = 8
    H = linear_dim * 2 * len_recent
    T_steps = max_sent_len - 1

    key = jax.random.PRNGKey(0)
    kp, kx = jax.random.split(key, 2)

    params = init_params(kp, linear_dim=linear_dim, embed_dim=embed_dim,
                         vocab_size=vocab_size, pad_idx=pad_idx,
                         len_recent=len_recent)

    filtered_proposals = jax.random.normal(kx, (B, H), jnp.float32)
    # As in OverallNetwork: rnn_hidden_prev = rnn_c_prev = filtered_encoded_proposal
    rnn_hidden_prev = filtered_proposals
    rnn_c_prev = filtered_proposals
    init_tokens = jnp.full((B,), init_token, dtype=jnp.int32)

    fwd = jax.jit(greedy_decode, static_argnames=("num_steps",))
    preds, h_fin, c_fin = fwd(params, init_tokens, filtered_proposals,
                              rnn_hidden_prev, rnn_c_prev, num_steps=T_steps)
    jax.block_until_ready((preds, h_fin, c_fin))

    # Assemble the `outputs` tensor like OverallNetwork's decode loop.
    outputs = jnp.zeros((B, max_sent_len, vocab_size), jnp.float32)
    outputs = outputs.at[:, 0, init_token].set(1.0)
    outputs = outputs.at[:, 1:, :].set(jnp.transpose(preds, (1, 0, 2)))

    # Correctness checks.
    preds_r, h_r, c_r = reference_greedy_decode(
        params, init_tokens, filtered_proposals, rnn_hidden_prev, rnn_c_prev,
        T_steps)
    assert preds.shape == (T_steps, B, vocab_size)
    assert outputs.shape == (B, max_sent_len, vocab_size)
    assert h_fin.shape == (B, H) and c_fin.shape == (B, H)
    assert jnp.array_equal(jnp.argmax(preds, axis=-1),
                           jnp.argmax(preds_r, axis=-1))   # same token trajectory
    assert jnp.allclose(preds, preds_r, atol=2e-3, rtol=2e-3)
    assert jnp.allclose(h_fin, h_r, atol=2e-3, rtol=2e-3)
    assert jnp.allclose(c_fin, c_r, atol=2e-3, rtol=2e-3)

    # Folding validation against the original (unfolded) embedding path; only
    # step 0 is checked since later steps depend on the argmax feedback.
    pred0_unfolded = reference_unfolded_first_step(
        params, init_tokens, filtered_proposals, rnn_hidden_prev, rnn_c_prev)
    assert jnp.allclose(preds[0], pred0_unfolded, atol=5e-3, rtol=5e-3)

    print("KERNEL_OK")
</pallas_src>

<mosaic_0001>
module attributes {stable_mosaic.version = 11 : i64} {
  func.func @greedy_decode_kernel(%arg0: memref<8x128xbf16, #tpu.memory_space<vmem>>, %arg1: memref<8x128xbf16, #tpu.memory_space<vmem>>, %arg2: memref<8x128xf32, #tpu.memory_space<vmem>>, %arg3: memref<8x128xf32, #tpu.memory_space<vmem>>, %arg4: memref<128x512xbf16, #tpu.memory_space<vmem>>, %arg5: memref<128x512xbf16, #tpu.memory_space<vmem>>, %arg6: memref<128x512xbf16, #tpu.memory_space<vmem>>, %arg7: memref<1x512xf32, #tpu.memory_space<vmem>>, %arg8: memref<128x128xbf16, #tpu.memory_space<vmem>>, %arg9: memref<128x128xbf16, #tpu.memory_space<vmem>>, %arg10: memref<128x128xbf16, #tpu.memory_space<vmem>>, %arg11: memref<1x128xf32, #tpu.memory_space<vmem>>, %arg12: memref<7x8x128xf32, #tpu.memory_space<vmem>>, %arg13: memref<8x128xf32, #tpu.memory_space<vmem>>, %arg14: memref<8x128xf32, #tpu.memory_space<vmem>>) attributes {dimension_semantics = [], scalar_prefetch = 0 : i64, scratch_operands = 0 : i64, tpu.core_type = #tpu.core_type<tc>} {
    %c0 = arith.constant 0 : index
    %c0_0 = arith.constant 0 : index
    %0 = vector.load %arg1[%c0, %c0_0] : memref<8x128xbf16, #tpu.memory_space<vmem>>, vector<8x128xbf16>
    %c0_1 = arith.constant 0 : index
    %c0_2 = arith.constant 0 : index
    %1 = vector.load %arg6[%c0_1, %c0_2] : memref<128x512xbf16, #tpu.memory_space<vmem>>, vector<128x512xbf16>
    %cst = arith.constant dense<0.000000e+00> : vector<8x512xf32>
    %2 = tpu.matmul %0, %1, %cst {dimension_numbers = #tpu.dot_dimension_numbers<[1], [0], [0], [1], [0, 0, 1, 1], [], []>} : vector<8x128xbf16>, vector<128x512xbf16>, vector<8x512xf32> -> vector<8x512xf32>
    %c0_3 = arith.constant 0 : index
    %c0_4 = arith.constant 0 : index
    %3 = vector.load %arg7[%c0_3, %c0_4] : memref<1x512xf32, #tpu.memory_space<vmem>>, vector<1x512xf32>
    %4 = vector.broadcast %3 : vector<1x512xf32> to vector<8x512xf32>
    %5 = arith.addf %2, %4 : vector<8x512xf32>
    %c0_5 = arith.constant 0 : index
    %c0_6 = arith.constant 0 : index
    %6 = vector.load %arg10[%c0_5, %c0_6] : memref<128x128xbf16, #tpu.memory_space<vmem>>, vector<128x128xbf16>
    %cst_7 = arith.constant dense<0.000000e+00> : vector<8x128xf32>
    %7 = tpu.matmul %0, %6, %cst_7 {dimension_numbers = #tpu.dot_dimension_numbers<[1], [0], [0], [1], [0, 0, 1, 1], [], []>} : vector<8x128xbf16>, vector<128x128xbf16>, vector<8x128xf32> -> vector<8x128xf32>
    %c0_8 = arith.constant 0 : index
    %c0_9 = arith.constant 0 : index
    %8 = vector.load %arg11[%c0_8, %c0_9] : memref<1x128xf32, #tpu.memory_space<vmem>>, vector<1x128xf32>
    %9 = vector.broadcast %8 : vector<1x128xf32> to vector<8x128xf32>
    %10 = arith.addf %7, %9 : vector<8x128xf32>
    %c0_10 = arith.constant 0 : index
    %c0_11 = arith.constant 0 : index
    %11 = vector.load %arg4[%c0_10, %c0_11] : memref<128x512xbf16, #tpu.memory_space<vmem>>, vector<128x512xbf16>
    %c0_12 = arith.constant 0 : index
    %c0_13 = arith.constant 0 : index
    %12 = vector.load %arg5[%c0_12, %c0_13] : memref<128x512xbf16, #tpu.memory_space<vmem>>, vector<128x512xbf16>
    %c0_14 = arith.constant 0 : index
    %c0_15 = arith.constant 0 : index
    %13 = vector.load %arg8[%c0_14, %c0_15] : memref<128x128xbf16, #tpu.memory_space<vmem>>, vector<128x128xbf16>
    %c0_16 = arith.constant 0 : index
    %c0_17 = arith.constant 0 : index
    %14 = vector.load %arg9[%c0_16, %c0_17] : memref<128x128xbf16, #tpu.memory_space<vmem>>, vector<128x128xbf16>
    %15 = tpu.iota {dimensions = array<i32: 1>} : vector<8x128xi32>
    %c127_i32 = arith.constant 127 : i32
    %16 = vector.broadcast %c127_i32 : i32 to vector<8x128xi32>
    %17 = arith.subi %16, %15 : vector<8x128xi32>
    %c0_18 = arith.constant 0 : index
    %c0_19 = arith.constant 0 : index
    %18 = vector.load %arg2[%c0_18, %c0_19] : memref<8x128xf32, #tpu.memory_space<vmem>>, vector<8x128xf32>
    %c0_20 = arith.constant 0 : index
    %c0_21 = arith.constant 0 : index
    %19 = vector.load %arg3[%c0_20, %c0_21] : memref<8x128xf32, #tpu.memory_space<vmem>>, vector<8x128xf32>
    %c0_22 = arith.constant 0 : index
    %c0_23 = arith.constant 0 : index
    %20 = vector.load %arg0[%c0_22, %c0_23] : memref<8x128xbf16, #tpu.memory_space<vmem>>, vector<8x128xbf16>
    %c2147483647_i32 = arith.constant 2147483647 : i32
    %c-128_i32 = arith.constant -128 : i32
    %c0_i32 = arith.constant 0 : i32
    %cst_24 = arith.constant dense<0.000000e+00> : vector<8x512xf32>
    %21 = tpu.matmul %20, %12, %cst_24 {dimension_numbers = #tpu.dot_dimension_numbers<[1], [0], [0], [1], [0, 0, 1, 1], [], []>} : vector<8x128xbf16>, vector<128x512xbf16>, vector<8x512xf32> -> vector<8x512xf32>
    %cst_25 = arith.constant dense<0.000000e+00> : vector<8x128xf32>
    %22 = tpu.matmul %20, %14, %cst_25 {dimension_numbers = #tpu.dot_dimension_numbers<[1], [0], [0], [1], [0, 0, 1, 1], [], []>} : vector<8x128xbf16>, vector<128x128xbf16>, vector<8x128xf32> -> vector<8x128xf32>
    %23 = arith.addf %5, %21 : vector<8x512xf32>
    %24 = arith.truncf %18 : vector<8x128xf32> to vector<8x128xbf16>
    %cst_26 = arith.constant dense<0.000000e+00> : vector<8x512xf32>
    %25 = tpu.matmul %24, %11, %cst_26 {dimension_numbers = #tpu.dot_dimension_numbers<[1], [0], [0], [1], [0, 0, 1, 1], [], []>} : vector<8x128xbf16>, vector<128x512xbf16>, vector<8x512xf32> -> vector<8x512xf32>
    %26 = arith.addf %23, %25 : vector<8x512xf32>
    %27 = vector.extract_strided_slice %26 {offsets = [0, 0], sizes = [8, 128], strides = [1, 1]} : vector<8x512xf32> to vector<8x128xf32>
    %28 = arith.negf %27 : vector<8x128xf32>
    %29 = math.exp %28 : vector<8x128xf32>
    %cst_27 = arith.constant 1.000000e+00 : f32
    %30 = vector.broadcast %cst_27 : f32 to vector<8x128xf32>
    %31 = arith.addf %30, %29 : vector<8x128xf32>
    %32 = arith.divf %30, %31 : vector<8x128xf32>
    %33 = vector.extract_strided_slice %26 {offsets = [0, 128], sizes = [8, 128], strides = [1, 1]} : vector<8x512xf32> to vector<8x128xf32>
    %34 = arith.negf %33 : vector<8x128xf32>
    %35 = math.exp %34 : vector<8x128xf32>
    %cst_28 = arith.constant 1.000000e+00 : f32
    %36 = vector.broadcast %cst_28 : f32 to vector<8x128xf32>
    %37 = arith.addf %36, %35 : vector<8x128xf32>
    %38 = arith.divf %36, %37 : vector<8x128xf32>
    %39 = vector.extract_strided_slice %26 {offsets = [0, 256], sizes = [8, 128], strides = [1, 1]} : vector<8x512xf32> to vector<8x128xf32>
    %40 = math.tanh %39 : vector<8x128xf32>
    %41 = vector.extract_strided_slice %26 {offsets = [0, 384], sizes = [8, 128], strides = [1, 1]} : vector<8x512xf32> to vector<8x128xf32>
    %42 = arith.negf %41 : vector<8x128xf32>
    %43 = math.exp %42 : vector<8x128xf32>
    %cst_29 = arith.constant 1.000000e+00 : f32
    %44 = vector.broadcast %cst_29 : f32 to vector<8x128xf32>
    %45 = arith.addf %44, %43 : vector<8x128xf32>
    %46 = arith.divf %44, %45 : vector<8x128xf32>
    %47 = arith.mulf %38, %19 : vector<8x128xf32>
    %48 = arith.mulf %32, %40 : vector<8x128xf32>
    %49 = arith.addf %47, %48 : vector<8x128xf32>
    %50 = math.tanh %49 : vector<8x128xf32>
    %51 = arith.mulf %46, %50 : vector<8x128xf32>
    %52 = arith.addf %10, %22 : vector<8x128xf32>
    %53 = arith.truncf %51 : vector<8x128xf32> to vector<8x128xbf16>
    %cst_30 = arith.constant dense<0.000000e+00> : vector<8x128xf32>
    %54 = tpu.matmul %53, %13, %cst_30 {dimension_numbers = #tpu.dot_dimension_numbers<[1], [0], [0], [1], [0, 0, 1, 1], [], []>} : vector<8x128xbf16>, vector<128x128xbf16>, vector<8x128xf32> -> vector<8x128xf32>
    %55 = arith.addf %52, %54 : vector<8x128xf32>
    %56 = arith.index_cast %c0_i32 : i32 to index
    %c0_31 = arith.constant 0 : index
    %c0_32 = arith.constant 0 : index
    %57 = vector.load %arg12[%56, %c0_31, %c0_32] : memref<7x8x128xf32, #tpu.memory_space<vmem>>, vector<1x8x128xf32>
    %58 = vector.shape_cast %57 : vector<1x8x128xf32> to vector<8x128xf32>
    %59 = vector.shape_cast %55 : vector<8x128xf32> to vector<1x8x128xf32>
    tpu.vector_store %arg12[%56, %c0_31, %c0_32], %59 {strides = array<i32>} : memref<7x8x128xf32, #tpu.memory_space<vmem>>, vector<1x8x128xf32>,
    %60 = tpu.bitcast %55 : vector<8x128xf32> -> vector<8x128xi32>
    %c0_i32_33 = arith.constant 0 : i32
    %61 = vector.broadcast %c0_i32_33 : i32 to vector<8x128xi32>
    %62 = arith.cmpi slt, %60, %61 : vector<8x128xi32>
    %63 = vector.broadcast %c2147483647_i32 : i32 to vector<8x128xi32>
    %64 = arith.xori %60, %63 : vector<8x128xi32>
    %65 = arith.select %62, %64, %60 : vector<8x128xi1>, vector<8x128xi32>
    %66 = vector.broadcast %c-128_i32 : i32 to vector<8x128xi32>
    %67 = arith.andi %65, %66 : vector<8x128xi32>
    %68 = arith.ori %67, %17 : vector<8x128xi32>
    %cst_34 = arith.constant dense<-2147483648> : vector<8xi32>
    %69 = vector.multi_reduction <maxsi>, %68, %cst_34 [1] : vector<8x128xi32> to vector<8xi32>
    %70 = vector.shape_cast %69 : vector<8xi32> to vector<8x1xi32>
    %71 = vector.broadcast %70 : vector<8x1xi32> to vector<8x128xi32>
    %72 = arith.cmpi eq, %68, %71 : vector<8x128xi32>
    %73 = arith.extui %72 : vector<8x128xi1> to vector<8x128xi32>
    %74 = arith.sitofp %73 : vector<8x128xi32> to vector<8x128xf32>
    %75 = arith.truncf %74 : vector<8x128xf32> to vector<8x128xbf16>
    %c1_i32 = arith.constant 1 : i32
    %cst_35 = arith.constant dense<0.000000e+00> : vector<8x512xf32>
    %76 = tpu.matmul %75, %12, %cst_35 {dimension_numbers = #tpu.dot_dimension_numbers<[1], [0], [0], [1], [0, 0, 1, 1], [], []>} : vector<8x128xbf16>, vector<128x512xbf16>, vector<8x512xf32> -> vector<8x512xf32>
    %cst_36 = arith.constant dense<0.000000e+00> : vector<8x128xf32>
    %77 = tpu.matmul %75, %14, %cst_36 {dimension_numbers = #tpu.dot_dimension_numbers<[1], [0], [0], [1], [0, 0, 1, 1], [], []>} : vector<8x128xbf16>, vector<128x128xbf16>, vector<8x128xf32> -> vector<8x128xf32>
    %78 = arith.addf %5, %76 : vector<8x512xf32>
    %79 = arith.truncf %51 : vector<8x128xf32> to vector<8x128xbf16>
    %cst_37 = arith.constant dense<0.000000e+00> : vector<8x512xf32>
    %80 = tpu.matmul %79, %11, %cst_37 {dimension_numbers = #tpu.dot_dimension_numbers<[1], [0], [0], [1], [0, 0, 1, 1], [], []>} : vector<8x128xbf16>, vector<128x512xbf16>, vector<8x512xf32> -> vector<8x512xf32>
    %81 = arith.addf %78, %80 : vector<8x512xf32>
    %82 = vector.extract_strided_slice %81 {offsets = [0, 0], sizes = [8, 128], strides = [1, 1]} : vector<8x512xf32> to vector<8x128xf32>
    %83 = arith.negf %82 : vector<8x128xf32>
    %84 = math.exp %83 : vector<8x128xf32>
    %cst_38 = arith.constant 1.000000e+00 : f32
    %85 = vector.broadcast %cst_38 : f32 to vector<8x128xf32>
    %86 = arith.addf %85, %84 : vector<8x128xf32>
    %87 = arith.divf %85, %86 : vector<8x128xf32>
    %88 = vector.extract_strided_slice %81 {offsets = [0, 128], sizes = [8, 128], strides = [1, 1]} : vector<8x512xf32> to vector<8x128xf32>
    %89 = arith.negf %88 : vector<8x128xf32>
    %90 = math.exp %89 : vector<8x128xf32>
    %cst_39 = arith.constant 1.000000e+00 : f32
    %91 = vector.broadcast %cst_39 : f32 to vector<8x128xf32>
    %92 = arith.addf %91, %90 : vector<8x128xf32>
    %93 = arith.divf %91, %92 : vector<8x128xf32>
    %94 = vector.extract_strided_slice %81 {offsets = [0, 256], sizes = [8, 128], strides = [1, 1]} : vector<8x512xf32> to vector<8x128xf32>
    %95 = math.tanh %94 : vector<8x128xf32>
    %96 = vector.extract_strided_slice %81 {offsets = [0, 384], sizes = [8, 128], strides = [1, 1]} : vector<8x512xf32> to vector<8x128xf32>
    %97 = arith.negf %96 : vector<8x128xf32>
    %98 = math.exp %97 : vector<8x128xf32>
    %cst_40 = arith.constant 1.000000e+00 : f32
    %99 = vector.broadcast %cst_40 : f32 to vector<8x128xf32>
    %100 = arith.addf %99, %98 : vector<8x128xf32>
    %101 = arith.divf %99, %100 : vector<8x128xf32>
    %102 = arith.mulf %93, %49 : vector<8x128xf32>
    %103 = arith.mulf %87, %95 : vector<8x128xf32>
    %104 = arith.addf %102, %103 : vector<8x128xf32>
    %105 = math.tanh %104 : vector<8x128xf32>
    %106 = arith.mulf %101, %105 : vector<8x128xf32>
    %107 = arith.addf %10, %77 : vector<8x128xf32>
    %108 = arith.truncf %106 : vector<8x128xf32> to vector<8x128xbf16>
    %cst_41 = arith.constant dense<0.000000e+00> : vector<8x128xf32>
    %109 = tpu.matmul %108, %13, %cst_41 {dimension_numbers = #tpu.dot_dimension_numbers<[1], [0], [0], [1], [0, 0, 1, 1], [], []>} : vector<8x128xbf16>, vector<128x128xbf16>, vector<8x128xf32> -> vector<8x128xf32>
    %110 = arith.addf %107, %109 : vector<8x128xf32>
    %111 = arith.index_cast %c1_i32 : i32 to index
    %c0_42 = arith.constant 0 : index
    %c0_43 = arith.constant 0 : index
    %112 = vector.load %arg12[%111, %c0_42, %c0_43] : memref<7x8x128xf32, #tpu.memory_space<vmem>>, vector<1x8x128xf32>
    %113 = vector.shape_cast %112 : vector<1x8x128xf32> to vector<8x128xf32>
    %114 = vector.shape_cast %110 : vector<8x128xf32> to vector<1x8x128xf32>
    tpu.vector_store %arg12[%111, %c0_42, %c0_43], %114 {strides = array<i32>} : memref<7x8x128xf32, #tpu.memory_space<vmem>>, vector<1x8x128xf32>,
    %115 = tpu.bitcast %110 : vector<8x128xf32> -> vector<8x128xi32>
    %c0_i32_44 = arith.constant 0 : i32
    %116 = vector.broadcast %c0_i32_44 : i32 to vector<8x128xi32>
    %117 = arith.cmpi slt, %115, %116 : vector<8x128xi32>
    %118 = vector.broadcast %c2147483647_i32 : i32 to vector<8x128xi32>
    %119 = arith.xori %115, %118 : vector<8x128xi32>
    %120 = arith.select %117, %119, %115 : vector<8x128xi1>, vector<8x128xi32>
    %121 = vector.broadcast %c-128_i32 : i32 to vector<8x128xi32>
    %122 = arith.andi %120, %121 : vector<8x128xi32>
    %123 = arith.ori %122, %17 : vector<8x128xi32>
    %cst_45 = arith.constant dense<-2147483648> : vector<8xi32>
    %124 = vector.multi_reduction <maxsi>, %123, %cst_45 [1] : vector<8x128xi32> to vector<8xi32>
    %125 = vector.shape_cast %124 : vector<8xi32> to vector<8x1xi32>
    %126 = vector.broadcast %125 : vector<8x1xi32> to vector<8x128xi32>
    %127 = arith.cmpi eq, %123, %126 : vector<8x128xi32>
    %128 = arith.extui %127 : vector<8x128xi1> to vector<8x128xi32>
    %129 = arith.sitofp %128 : vector<8x128xi32> to vector<8x128xf32>
    %130 = arith.truncf %129 : vector<8x128xf32> to vector<8x128xbf16>
    %c2_i32 = arith.constant 2 : i32
    %cst_46 = arith.constant dense<0.000000e+00> : vector<8x512xf32>
    %131 = tpu.matmul %130, %12, %cst_46 {dimension_numbers = #tpu.dot_dimension_numbers<[1], [0], [0], [1], [0, 0, 1, 1], [], []>} : vector<8x128xbf16>, vector<128x512xbf16>, vector<8x512xf32> -> vector<8x512xf32>
    %cst_47 = arith.constant dense<0.000000e+00> : vector<8x128xf32>
    %132 = tpu.matmul %130, %14, %cst_47 {dimension_numbers = #tpu.dot_dimension_numbers<[1], [0], [0], [1], [0, 0, 1, 1], [], []>} : vector<8x128xbf16>, vector<128x128xbf16>, vector<8x128xf32> -> vector<8x128xf32>
    %133 = arith.addf %5, %131 : vector<8x512xf32>
    %134 = arith.truncf %106 : vector<8x128xf32> to vector<8x128xbf16>
    %cst_48 = arith.constant dense<0.000000e+00> : vector<8x512xf32>
    %135 = tpu.matmul %134, %11, %cst_48 {dimension_numbers = #tpu.dot_dimension_numbers<[1], [0], [0], [1], [0, 0, 1, 1], [], []>} : vector<8x128xbf16>, vector<128x512xbf16>, vector<8x512xf32> -> vector<8x512xf32>
    %136 = arith.addf %133, %135 : vector<8x512xf32>
    %137 = vector.extract_strided_slice %136 {offsets = [0, 0], sizes = [8, 128], strides = [1, 1]} : vector<8x512xf32> to vector<8x128xf32>
    %138 = arith.negf %137 : vector<8x128xf32>
    %139 = math.exp %138 : vector<8x128xf32>
    %cst_49 = arith.constant 1.000000e+00 : f32
    %140 = vector.broadcast %cst_49 : f32 to vector<8x128xf32>
    %141 = arith.addf %140, %139 : vector<8x128xf32>
    %142 = arith.divf %140, %141 : vector<8x128xf32>
    %143 = vector.extract_strided_slice %136 {offsets = [0, 128], sizes = [8, 128], strides = [1, 1]} : vector<8x512xf32> to vector<8x128xf32>
    %144 = arith.negf %143 : vector<8x128xf32>
    %145 = math.exp %144 : vector<8x128xf32>
    %cst_50 = arith.constant 1.000000e+00 : f32
    %146 = vector.broadcast %cst_50 : f32 to vector<8x128xf32>
    %147 = arith.addf %146, %145 : vector<8x128xf32>
    %148 = arith.divf %146, %147 : vector<8x128xf32>
    %149 = vector.extract_strided_slice %136 {offsets = [0, 256], sizes = [8, 128], strides = [1, 1]} : vector<8x512xf32> to vector<8x128xf32>
    %150 = math.tanh %149 : vector<8x128xf32>
    %151 = vector.extract_strided_slice %136 {offsets = [0, 384], sizes = [8, 128], strides = [1, 1]} : vector<8x512xf32> to vector<8x128xf32>
    %152 = arith.negf %151 : vector<8x128xf32>
    %153 = math.exp %152 : vector<8x128xf32>
    %cst_51 = arith.constant 1.000000e+00 : f32
    %154 = vector.broadcast %cst_51 : f32 to vector<8x128xf32>
    %155 = arith.addf %154, %153 : vector<8x128xf32>
    %156 = arith.divf %154, %155 : vector<8x128xf32>
    %157 = arith.mulf %148, %104 : vector<8x128xf32>
    %158 = arith.mulf %142, %150 : vector<8x128xf32>
    %159 = arith.addf %157, %158 : vector<8x128xf32>
    %160 = math.tanh %159 : vector<8x128xf32>
    %161 = arith.mulf %156, %160 : vector<8x128xf32>
    %162 = arith.addf %10, %132 : vector<8x128xf32>
    %163 = arith.truncf %161 : vector<8x128xf32> to vector<8x128xbf16>
    %cst_52 = arith.constant dense<0.000000e+00> : vector<8x128xf32>
    %164 = tpu.matmul %163, %13, %cst_52 {dimension_numbers = #tpu.dot_dimension_numbers<[1], [0], [0], [1], [0, 0, 1, 1], [], []>} : vector<8x128xbf16>, vector<128x128xbf16>, vector<8x128xf32> -> vector<8x128xf32>
    %165 = arith.addf %162, %164 : vector<8x128xf32>
    %166 = arith.index_cast %c2_i32 : i32 to index
    %c0_53 = arith.constant 0 : index
    %c0_54 = arith.constant 0 : index
    %167 = vector.load %arg12[%166, %c0_53, %c0_54] : memref<7x8x128xf32, #tpu.memory_space<vmem>>, vector<1x8x128xf32>
    %168 = vector.shape_cast %167 : vector<1x8x128xf32> to vector<8x128xf32>
    %169 = vector.shape_cast %165 : vector<8x128xf32> to vector<1x8x128xf32>
    tpu.vector_store %arg12[%166, %c0_53, %c0_54], %169 {strides = array<i32>} : memref<7x8x128xf32, #tpu.memory_space<vmem>>, vector<1x8x128xf32>,
    %170 = tpu.bitcast %165 : vector<8x128xf32> -> vector<8x128xi32>
    %c0_i32_55 = arith.constant 0 : i32
    %171 = vector.broadcast %c0_i32_55 : i32 to vector<8x128xi32>
    %172 = arith.cmpi slt, %170, %171 : vector<8x128xi32>
    %173 = vector.broadcast %c2147483647_i32 : i32 to vector<8x128xi32>
    %174 = arith.xori %170, %173 : vector<8x128xi32>
    %175 = arith.select %172, %174, %170 : vector<8x128xi1>, vector<8x128xi32>
    %176 = vector.broadcast %c-128_i32 : i32 to vector<8x128xi32>
    %177 = arith.andi %175, %176 : vector<8x128xi32>
    %178 = arith.ori %177, %17 : vector<8x128xi32>
    %cst_56 = arith.constant dense<-2147483648> : vector<8xi32>
    %179 = vector.multi_reduction <maxsi>, %178, %cst_56 [1] : vector<8x128xi32> to vector<8xi32>
    %180 = vector.shape_cast %179 : vector<8xi32> to vector<8x1xi32>
    %181 = vector.broadcast %180 : vector<8x1xi32> to vector<8x128xi32>
    %182 = arith.cmpi eq, %178, %181 : vector<8x128xi32>
    %183 = arith.extui %182 : vector<8x128xi1> to vector<8x128xi32>
    %184 = arith.sitofp %183 : vector<8x128xi32> to vector<8x128xf32>
    %185 = arith.truncf %184 : vector<8x128xf32> to vector<8x128xbf16>
    %c3_i32 = arith.constant 3 : i32
    %cst_57 = arith.constant dense<0.000000e+00> : vector<8x512xf32>
    %186 = tpu.matmul %185, %12, %cst_57 {dimension_numbers = #tpu.dot_dimension_numbers<[1], [0], [0], [1], [0, 0, 1, 1], [], []>} : vector<8x128xbf16>, vector<128x512xbf16>, vector<8x512xf32> -> vector<8x512xf32>
    %cst_58 = arith.constant dense<0.000000e+00> : vector<8x128xf32>
    %187 = tpu.matmul %185, %14, %cst_58 {dimension_numbers = #tpu.dot_dimension_numbers<[1], [0], [0], [1], [0, 0, 1, 1], [], []>} : vector<8x128xbf16>, vector<128x128xbf16>, vector<8x128xf32> -> vector<8x128xf32>
    %188 = arith.addf %5, %186 : vector<8x512xf32>
    %189 = arith.truncf %161 : vector<8x128xf32> to vector<8x128xbf16>
    %cst_59 = arith.constant dense<0.000000e+00> : vector<8x512xf32>
    %190 = tpu.matmul %189, %11, %cst_59 {dimension_numbers = #tpu.dot_dimension_numbers<[1], [0], [0], [1], [0, 0, 1, 1], [], []>} : vector<8x128xbf16>, vector<128x512xbf16>, vector<8x512xf32> -> vector<8x512xf32>
    %191 = arith.addf %188, %190 : vector<8x512xf32>
    %192 = vector.extract_strided_slice %191 {offsets = [0, 0], sizes = [8, 128], strides = [1, 1]} : vector<8x512xf32> to vector<8x128xf32>
    %193 = arith.negf %192 : vector<8x128xf32>
    %194 = math.exp %193 : vector<8x128xf32>
    %cst_60 = arith.constant 1.000000e+00 : f32
    %195 = vector.broadcast %cst_60 : f32 to vector<8x128xf32>
    %196 = arith.addf %195, %194 : vector<8x128xf32>
    %197 = arith.divf %195, %196 : vector<8x128xf32>
    %198 = vector.extract_strided_slice %191 {offsets = [0, 128], sizes = [8, 128], strides = [1, 1]} : vector<8x512xf32> to vector<8x128xf32>
    %199 = arith.negf %198 : vector<8x128xf32>
    %200 = math.exp %199 : vector<8x128xf32>
    %cst_61 = arith.constant 1.000000e+00 : f32
    %201 = vector.broadcast %cst_61 : f32 to vector<8x128xf32>
    %202 = arith.addf %201, %200 : vector<8x128xf32>
    %203 = arith.divf %201, %202 : vector<8x128xf32>
    %204 = vector.extract_strided_slice %191 {offsets = [0, 256], sizes = [8, 128], strides = [1, 1]} : vector<8x512xf32> to vector<8x128xf32>
    %205 = math.tanh %204 : vector<8x128xf32>
    %206 = vector.extract_strided_slice %191 {offsets = [0, 384], sizes = [8, 128], strides = [1, 1]} : vector<8x512xf32> to vector<8x128xf32>
    %207 = arith.negf %206 : vector<8x128xf32>
    %208 = math.exp %207 : vector<8x128xf32>
    %cst_62 = arith.constant 1.000000e+00 : f32
    %209 = vector.broadcast %cst_62 : f32 to vector<8x128xf32>
    %210 = arith.addf %209, %208 : vector<8x128xf32>
    %211 = arith.divf %209, %210 : vector<8x128xf32>
    %212 = arith.mulf %203, %159 : vector<8x128xf32>
    %213 = arith.mulf %197, %205 : vector<8x128xf32>
    %214 = arith.addf %212, %213 : vector<8x128xf32>
    %215 = math.tanh %214 : vector<8x128xf32>
    %216 = arith.mulf %211, %215 : vector<8x128xf32>
    %217 = arith.addf %10, %187 : vector<8x128xf32>
    %218 = arith.truncf %216 : vector<8x128xf32> to vector<8x128xbf16>
    %cst_63 = arith.constant dense<0.000000e+00> : vector<8x128xf32>
    %219 = tpu.matmul %218, %13, %cst_63 {dimension_numbers = #tpu.dot_dimension_numbers<[1], [0], [0], [1], [0, 0, 1, 1], [], []>} : vector<8x128xbf16>, vector<128x128xbf16>, vector<8x128xf32> -> vector<8x128xf32>
    %220 = arith.addf %217, %219 : vector<8x128xf32>
    %221 = arith.index_cast %c3_i32 : i32 to index
    %c0_64 = arith.constant 0 : index
    %c0_65 = arith.constant 0 : index
    %222 = vector.load %arg12[%221, %c0_64, %c0_65] : memref<7x8x128xf32, #tpu.memory_space<vmem>>, vector<1x8x128xf32>
    %223 = vector.shape_cast %222 : vector<1x8x128xf32> to vector<8x128xf32>
    %224 = vector.shape_cast %220 : vector<8x128xf32> to vector<1x8x128xf32>
    tpu.vector_store %arg12[%221, %c0_64, %c0_65], %224 {strides = array<i32>} : memref<7x8x128xf32, #tpu.memory_space<vmem>>, vector<1x8x128xf32>,
    %225 = tpu.bitcast %220 : vector<8x128xf32> -> vector<8x128xi32>
    %c0_i32_66 = arith.constant 0 : i32
    %226 = vector.broadcast %c0_i32_66 : i32 to vector<8x128xi32>
    %227 = arith.cmpi slt, %225, %226 : vector<8x128xi32>
    %228 = vector.broadcast %c2147483647_i32 : i32 to vector<8x128xi32>
    %229 = arith.xori %225, %228 : vector<8x128xi32>
    %230 = arith.select %227, %229, %225 : vector<8x128xi1>, vector<8x128xi32>
    %231 = vector.broadcast %c-128_i32 : i32 to vector<8x128xi32>
    %232 = arith.andi %230, %231 : vector<8x128xi32>
    %233 = arith.ori %232, %17 : vector<8x128xi32>
    %cst_67 = arith.constant dense<-2147483648> : vector<8xi32>
    %234 = vector.multi_reduction <maxsi>, %233, %cst_67 [1] : vector<8x128xi32> to vector<8xi32>
    %235 = vector.shape_cast %234 : vector<8xi32> to vector<8x1xi32>
    %236 = vector.broadcast %235 : vector<8x1xi32> to vector<8x128xi32>
    %237 = arith.cmpi eq, %233, %236 : vector<8x128xi32>
    %238 = arith.extui %237 : vector<8x128xi1> to vector<8x128xi32>
    %239 = arith.sitofp %238 : vector<8x128xi32> to vector<8x128xf32>
    %240 = arith.truncf %239 : vector<8x128xf32> to vector<8x128xbf16>
    %c4_i32 = arith.constant 4 : i32
    %cst_68 = arith.constant dense<0.000000e+00> : vector<8x512xf32>
    %241 = tpu.matmul %240, %12, %cst_68 {dimension_numbers = #tpu.dot_dimension_numbers<[1], [0], [0], [1], [0, 0, 1, 1], [], []>} : vector<8x128xbf16>, vector<128x512xbf16>, vector<8x512xf32> -> vector<8x512xf32>
    %cst_69 = arith.constant dense<0.000000e+00> : vector<8x128xf32>
    %242 = tpu.matmul %240, %14, %cst_69 {dimension_numbers = #tpu.dot_dimension_numbers<[1], [0], [0], [1], [0, 0, 1, 1], [], []>} : vector<8x128xbf16>, vector<128x128xbf16>, vector<8x128xf32> -> vector<8x128xf32>
    %243 = arith.addf %5, %241 : vector<8x512xf32>
    %244 = arith.truncf %216 : vector<8x128xf32> to vector<8x128xbf16>
    %cst_70 = arith.constant dense<0.000000e+00> : vector<8x512xf32>
    %245 = tpu.matmul %244, %11, %cst_70 {dimension_numbers = #tpu.dot_dimension_numbers<[1], [0], [0], [1], [0, 0, 1, 1], [], []>} : vector<8x128xbf16>, vector<128x512xbf16>, vector<8x512xf32> -> vector<8x512xf32>
    %246 = arith.addf %243, %245 : vector<8x512xf32>
    %247 = vector.extract_strided_slice %246 {offsets = [0, 0], sizes = [8, 128], strides = [1, 1]} : vector<8x512xf32> to vector<8x128xf32>
    %248 = arith.negf %247 : vector<8x128xf32>
    %249 = math.exp %248 : vector<8x128xf32>
    %cst_71 = arith.constant 1.000000e+00 : f32
    %250 = vector.broadcast %cst_71 : f32 to vector<8x128xf32>
    %251 = arith.addf %250, %249 : vector<8x128xf32>
    %252 = arith.divf %250, %251 : vector<8x128xf32>
    %253 = vector.extract_strided_slice %246 {offsets = [0, 128], sizes = [8, 128], strides = [1, 1]} : vector<8x512xf32> to vector<8x128xf32>
    %254 = arith.negf %253 : vector<8x128xf32>
    %255 = math.exp %254 : vector<8x128xf32>
    %cst_72 = arith.constant 1.000000e+00 : f32
    %256 = vector.broadcast %cst_72 : f32 to vector<8x128xf32>
    %257 = arith.addf %256, %255 : vector<8x128xf32>
    %258 = arith.divf %256, %257 : vector<8x128xf32>
    %259 = vector.extract_strided_slice %246 {offsets = [0, 256], sizes = [8, 128], strides = [1, 1]} : vector<8x512xf32> to vector<8x128xf32>
    %260 = math.tanh %259 : vector<8x128xf32>
    %261 = vector.extract_strided_slice %246 {offsets = [0, 384], sizes = [8, 128], strides = [1, 1]} : vector<8x512xf32> to vector<8x128xf32>
    %262 = arith.negf %261 : vector<8x128xf32>
    %263 = math.exp %262 : vector<8x128xf32>
    %cst_73 = arith.constant 1.000000e+00 : f32
    %264 = vector.broadcast %cst_73 : f32 to vector<8x128xf32>
    %265 = arith.addf %264, %263 : vector<8x128xf32>
    %266 = arith.divf %264, %265 : vector<8x128xf32>
    %267 = arith.mulf %258, %214 : vector<8x128xf32>
    %268 = arith.mulf %252, %260 : vector<8x128xf32>
    %269 = arith.addf %267, %268 : vector<8x128xf32>
    %270 = math.tanh %269 : vector<8x128xf32>
    %271 = arith.mulf %266, %270 : vector<8x128xf32>
    %272 = arith.addf %10, %242 : vector<8x128xf32>
    %273 = arith.truncf %271 : vector<8x128xf32> to vector<8x128xbf16>
    %cst_74 = arith.constant dense<0.000000e+00> : vector<8x128xf32>
    %274 = tpu.matmul %273, %13, %cst_74 {dimension_numbers = #tpu.dot_dimension_numbers<[1], [0], [0], [1], [0, 0, 1, 1], [], []>} : vector<8x128xbf16>, vector<128x128xbf16>, vector<8x128xf32> -> vector<8x128xf32>
    %275 = arith.addf %272, %274 : vector<8x128xf32>
    %276 = arith.index_cast %c4_i32 : i32 to index
    %c0_75 = arith.constant 0 : index
    %c0_76 = arith.constant 0 : index
    %277 = vector.load %arg12[%276, %c0_75, %c0_76] : memref<7x8x128xf32, #tpu.memory_space<vmem>>, vector<1x8x128xf32>
    %278 = vector.shape_cast %277 : vector<1x8x128xf32> to vector<8x128xf32>
    %279 = vector.shape_cast %275 : vector<8x128xf32> to vector<1x8x128xf32>
    tpu.vector_store %arg12[%276, %c0_75, %c0_76], %279 {strides = array<i32>} : memref<7x8x128xf32, #tpu.memory_space<vmem>>, vector<1x8x128xf32>,
    %280 = tpu.bitcast %275 : vector<8x128xf32> -> vector<8x128xi32>
    %c0_i32_77 = arith.constant 0 : i32
    %281 = vector.broadcast %c0_i32_77 : i32 to vector<8x128xi32>
    %282 = arith.cmpi slt, %280, %281 : vector<8x128xi32>
    %283 = vector.broadcast %c2147483647_i32 : i32 to vector<8x128xi32>
    %284 = arith.xori %280, %283 : vector<8x128xi32>
    %285 = arith.select %282, %284, %280 : vector<8x128xi1>, vector<8x128xi32>
    %286 = vector.broadcast %c-128_i32 : i32 to vector<8x128xi32>
    %287 = arith.andi %285, %286 : vector<8x128xi32>
    %288 = arith.ori %287, %17 : vector<8x128xi32>
    %cst_78 = arith.constant dense<-2147483648> : vector<8xi32>
    %289 = vector.multi_reduction <maxsi>, %288, %cst_78 [1] : vector<8x128xi32> to vector<8xi32>
    %290 = vector.shape_cast %289 : vector<8xi32> to vector<8x1xi32>
    %291 = vector.broadcast %290 : vector<8x1xi32> to vector<8x128xi32>
    %292 = arith.cmpi eq, %288, %291 : vector<8x128xi32>
    %293 = arith.extui %292 : vector<8x128xi1> to vector<8x128xi32>
    %294 = arith.sitofp %293 : vector<8x128xi32> to vector<8x128xf32>
    %295 = arith.truncf %294 : vector<8x128xf32> to vector<8x128xbf16>
    %c5_i32 = arith.constant 5 : i32
    %cst_79 = arith.constant dense<0.000000e+00> : vector<8x512xf32>
    %296 = tpu.matmul %295, %12, %cst_79 {dimension_numbers = #tpu.dot_dimension_numbers<[1], [0], [0], [1], [0, 0, 1, 1], [], []>} : vector<8x128xbf16>, vector<128x512xbf16>, vector<8x512xf32> -> vector<8x512xf32>
    %cst_80 = arith.constant dense<0.000000e+00> : vector<8x128xf32>
    %297 = tpu.matmul %295, %14, %cst_80 {dimension_numbers = #tpu.dot_dimension_numbers<[1], [0], [0], [1], [0, 0, 1, 1], [], []>} : vector<8x128xbf16>, vector<128x128xbf16>, vector<8x128xf32> -> vector<8x128xf32>
    %298 = arith.addf %5, %296 : vector<8x512xf32>
    %299 = arith.truncf %271 : vector<8x128xf32> to vector<8x128xbf16>
    %cst_81 = arith.constant dense<0.000000e+00> : vector<8x512xf32>
    %300 = tpu.matmul %299, %11, %cst_81 {dimension_numbers = #tpu.dot_dimension_numbers<[1], [0], [0], [1], [0, 0, 1, 1], [], []>} : vector<8x128xbf16>, vector<128x512xbf16>, vector<8x512xf32> -> vector<8x512xf32>
    %301 = arith.addf %298, %300 : vector<8x512xf32>
    %302 = vector.extract_strided_slice %301 {offsets = [0, 0], sizes = [8, 128], strides = [1, 1]} : vector<8x512xf32> to vector<8x128xf32>
    %303 = arith.negf %302 : vector<8x128xf32>
    %304 = math.exp %303 : vector<8x128xf32>
    %cst_82 = arith.constant 1.000000e+00 : f32
    %305 = vector.broadcast %cst_82 : f32 to vector<8x128xf32>
    %306 = arith.addf %305, %304 : vector<8x128xf32>
    %307 = arith.divf %305, %306 : vector<8x128xf32>
    %308 = vector.extract_strided_slice %301 {offsets = [0, 128], sizes = [8, 128], strides = [1, 1]} : vector<8x512xf32> to vector<8x128xf32>
    %309 = arith.negf %308 : vector<8x128xf32>
    %310 = math.exp %309 : vector<8x128xf32>
    %cst_83 = arith.constant 1.000000e+00 : f32
    %311 = vector.broadcast %cst_83 : f32 to vector<8x128xf32>
    %312 = arith.addf %311, %310 : vector<8x128xf32>
    %313 = arith.divf %311, %312 : vector<8x128xf32>
    %314 = vector.extract_strided_slice %301 {offsets = [0, 256], sizes = [8, 128], strides = [1, 1]} : vector<8x512xf32> to vector<8x128xf32>
    %315 = math.tanh %314 : vector<8x128xf32>
    %316 = vector.extract_strided_slice %301 {offsets = [0, 384], sizes = [8, 128], strides = [1, 1]} : vector<8x512xf32> to vector<8x128xf32>
    %317 = arith.negf %316 : vector<8x128xf32>
    %318 = math.exp %317 : vector<8x128xf32>
    %cst_84 = arith.constant 1.000000e+00 : f32
    %319 = vector.broadcast %cst_84 : f32 to vector<8x128xf32>
    %320 = arith.addf %319, %318 : vector<8x128xf32>
    %321 = arith.divf %319, %320 : vector<8x128xf32>
    %322 = arith.mulf %313, %269 : vector<8x128xf32>
    %323 = arith.mulf %307, %315 : vector<8x128xf32>
    %324 = arith.addf %322, %323 : vector<8x128xf32>
    %325 = math.tanh %324 : vector<8x128xf32>
    %326 = arith.mulf %321, %325 : vector<8x128xf32>
    %327 = arith.addf %10, %297 : vector<8x128xf32>
    %328 = arith.truncf %326 : vector<8x128xf32> to vector<8x128xbf16>
    %cst_85 = arith.constant dense<0.000000e+00> : vector<8x128xf32>
    %329 = tpu.matmul %328, %13, %cst_85 {dimension_numbers = #tpu.dot_dimension_numbers<[1], [0], [0], [1], [0, 0, 1, 1], [], []>} : vector<8x128xbf16>, vector<128x128xbf16>, vector<8x128xf32> -> vector<8x128xf32>
    %330 = arith.addf %327, %329 : vector<8x128xf32>
    %331 = arith.index_cast %c5_i32 : i32 to index
    %c0_86 = arith.constant 0 : index
    %c0_87 = arith.constant 0 : index
    %332 = vector.load %arg12[%331, %c0_86, %c0_87] : memref<7x8x128xf32, #tpu.memory_space<vmem>>, vector<1x8x128xf32>
    %333 = vector.shape_cast %332 : vector<1x8x128xf32> to vector<8x128xf32>
    %334 = vector.shape_cast %330 : vector<8x128xf32> to vector<1x8x128xf32>
    tpu.vector_store %arg12[%331, %c0_86, %c0_87], %334 {strides = array<i32>} : memref<7x8x128xf32, #tpu.memory_space<vmem>>, vector<1x8x128xf32>,
    %335 = tpu.bitcast %330 : vector<8x128xf32> -> vector<8x128xi32>
    %c0_i32_88 = arith.constant 0 : i32
    %336 = vector.broadcast %c0_i32_88 : i32 to vector<8x128xi32>
    %337 = arith.cmpi slt, %335, %336 : vector<8x128xi32>
    %338 = vector.broadcast %c2147483647_i32 : i32 to vector<8x128xi32>
    %339 = arith.xori %335, %338 : vector<8x128xi32>
    %340 = arith.select %337, %339, %335 : vector<8x128xi1>, vector<8x128xi32>
    %341 = vector.broadcast %c-128_i32 : i32 to vector<8x128xi32>
    %342 = arith.andi %340, %341 : vector<8x128xi32>
    %343 = arith.ori %342, %17 : vector<8x128xi32>
    %cst_89 = arith.constant dense<-2147483648> : vector<8xi32>
    %344 = vector.multi_reduction <maxsi>, %343, %cst_89 [1] : vector<8x128xi32> to vector<8xi32>
    %345 = vector.shape_cast %344 : vector<8xi32> to vector<8x1xi32>
    %346 = vector.broadcast %345 : vector<8x1xi32> to vector<8x128xi32>
    %347 = arith.cmpi eq, %343, %346 : vector<8x128xi32>
    %348 = arith.extui %347 : vector<8x128xi1> to vector<8x128xi32>
    %349 = arith.sitofp %348 : vector<8x128xi32> to vector<8x128xf32>
    %350 = arith.truncf %349 : vector<8x128xf32> to vector<8x128xbf16>
    %c6_i32 = arith.constant 6 : i32
    %cst_90 = arith.constant dense<0.000000e+00> : vector<8x512xf32>
    %351 = tpu.matmul %350, %12, %cst_90 {dimension_numbers = #tpu.dot_dimension_numbers<[1], [0], [0], [1], [0, 0, 1, 1], [], []>} : vector<8x128xbf16>, vector<128x512xbf16>, vector<8x512xf32> -> vector<8x512xf32>
    %cst_91 = arith.constant dense<0.000000e+00> : vector<8x128xf32>
    %352 = tpu.matmul %350, %14, %cst_91 {dimension_numbers = #tpu.dot_dimension_numbers<[1], [0], [0], [1], [0, 0, 1, 1], [], []>} : vector<8x128xbf16>, vector<128x128xbf16>, vector<8x128xf32> -> vector<8x128xf32>
    %353 = arith.addf %5, %351 : vector<8x512xf32>
    %354 = arith.truncf %326 : vector<8x128xf32> to vector<8x128xbf16>
    %cst_92 = arith.constant dense<0.000000e+00> : vector<8x512xf32>
    %355 = tpu.matmul %354, %11, %cst_92 {dimension_numbers = #tpu.dot_dimension_numbers<[1], [0], [0], [1], [0, 0, 1, 1], [], []>} : vector<8x128xbf16>, vector<128x512xbf16>, vector<8x512xf32> -> vector<8x512xf32>
    %356 = arith.addf %353, %355 : vector<8x512xf32>
    %357 = vector.extract_strided_slice %356 {offsets = [0, 0], sizes = [8, 128], strides = [1, 1]} : vector<8x512xf32> to vector<8x128xf32>
    %358 = arith.negf %357 : vector<8x128xf32>
    %359 = math.exp %358 : vector<8x128xf32>
    %cst_93 = arith.constant 1.000000e+00 : f32
    %360 = vector.broadcast %cst_93 : f32 to vector<8x128xf32>
    %361 = arith.addf %360, %359 : vector<8x128xf32>
    %362 = arith.divf %360, %361 : vector<8x128xf32>
    %363 = vector.extract_strided_slice %356 {offsets = [0, 128], sizes = [8, 128], strides = [1, 1]} : vector<8x512xf32> to vector<8x128xf32>
    %364 = arith.negf %363 : vector<8x128xf32>
    %365 = math.exp %364 : vector<8x128xf32>
    %cst_94 = arith.constant 1.000000e+00 : f32
    %366 = vector.broadcast %cst_94 : f32 to vector<8x128xf32>
    %367 = arith.addf %366, %365 : vector<8x128xf32>
    %368 = arith.divf %366, %367 : vector<8x128xf32>
    %369 = vector.extract_strided_slice %356 {offsets = [0, 256], sizes = [8, 128], strides = [1, 1]} : vector<8x512xf32> to vector<8x128xf32>
    %370 = math.tanh %369 : vector<8x128xf32>
    %371 = vector.extract_strided_slice %356 {offsets = [0, 384], sizes = [8, 128], strides = [1, 1]} : vector<8x512xf32> to vector<8x128xf32>
    %372 = arith.negf %371 : vector<8x128xf32>
    %373 = math.exp %372 : vector<8x128xf32>
    %cst_95 = arith.constant 1.000000e+00 : f32
    %374 = vector.broadcast %cst_95 : f32 to vector<8x128xf32>
    %375 = arith.addf %374, %373 : vector<8x128xf32>
    %376 = arith.divf %374, %375 : vector<8x128xf32>
    %377 = arith.mulf %368, %324 : vector<8x128xf32>
    %378 = arith.mulf %362, %370 : vector<8x128xf32>
    %379 = arith.addf %377, %378 : vector<8x128xf32>
    %380 = math.tanh %379 : vector<8x128xf32>
    %381 = arith.mulf %376, %380 : vector<8x128xf32>
    %382 = arith.addf %10, %352 : vector<8x128xf32>
    %383 = arith.truncf %381 : vector<8x128xf32> to vector<8x128xbf16>
    %cst_96 = arith.constant dense<0.000000e+00> : vector<8x128xf32>
    %384 = tpu.matmul %383, %13, %cst_96 {dimension_numbers = #tpu.dot_dimension_numbers<[1], [0], [0], [1], [0, 0, 1, 1], [], []>} : vector<8x128xbf16>, vector<128x128xbf16>, vector<8x128xf32> -> vector<8x128xf32>
    %385 = arith.addf %382, %384 : vector<8x128xf32>
    %386 = arith.index_cast %c6_i32 : i32 to index
    %c0_97 = arith.constant 0 : index
    %c0_98 = arith.constant 0 : index
    %387 = vector.load %arg12[%386, %c0_97, %c0_98] : memref<7x8x128xf32, #tpu.memory_space<vmem>>, vector<1x8x128xf32>
    %388 = vector.shape_cast %387 : vector<1x8x128xf32> to vector<8x128xf32>
    %389 = vector.shape_cast %385 : vector<8x128xf32> to vector<1x8x128xf32>
    tpu.vector_store %arg12[%386, %c0_97, %c0_98], %389 {strides = array<i32>} : memref<7x8x128xf32, #tpu.memory_space<vmem>>, vector<1x8x128xf32>,
    %390 = tpu.bitcast %385 : vector<8x128xf32> -> vector<8x128xi32>
    %c0_i32_99 = arith.constant 0 : i32
    %391 = vector.broadcast %c0_i32_99 : i32 to vector<8x128xi32>
    %392 = arith.cmpi slt, %390, %391 : vector<8x128xi32>
    %393 = vector.broadcast %c2147483647_i32 : i32 to vector<8x128xi32>
    %394 = arith.xori %390, %393 : vector<8x128xi32>
    %395 = arith.select %392, %394, %390 : vector<8x128xi1>, vector<8x128xi32>
    %396 = vector.broadcast %c-128_i32 : i32 to vector<8x128xi32>
    %397 = arith.andi %395, %396 : vector<8x128xi32>
    %398 = arith.ori %397, %17 : vector<8x128xi32>
    %cst_100 = arith.constant dense<-2147483648> : vector<8xi32>
    %399 = vector.multi_reduction <maxsi>, %398, %cst_100 [1] : vector<8x128xi32> to vector<8xi32>
    %400 = vector.shape_cast %399 : vector<8xi32> to vector<8x1xi32>
    %401 = vector.broadcast %400 : vector<8x1xi32> to vector<8x128xi32>
    %402 = arith.cmpi eq, %398, %401 : vector<8x128xi32>
    %403 = arith.extui %402 : vector<8x128xi1> to vector<8x128xi32>
    %404 = arith.sitofp %403 : vector<8x128xi32> to vector<8x128xf32>
    %405 = arith.truncf %404 : vector<8x128xf32> to vector<8x128xbf16>
    %c7_i32 = arith.constant 7 : i32
    %c0_101 = arith.constant 0 : index
    %c0_102 = arith.constant 0 : index
    %406 = vector.load %arg13[%c0_101, %c0_102] : memref<8x128xf32, #tpu.memory_space<vmem>>, vector<8x128xf32>
    tpu.vector_store %arg13[%c0_101, %c0_102], %381 {strides = array<i32>} : memref<8x128xf32, #tpu.memory_space<vmem>>, vector<8x128xf32>,
    %c0_103 = arith.constant 0 : index
    %c0_104 = arith.constant 0 : index
    %407 = vector.load %arg14[%c0_103, %c0_104] : memref<8x128xf32, #tpu.memory_space<vmem>>, vector<8x128xf32>
    tpu.vector_store %arg14[%c0_103, %c0_104], %379 {strides = array<i32>} : memref<8x128xf32, #tpu.memory_space<vmem>>, vector<8x128xf32>,
    return
  }
}

</mosaic_0001>

<llo_original>
// kernel: greedy_decode.1
$region0: #{greedy_decode.1}
  #allocation0 [shape = 'u32[]', space=smem, size = 0x4, offset = 0x4, fixed_abs, tag = 'smem constant byte address 0x4 - core index']
  #allocation1 [shape = 'u32[144,128]{1,0:T(1,128)}', space=vmem, size = 0x12000, scoped, tag = 'internal scratch']
  %s0 = inlined_call_operand.vmem [shape: bf16[8,128], index: 0, kind: input, shape index: {}]
  %s1 = inlined_call_operand.vmem [shape: bf16[8,128], index: 1, kind: input, shape index: {}]
  %s2 = inlined_call_operand.vmem [shape: f32[8,128], index: 2, kind: input, shape index: {}]
  %s3 = inlined_call_operand.vmem [shape: f32[8,128], index: 3, kind: input, shape index: {}]
  %s4 = inlined_call_operand.hbm [shape: bf16[128,512], index: 4, kind: input, shape index: {}]
  %s5 = inlined_call_operand.hbm [shape: bf16[128,512], index: 5, kind: input, shape index: {}]
  %s6 = inlined_call_operand.hbm [shape: bf16[128,512], index: 6, kind: input, shape index: {}]
  %s7 = inlined_call_operand.hbm [shape: f32[1,512], index: 7, kind: input, shape index: {}]
  %s8 = inlined_call_operand.hbm [shape: bf16[128,128], index: 8, kind: input, shape index: {}]
  %s9 = inlined_call_operand.hbm [shape: bf16[128,128], index: 9, kind: input, shape index: {}]
  %s10 = inlined_call_operand.hbm [shape: bf16[128,128], index: 10, kind: input, shape index: {}]
  %s11 = inlined_call_operand.vmem [shape: f32[1,128], index: 11, kind: input, shape index: {}]
  %s12 = inlined_call_operand.hbm [shape: f32[7,8,128], index: 12, kind: output, shape index: {0}]
  %s13 = inlined_call_operand.hbm [shape: f32[8,128], index: 13, kind: output, shape index: {1}]
  %s14 = inlined_call_operand.hbm [shape: f32[8,128], index: 14, kind: output, shape index: {2}]
  %15 = xla_tuple %s12, %s13, %s14
  %s16 = sld [smem:[#allocation0]]
  $region102: #{greedy_decode.1} parent=0
    _
  %s18 = ssub.s32 1, %s16
  %s19 = scalar_select 0, %s18, %s16
  $region1: #{greedy_decode.1} parent=0
    #allocation2 [shape = 'u8[131072]{0}', space=vmem, size = 0x20000, scoped, tag = 'input window, operand 4, single buffered']
    #allocation3 [shape = 's32[1]{0}', space=sflag, size = 0x4, scoped, tag = 'scoped memory for greedy_decode.1']
    #allocation4 [shape = 's32[1]{0}', space=sflag, size = 0x4, scoped, tag = 'scoped memory for greedy_decode.1']
    #allocation5 [shape = 'u8[131072]{0}', space=vmem, size = 0x20000, scoped, tag = 'input window, operand 5, single buffered']
    #allocation6 [shape = 's32[1]{0}', space=sflag, size = 0x4, scoped, tag = 'scoped memory for greedy_decode.1']
    #allocation7 [shape = 'u8[131072]{0}', space=vmem, size = 0x20000, scoped, tag = 'input window, operand 6, single buffered']
    #allocation8 [shape = 'u8[2048]{0}', space=vmem, size = 0x800, scoped, tag = 'input window, operand 7, single buffered']
    #allocation9 [shape = 's32[1]{0}', space=sflag, size = 0x4, scoped, tag = 'scoped memory for greedy_decode.1']
    #allocation10 [shape = 'u8[32768]{0}', space=vmem, size = 0x8000, scoped, tag = 'input window, operand 8, single buffered']
    #allocation11 [shape = 'u8[32768]{0}', space=vmem, size = 0x8000, scoped, tag = 'input window, operand 9, single buffered']
    #allocation12 [shape = 's32[1]{0}', space=sflag, size = 0x4, scoped, tag = 'scoped memory for greedy_decode.1']
    #allocation13 [shape = 'u8[32768]{0}', space=vmem, size = 0x8000, scoped, tag = 'input window, operand 10, single buffered']
    #allocation14 [shape = 'u8[28672]{0}', space=vmem, size = 0x7000, scoped, tag = 'output window, operand 0, single buffered']
    #allocation15 [shape = 'u8[4096]{0}', space=vmem, size = 0x1000, scoped, tag = 'output window, operand 1, single buffered']
    #allocation16 [shape = 's32[1]{0}', space=sflag, size = 0x4, scoped, tag = 'scoped memory for greedy_decode.1']
    #allocation17 [shape = 'u8[4096]{0}', space=vmem, size = 0x1000, scoped, tag = 'output window, operand 2, single buffered']
    %20 = vsyncpa [#allocation3], 0
    %21 = vsyncpa [#allocation6], 0
    %22 = vsyncpa [#allocation9], 0
    %23 = vsyncpa [#allocation12], 0
    %24 = vsyncpa [#allocation4], 0
    %25 = vsyncpa [#allocation16], 0
    // Predicated region
    $region2: #{greedy_decode.1} parent=1 // pred_check
      _
    $region3: #{greedy_decode.1} parent=1 // pred_check_branch
      %27 = sbr.rel (0) target = $region5
    $region4: #{greedy_decode.1} parent=1 // pred_region
      _
    $region5: #{greedy_decode.1} parent=1 // pred_fallthru
      _
    // Predicated region
    $region6: #{greedy_decode.1} parent=1 // pred_check
      _
    $region7: #{greedy_decode.1} parent=1 // pred_check_branch
      %29 = sbr.rel (0) target = $region9
    $region8: #{greedy_decode.1} parent=1 // pred_region
      _
    $region9: #{greedy_decode.1} parent=1 // pred_fallthru
      _
    // Predicated region
    $region10: #{greedy_decode.1} parent=1 // pred_check
      _
    $region11: #{greedy_decode.1} parent=1 // pred_check_branch
      %31 = sbr.rel (0) target = $region13
    $region12: #{greedy_decode.1} parent=1 // pred_region
      _
    $region13: #{greedy_decode.1} parent=1 // pred_fallthru
      _
    // Predicated region
    $region14: #{greedy_decode.1} parent=1 // pred_check
      _
    $region15: #{greedy_decode.1} parent=1 // pred_check_branch
      %33 = sbr.rel (0) target = $region17
    $region16: #{greedy_decode.1} parent=1 // pred_region
      _
    $region17: #{greedy_decode.1} parent=1 // pred_fallthru
      _
    // Predicated region
    $region18: #{greedy_decode.1} parent=1 // pred_check
      _
    $region19: #{greedy_decode.1} parent=1 // pred_check_branch
      %35 = sbr.rel (0) target = $region21
    $region20: #{greedy_decode.1} parent=1 // pred_region
      %s37 = ssub.s32 4096, 4096
      %38 = vsyncadd [#allocation3], %s37
      %s39 = sshll.u32 [#allocation2], 4
      %s40 = int_to_ptr.vmem [resolvable:$true] %s39
      %45 = dma.hbm_to_vmem [thread:$0]  %s4, 4096, %s40, [#allocation3], 256, 256, 16
    $region21: #{greedy_decode.1} parent=1 // pred_fallthru
      _
    // Predicated region
    $region22: #{greedy_decode.1} parent=1 // pred_check
      _
    $region23: #{greedy_decode.1} parent=1 // pred_check_branch
      %47 = sbr.rel (0) target = $region25
    $region24: #{greedy_decode.1} parent=1 // pred_region
      %s49 = ssub.s32 4096, 4096
      %50 = vsyncadd [#allocation6], %s49
      %s51 = sshll.u32 [#allocation5], 4
      %s52 = int_to_ptr.vmem [resolvable:$true] %s51
      %57 = dma.hbm_to_vmem [thread:$0]  %s5, 4096, %s52, [#allocation6], 256, 256, 16
    $region25: #{greedy_decode.1} parent=1 // pred_fallthru
      _
    // Predicated region
    $region26: #{greedy_decode.1} parent=1 // pred_check
      _
    $region27: #{greedy_decode.1} parent=1 // pred_check_branch
      %59 = sbr.rel (0) target = $region29
    $region28: #{greedy_decode.1} parent=1 // pred_region
      %s61 = ssub.s32 4096, 4096
      %62 = vsyncadd [#allocation6], %s61
      %s63 = sshll.u32 [#allocation7], 4
      %s64 = int_to_ptr.vmem [resolvable:$true] %s63
      %69 = dma.hbm_to_vmem [thread:$0]  %s6, 4096, %s64, [#allocation6], 256, 256, 16
    $region29: #{greedy_decode.1} parent=1 // pred_fallthru
      _
    // Predicated region
    $region30: #{greedy_decode.1} parent=1 // pred_check
      _
    $region31: #{greedy_decode.1} parent=1 // pred_check_branch
      %71 = sbr.rel (0) target = $region33
    $region32: #{greedy_decode.1} parent=1 // pred_region
      %s73 = ssub.s32 64, 64
      %74 = vsyncadd [#allocation9], %s73
      %s76 = sshll.u32 [#allocation8], 4
      %s77 = int_to_ptr.vmem [resolvable:$true] %s76
      %79 = dma.hbm_to_vmem [thread:$0]  %s7, 64, %s77, [#allocation9]
    $region33: #{greedy_decode.1} parent=1 // pred_fallthru
      _
    // Predicated region
    $region34: #{greedy_decode.1} parent=1 // pred_check
      _
    $region35: #{greedy_decode.1} parent=1 // pred_check_branch
      %81 = sbr.rel (0) target = $region37
    $region36: #{greedy_decode.1} parent=1 // pred_region
      %s83 = ssub.s32 1024, 1024
      %84 = vsyncadd [#allocation9], %s83
      %s85 = sshll.u32 [#allocation10], 4
      %s86 = int_to_ptr.vmem [resolvable:$true] %s85
      %91 = dma.hbm_to_vmem [thread:$0]  %s8, 1024, %s86, [#allocation9], 64, 64, 4
    $region37: #{greedy_decode.1} parent=1 // pred_fallthru
      _
    // Predicated region
    $region38: #{greedy_decode.1} parent=1 // pred_check
      _
    $region39: #{greedy_decode.1} parent=1 // pred_check_branch
      %93 = sbr.rel (0) target = $region41
    $region40: #{greedy_decode.1} parent=1 // pred_region
      %s95 = ssub.s32 1024, 1024
      %96 = vsyncadd [#allocation12], %s95
      %s97 = sshll.u32 [#allocation11], 4
      %s98 = int_to_ptr.vmem [resolvable:$true] %s97
      %103 = dma.hbm_to_vmem [thread:$0]  %s9, 1024, %s98, [#allocation12], 64, 64, 4
    $region41: #{greedy_decode.1} parent=1 // pred_fallthru
      _
    // Predicated region
    $region42: #{greedy_decode.1} parent=1 // pred_check
      _
    $region43: #{greedy_decode.1} parent=1 // pred_check_branch
      %105 = sbr.rel (0) target = $region45
    $region44: #{greedy_decode.1} parent=1 // pred_region
      %s107 = ssub.s32 1024, 1024
      %108 = vsyncadd [#allocation12], %s107
      %s109 = sshll.u32 [#allocation13], 4
      %s110 = int_to_ptr.vmem [resolvable:$true] %s109
      %115 = dma.hbm_to_vmem [thread:$0]  %s10, 1024, %s110, [#allocation12], 64, 64, 4
    $region45: #{greedy_decode.1} parent=1 // pred_fallthru
      _
    // Predicated region
    $region46: #{greedy_decode.1} parent=1 // pred_check
      _
    $region47: #{greedy_decode.1} parent=1 // pred_check_branch
      %117 = sbr.rel (0) target = $region49
    $region48: #{greedy_decode.1} parent=1 // pred_region
      _
    $region49: #{greedy_decode.1} parent=1 // pred_fallthru
      _
    // Predicated region
    $region50: #{greedy_decode.1} parent=1 // pred_check
      _
    $region51: #{greedy_decode.1} parent=1 // pred_check_branch
      %119 = sbr.rel (0) target = $region53
    $region52: #{greedy_decode.1} parent=1 // pred_region
      %120 = dma.done [#allocation3], 4096
    $region53: #{greedy_decode.1} parent=1 // pred_fallthru
      _
    // Predicated region
    $region54: #{greedy_decode.1} parent=1 // pred_check
      _
    $region55: #{greedy_decode.1} parent=1 // pred_check_branch
      %122 = sbr.rel (0) target = $region57
    $region56: #{greedy_decode.1} parent=1 // pred_region
      %123 = dma.done [#allocation6], 4096
    $region57: #{greedy_decode.1} parent=1 // pred_fallthru
      _
    // Predicated region
    $region58: #{greedy_decode.1} parent=1 // pred_check
      _
    $region59: #{greedy_decode.1} parent=1 // pred_check_branch
      %125 = sbr.rel (0) target = $region61
    $region60: #{greedy_decode.1} parent=1 // pred_region
      %126 = dma.done [#allocation6], 4096
    $region61: #{greedy_decode.1} parent=1 // pred_fallthru
      _
    // Predicated region
    $region62: #{greedy_decode.1} parent=1 // pred_check
      _
    $region63: #{greedy_decode.1} parent=1 // pred_check_branch
      %128 = sbr.rel (0) target = $region65
    $region64: #{greedy_decode.1} parent=1 // pred_region
      %129 = dma.done [#allocation9], 64
    $region65: #{greedy_decode.1} parent=1 // pred_fallthru
      _
    // Predicated region
    $region66: #{greedy_decode.1} parent=1 // pred_check
      _
    $region67: #{greedy_decode.1} parent=1 // pred_check_branch
      %131 = sbr.rel (0) target = $region69
    $region68: #{greedy_decode.1} parent=1 // pred_region
      %132 = dma.done [#allocation9], 1024
    $region69: #{greedy_decode.1} parent=1 // pred_fallthru
      _
    // Predicated region
    $region70: #{greedy_decode.1} parent=1 // pred_check
      _
    $region71: #{greedy_decode.1} parent=1 // pred_check_branch
      %134 = sbr.rel (0) target = $region73
    $region72: #{greedy_decode.1} parent=1 // pred_region
      %135 = dma.done [#allocation12], 1024
    $region73: #{greedy_decode.1} parent=1 // pred_fallthru
      _
    // Predicated region
    $region74: #{greedy_decode.1} parent=1 // pred_check
      _
    $region75: #{greedy_decode.1} parent=1 // pred_check_branch
      %137 = sbr.rel (0) target = $region77
    $region76: #{greedy_decode.1} parent=1 // pred_region
      %138 = dma.done [#allocation12], 1024
    $region77: #{greedy_decode.1} parent=1 // pred_fallthru
      _
    %v140 = vld [vmem:[%s1] sm:$0xf]
    %v141 = vld [vmem:[#allocation7] sm:$0xff]
    %v142 = vld [vmem:[#allocation7 + $0x8] sm:$0xff]
    %v143 = vld [vmem:[#allocation7 + $0x10] sm:$0xff]
    %v144 = vld [vmem:[#allocation7 + $0x18] sm:$0xff]
    %v145 = vld [vmem:[#allocation7 + $0x20] sm:$0xff]
    %v146 = vld [vmem:[#allocation7 + $0x28] sm:$0xff]
    %v147 = vld [vmem:[#allocation7 + $0x30] sm:$0xff]
    %v148 = vld [vmem:[#allocation7 + $0x38] sm:$0xff]
    %v149 = vld [vmem:[#allocation7 + $0x40] sm:$0xff]
    %v150 = vld [vmem:[#allocation7 + $0x48] sm:$0xff]
    %v151 = vld [vmem:[#allocation7 + $0x50] sm:$0xff]
    %v152 = vld [vmem:[#allocation7 + $0x58] sm:$0xff]
    %v153 = vld [vmem:[#allocation7 + $0x60] sm:$0xff]
    %v154 = vld [vmem:[#allocation7 + $0x68] sm:$0xff]
    %v155 = vld [vmem:[#allocation7 + $0x70] sm:$0xff]
    %v156 = vld [vmem:[#allocation7 + $0x78] sm:$0xff]
    %v157 = vld [vmem:[#allocation7 + $0x80] sm:$0xff]
    %v158 = vld [vmem:[#allocation7 + $0x88] sm:$0xff]
    %v159 = vld [vmem:[#allocation7 + $0x90] sm:$0xff]
    %v160 = vld [vmem:[#allocation7 + $0x98] sm:$0xff]
    %v161 = vld [vmem:[#allocation7 + $0xa0] sm:$0xff]
    %v162 = vld [vmem:[#allocation7 + $0xa8] sm:$0xff]
    %v163 = vld [vmem:[#allocation7 + $0xb0] sm:$0xff]
    %v164 = vld [vmem:[#allocation7 + $0xb8] sm:$0xff]
    %v165 = vld [vmem:[#allocation7 + $0xc0] sm:$0xff]
    %v166 = vld [vmem:[#allocation7 + $0xc8] sm:$0xff]
    %v167 = vld [vmem:[#allocation7 + $0xd0] sm:$0xff]
    %v168 = vld [vmem:[#allocation7 + $0xd8] sm:$0xff]
    %v169 = vld [vmem:[#allocation7 + $0xe0] sm:$0xff]
    %v170 = vld [vmem:[#allocation7 + $0xe8] sm:$0xff]
    %v171 = vld [vmem:[#allocation7 + $0xf0] sm:$0xff]
    %v172 = vld [vmem:[#allocation7 + $0xf8] sm:$0xff]
    %v173 = vld [vmem:[#allocation8] sm:$0xf]
    %v175 = vlaneseq
    %v176 = vshrl.u32 %v175, 7
    %v177 = vsub.s32 0, %v176
    %v178 = vrot.slane %v173, %v177
    %v179 = vlaneseq
    %v180 = vshrl.u32 %v179, 7
    %v181 = vsub.s32 1, %v180
    %v182 = vrot.slane %v173, %v181
    %v183 = vlaneseq
    %v184 = vshrl.u32 %v183, 7
    %v185 = vsub.s32 2, %v184
    %v186 = vrot.slane %v173, %v185
    %v187 = vlaneseq
    %v188 = vshrl.u32 %v187, 7
    %v189 = vsub.s32 3, %v188
    %v190 = vrot.slane %v173, %v189
    %v227 = vunpack.c.l.b16 %v141
    %v228 = vunpack.c.h.b16 %v141
    %v229 = vunpack.c.l.b16 %v142
    %v230 = vunpack.c.h.b16 %v142
    %v231 = vunpack.c.l.b16 %v143
    %v232 = vunpack.c.h.b16 %v143
    %v233 = vunpack.c.l.b16 %v144
    %v234 = vunpack.c.h.b16 %v144
    %v235 = vunpack.c.l.b16 %v145
    %v236 = vunpack.c.h.b16 %v145
    %v237 = vunpack.c.l.b16 %v146
    %v238 = vunpack.c.h.b16 %v146
    %v239 = vunpack.c.l.b16 %v147
    %v240 = vunpack.c.h.b16 %v147
    %v241 = vunpack.c.l.b16 %v148
    %v242 = vunpack.c.h.b16 %v148
    %v243 = vunpack.c.l.b16 %v149
    %v244 = vunpack.c.h.b16 %v149
    %v245 = vunpack.c.l.b16 %v150
    %v246 = vunpack.c.h.b16 %v150
    %v247 = vunpack.c.l.b16 %v151
    %v248 = vunpack.c.h.b16 %v151
    %v249 = vunpack.c.l.b16 %v152
    %v250 = vunpack.c.h.b16 %v152
    %v251 = vunpack.c.l.b16 %v153
    %v252 = vunpack.c.h.b16 %v153
    %v253 = vunpack.c.l.b16 %v154
    %v254 = vunpack.c.h.b16 %v154
    %v255 = vunpack.c.l.b16 %v155
    %v256 = vunpack.c.h.b16 %v155
    %v257 = vunpack.c.l.b16 %v156
    %v258 = vunpack.c.h.b16 %v156
    %v259 = vunpack.c.l.b16 %v157
    %v260 = vunpack.c.h.b16 %v157
    %v261 = vunpack.c.l.b16 %v158
    %v262 = vunpack.c.h.b16 %v158
    %v263 = vunpack.c.l.b16 %v159
    %v264 = vunpack.c.h.b16 %v159
    %v265 = vunpack.c.l.b16 %v160
    %v266 = vunpack.c.h.b16 %v160
    %v267 = vunpack.c.l.b16 %v161
    %v268 = vunpack.c.h.b16 %v161
    %v269 = vunpack.c.l.b16 %v162
    %v270 = vunpack.c.h.b16 %v162
    %v271 = vunpack.c.l.b16 %v163
    %v272 = vunpack.c.h.b16 %v163
    %v273 = vunpack.c.l.b16 %v164
    %v274 = vunpack.c.h.b16 %v164
    %v275 = vunpack.c.l.b16 %v165
    %v276 = vunpack.c.h.b16 %v165
    %v277 = vunpack.c.l.b16 %v166
    %v278 = vunpack.c.h.b16 %v166
    %v279 = vunpack.c.l.b16 %v167
    %v280 = vunpack.c.h.b16 %v167
    %v281 = vunpack.c.l.b16 %v168
    %v282 = vunpack.c.h.b16 %v168
    %v283 = vunpack.c.l.b16 %v169
    %v284 = vunpack.c.h.b16 %v169
    %v285 = vunpack.c.l.b16 %v170
    %v286 = vunpack.c.h.b16 %v170
    %v287 = vunpack.c.l.b16 %v171
    %v288 = vunpack.c.h.b16 %v171
    %v289 = vunpack.c.l.b16 %v172
    %v290 = vunpack.c.h.b16 %v172
    %v291 = vpack.c.b16 %v231, %v227
    %v292 = vpack.c.b16 %v232, %v228
    %v293 = vpack.c.b16 %v233, %v229
    %v294 = vpack.c.b16 %v234, %v230
    %v295 = vpack.c.b16 %v239, %v235
    %v296 = vpack.c.b16 %v240, %v236
    %v297 = vpack.c.b16 %v241, %v237
    %v298 = vpack.c.b16 %v242, %v238
    %v299 = vpack.c.b16 %v247, %v243
    %v300 = vpack.c.b16 %v248, %v244
    %v301 = vpack.c.b16 %v249, %v245
    %v302 = vpack.c.b16 %v250, %v246
    %v303 = vpack.c.b16 %v255, %v251
    %v304 = vpack.c.b16 %v256, %v252
    %v305 = vpack.c.b16 %v257, %v253
    %v306 = vpack.c.b16 %v258, %v254
    %v307 = vpack.c.b16 %v263, %v259
    %v308 = vpack.c.b16 %v264, %v260
    %v309 = vpack.c.b16 %v265, %v261
    %v310 = vpack.c.b16 %v266, %v262
    %v311 = vpack.c.b16 %v271, %v267
    %v312 = vpack.c.b16 %v272, %v268
    %v313 = vpack.c.b16 %v273, %v269
    %v314 = vpack.c.b16 %v274, %v270
    %v315 = vpack.c.b16 %v279, %v275
    %v316 = vpack.c.b16 %v280, %v276
    %v317 = vpack.c.b16 %v281, %v277
    %v318 = vpack.c.b16 %v282, %v278
    %v319 = vpack.c.b16 %v287, %v283
    %v320 = vpack.c.b16 %v288, %v284
    %v321 = vpack.c.b16 %v289, %v285
    %v322 = vpack.c.b16 %v290, %v286
    %355 = vmatprep.subr.bf16.mxu0 %v320
    %356 = vmatpush1.bf16.msra.mxu0 %v319
    %357 = vmatprep.subr.bf16.mxu0 %v316
    %358 = vmatpush1.bf16.msra.mxu0 %v315
    %359 = vmatprep.subr.bf16.mxu0 %v312
    %360 = vmatpush1.bf16.msra.mxu0 %v311
    %361 = vmatprep.subr.bf16.mxu0 %v308
    %362 = vmatpush1.bf16.msra.mxu0 %v307
    %363 = vmatprep.subr.bf16.mxu0 %v304
    %364 = vmatpush1.bf16.msra.mxu0 %v303
    %365 = vmatprep.subr.bf16.mxu0 %v300
    %366 = vmatpush1.bf16.msra.mxu0 %v299
    %367 = vmatprep.subr.bf16.mxu0 %v296
    %368 = vmatpush1.bf16.msra.mxu0 %v295
    %369 = vmatprep.subr.bf16.mxu0 %v292
    %370 = vmatpush1.bf16.msra.mxu0 %v291
    %371 = vmatprep.subr.bf16.mxu0 0
    %372 = vmatpush2.bf16.msra.mxu0 0
    %373 = vmatprep.subr.bf16.mxu0 0
    %374 = vmatpush2.bf16.msra.mxu0 0
    %375 = vmatprep.subr.bf16.mxu0 0
    %376 = vmatpush2.bf16.msra.mxu0 0
    %377 = vmatprep.subr.bf16.mxu0 0
    %378 = vmatpush2.bf16.msra.mxu0 0
    %379 = vmatprep.subr.bf16.mxu0 0
    %380 = vmatpush2.bf16.msra.mxu0 0
    %381 = vmatprep.subr.bf16.mxu0 0
    %382 = vmatpush2.bf16.msra.mxu0 0
    %383 = vmatprep.subr.bf16.mxu0 0
    %384 = vmatpush2.bf16.msra.mxu0 0
    %385 = vmatprep.subr.bf16.mxu0 0
    %386 = vmatpush2.bf16.msra.mxu0 0
    %387 = vmatprep.mubr.bf16.mxu0 0
    %388 = vmatmul.mubr.bf16.gmra.mxu0 %v140
    %v389 = vpop.f32.mrf.mxu0
    %v390 = vadd.f32 %v178, %v389
    %v391 = vpop.f32.mrf.mxu0
    %v392 = vadd.f32 %v182, %v391
    %v393 = vpop.f32.mrf.mxu0
    %v394 = vpop.f32.mrf.mxu0
    %395 = vdwg.mxu0
    %396 = vmatprep.subr.bf16.mxu0 %v322
    %397 = vmatpush1.bf16.msra.mxu0 %v321
    %398 = vmatprep.subr.bf16.mxu0 %v318
    %399 = vmatpush1.bf16.msra.mxu0 %v317
    %400 = vmatprep.subr.bf16.mxu0 %v314
    %401 = vmatpush1.bf16.msra.mxu0 %v313
    %402 = vmatprep.subr.bf16.mxu0 %v310
    %403 = vmatpush1.bf16.msra.mxu0 %v309
    %404 = vmatprep.subr.bf16.mxu0 %v306
    %405 = vmatpush1.bf16.msra.mxu0 %v305
    %406 = vmatprep.subr.bf16.mxu0 %v302
    %407 = vmatpush1.bf16.msra.mxu0 %v301
    %408 = vmatprep.subr.bf16.mxu0 %v298
    %409 = vmatpush1.bf16.msra.mxu0 %v297
    %410 = vmatprep.subr.bf16.mxu0 %v294
    %411 = vmatpush1.bf16.msra.mxu0 %v293
    %412 = vmatprep.subr.bf16.mxu0 0
    %413 = vmatpush2.bf16.msra.mxu0 0
    %414 = vmatprep.subr.bf16.mxu0 0
    %415 = vmatpush2.bf16.msra.mxu0 0
    %416 = vmatprep.subr.bf16.mxu0 0
    %417 = vmatpush2.bf16.msra.mxu0 0
    %418 = vmatprep.subr.bf16.mxu0 0
    %419 = vmatpush2.bf16.msra.mxu0 0
    %420 = vmatprep.subr.bf16.mxu0 0
    %421 = vmatpush2.bf16.msra.mxu0 0
    %422 = vmatprep.subr.bf16.mxu0 0
    %423 = vmatpush2.bf16.msra.mxu0 0
    %424 = vmatprep.subr.bf16.mxu0 0
    %425 = vmatpush2.bf16.msra.mxu0 0
    %426 = vmatprep.subr.bf16.mxu0 0
    %427 = vmatpush2.bf16.msra.mxu0 0
    %428 = vmatprep.mubr.bf16.mxu0 0
    %429 = vmatmul.mubr.bf16.gmra.mxu0 %v140
    %v430 = vpop.f32.mrf.mxu0
    %v431 = vadd.f32 %v186, %v430
    %v432 = vpop.f32.mrf.mxu0
    %v433 = vadd.f32 %v190, %v432
    %v434 = vpop.f32.mrf.mxu0
    %v435 = vpop.f32.mrf.mxu0
    %436 = vdwg.mxu0
    %v437 = vld [vmem:[#allocation13] sm:$0xf]
    %v438 = vld [vmem:[#allocation13 + $0x4] sm:$0xf]
    %v439 = vld [vmem:[#allocation13 + $0x8] sm:$0xf]
    %v440 = vld [vmem:[#allocation13 + $0xc] sm:$0xf]
    %v441 = vld [vmem:[#allocation13 + $0x10] sm:$0xf]
    %v442 = vld [vmem:[#allocation13 + $0x14] sm:$0xf]
    %v443 = vld [vmem:[#allocation13 + $0x18] sm:$0xf]
    %v444 = vld [vmem:[#allocation13 + $0x1c] sm:$0xf]
    %v445 = vld [vmem:[#allocation13 + $0x20] sm:$0xf]
    %v446 = vld [vmem:[#allocation13 + $0x24] sm:$0xf]
    %v447 = vld [vmem:[#allocation13 + $0x28] sm:$0xf]
    %v448 = vld [vmem:[#allocation13 + $0x2c] sm:$0xf]
    %v449 = vld [vmem:[#allocation13 + $0x30] sm:$0xf]
    %v450 = vld [vmem:[#allocation13 + $0x34] sm:$0xf]
    %v451 = vld [vmem:[#allocation13 + $0x38] sm:$0xf]
    %v452 = vld [vmem:[#allocation13 + $0x3c] sm:$0xf]
    %v453 = vld [vmem:[%s11] sm:$0x1]
    %v455 = vlaneseq
    %v456 = vshrl.u32 %v455, 7
    %v457 = vsub.s32 0, %v456
    %v458 = vrot.slane %v453, %v457
    %v476 = vunpack.c.l.b16 %v437
    %v477 = vunpack.c.l.b16 %v438
    %v478 = vunpack.c.l.b16 %v439
    %v479 = vunpack.c.l.b16 %v440
    %v480 = vunpack.c.l.b16 %v441
    %v481 = vunpack.c.l.b16 %v442
    %v482 = vunpack.c.l.b16 %v443
    %v483 = vunpack.c.l.b16 %v444
    %v484 = vunpack.c.l.b16 %v445
    %v485 = vunpack.c.l.b16 %v446
    %v486 = vunpack.c.l.b16 %v447
    %v487 = vunpack.c.l.b16 %v448
    %v488 = vunpack.c.l.b16 %v449
    %v489 = vunpack.c.l.b16 %v450
    %v490 = vunpack.c.l.b16 %v451
    %v491 = vunpack.c.l.b16 %v452
    %v492 = vpack.c.b16 %v477, %v476
    %v493 = vpack.c.b16 %v479, %v478
    %v494 = vpack.c.b16 %v481, %v480
    %v495 = vpack.c.b16 %v483, %v482
    %v496 = vpack.c.b16 %v485, %v484
    %v497 = vpack.c.b16 %v487, %v486
    %v498 = vpack.c.b16 %v489, %v488
    %v499 = vpack.c.b16 %v491, %v490
    %508 = vmatprep.subr.bf16.mxu0 0
    %509 = vmatpush1.bf16.msra.mxu0 %v499
    %510 = vmatprep.subr.bf16.mxu0 0
    %511 = vmatpush1.bf16.msra.mxu0 %v498
    %512 = vmatprep.subr.bf16.mxu0 0
    %513 = vmatpush1.bf16.msra.mxu0 %v497
    %514 = vmatprep.subr.bf16.mxu0 0
    %515 = vmatpush1.bf16.msra.mxu0 %v496
    %516 = vmatprep.subr.bf16.mxu0 0
    %517 = vmatpush1.bf16.msra.mxu0 %v495
    %518 = vmatprep.subr.bf16.mxu0 0
    %519 = vmatpush1.bf16.msra.mxu0 %v494
    %520 = vmatprep.subr.bf16.mxu0 0
    %521 = vmatpush1.bf16.msra.mxu0 %v493
    %522 = vmatprep.subr.bf16.mxu0 0
    %523 = vmatpush1.bf16.msra.mxu0 %v492
    %524 = vmatprep.subr.bf16.mxu0 0
    %525 = vmatpush2.bf16.msra.mxu0 0
    %526 = vmatprep.subr.bf16.mxu0 0
    %527 = vmatpush2.bf16.msra.mxu0 0
    %528 = vmatprep.subr.bf16.mxu0 0
    %529 = vmatpush2.bf16.msra.mxu0 0
    %530 = vmatprep.subr.bf16.mxu0 0
    %531 = vmatpush2.bf16.msra.mxu0 0
    %532 = vmatprep.subr.bf16.mxu0 0
    %533 = vmatpush2.bf16.msra.mxu0 0
    %534 = vmatprep.subr.bf16.mxu0 0
    %535 = vmatpush2.bf16.msra.mxu0 0
    %536 = vmatprep.subr.bf16.mxu0 0
    %537 = vmatpush2.bf16.msra.mxu0 0
    %538 = vmatprep.subr.bf16.mxu0 0
    %539 = vmatpush2.bf16.msra.mxu0 0
    %540 = vmatprep.mubr.bf16.mxu0 0
    %541 = vmatmul.mubr.bf16.gmra.mxu0 %v140
    %v542 = vpop.f32.mrf.mxu0
    %v543 = vadd.f32 %v458, %v542
    %v544 = vpop.f32.mrf.mxu0
    %v545 = vpop.f32.mrf.mxu0
    %v546 = vpop.f32.mrf.mxu0
    %547 = vdwg.mxu0
    %v548 = vld [vmem:[#allocation2] sm:$0xff]
    %v549 = vld [vmem:[#allocation2 + $0x8] sm:$0xff]
    %v550 = vld [vmem:[#allocation2 + $0x10] sm:$0xff]
    %v551 = vld [vmem:[#allocation2 + $0x18] sm:$0xff]
    %v552 = vld [vmem:[#allocation2 + $0x20] sm:$0xff]
    %v553 = vld [vmem:[#allocation2 + $0x28] sm:$0xff]
    %v554 = vld [vmem:[#allocation2 + $0x30] sm:$0xff]
    %v555 = vld [vmem:[#allocation2 + $0x38] sm:$0xff]
    %v556 = vld [vmem:[#allocation2 + $0x40] sm:$0xff]
    %v557 = vld [vmem:[#allocation2 + $0x48] sm:$0xff]
    %v558 = vld [vmem:[#allocation2 + $0x50] sm:$0xff]
    %v559 = vld [vmem:[#allocation2 + $0x58] sm:$0xff]
    %v560 = vld [vmem:[#allocation2 + $0x60] sm:$0xff]
    %v561 = vld [vmem:[#allocation2 + $0x68] sm:$0xff]
    %v562 = vld [vmem:[#allocation2 + $0x70] sm:$0xff]
    %v563 = vld [vmem:[#allocation2 + $0x78] sm:$0xff]
    %v564 = vld [vmem:[#allocation2 + $0x80] sm:$0xff]
    %v565 = vld [vmem:[#allocation2 + $0x88] sm:$0xff]
    %v566 = vld [vmem:[#allocation2 + $0x90] sm:$0xff]
    %v567 = vld [vmem:[#allocation2 + $0x98] sm:$0xff]
    %v568 = vld [vmem:[#allocation2 + $0xa0] sm:$0xff]
    %v569 = vld [vmem:[#allocation2 + $0xa8] sm:$0xff]
    %v570 = vld [vmem:[#allocation2 + $0xb0] sm:$0xff]
    %v571 = vld [vmem:[#allocation2 + $0xb8] sm:$0xff]
    %v572 = vld [vmem:[#allocation2 + $0xc0] sm:$0xff]
    %v573 = vld [vmem:[#allocation2 + $0xc8] sm:$0xff]
    %v574 = vld [vmem:[#allocation2 + $0xd0] sm:$0xff]
    %v575 = vld [vmem:[#allocation2 + $0xd8] sm:$0xff]
    %v576 = vld [vmem:[#allocation2 + $0xe0] sm:$0xff]
    %v577 = vld [vmem:[#allocation2 + $0xe8] sm:$0xff]
    %v578 = vld [vmem:[#allocation2 + $0xf0] sm:$0xff]
    %v579 = vld [vmem:[#allocation2 + $0xf8] sm:$0xff]
    %v580 = vld [vmem:[#allocation5] sm:$0xff]
    %v581 = vld [vmem:[#allocation5 + $0x8] sm:$0xff]
    %v582 = vld [vmem:[#allocation5 + $0x10] sm:$0xff]
    %v583 = vld [vmem:[#allocation5 + $0x18] sm:$0xff]
    %v584 = vld [vmem:[#allocation5 + $0x20] sm:$0xff]
    %v585 = vld [vmem:[#allocation5 + $0x28] sm:$0xff]
    %v586 = vld [vmem:[#allocation5 + $0x30] sm:$0xff]
    %v587 = vld [vmem:[#allocation5 + $0x38] sm:$0xff]
    %v588 = vld [vmem:[#allocation5 + $0x40] sm:$0xff]
    %v589 = vld [vmem:[#allocation5 + $0x48] sm:$0xff]
    %v590 = vld [vmem:[#allocation5 + $0x50] sm:$0xff]
    %v591 = vld [vmem:[#allocation5 + $0x58] sm:$0xff]
    %v592 = vld [vmem:[#allocation5 + $0x60] sm:$0xff]
    %v593 = vld [vmem:[#allocation5 + $0x68] sm:$0xff]
    %v594 = vld [vmem:[#allocation5 + $0x70] sm:$0xff]
    %v595 = vld [vmem:[#allocation5 + $0x78] sm:$0xff]
    %v596 = vld [vmem:[#allocation5 + $0x80] sm:$0xff]
    %v597 = vld [vmem:[#allocation5 + $0x88] sm:$0xff]
    %v598 = vld [vmem:[#allocation5 + $0x90] sm:$0xff]
    %v599 = vld [vmem:[#allocation5 + $0x98] sm:$0xff]
    %v600 = vld [vmem:[#allocation5 + $0xa0] sm:$0xff]
    %v601 = vld [vmem:[#allocation5 + $0xa8] sm:$0xff]
    %v602 = vld [vmem:[#allocation5 + $0xb0] sm:$0xff]
    %v603 = vld [vmem:[#allocation5 + $0xb8] sm:$0xff]
    %v604 = vld [vmem:[#allocation5 + $0xc0] sm:$0xff]
    %v605 = vld [vmem:[#allocation5 + $0xc8] sm:$0xff]
    %v606 = vld [vmem:[#allocation5 + $0xd0] sm:$0xff]
    %v607 = vld [vmem:[#allocation5 + $0xd8] sm:$0xff]
    %v608 = vld [vmem:[#allocation5 + $0xe0] sm:$0xff]
    %v609 = vld [vmem:[#allocation5 + $0xe8] sm:$0xff]
    %v610 = vld [vmem:[#allocation5 + $0xf0] sm:$0xff]
    %v611 = vld [vmem:[#allocation5 + $0xf8] sm:$0xff]
    %v612 = vld [vmem:[#allocation10] sm:$0xf]
    %v613 = vld [vmem:[#allocation10 + $0x4] sm:$0xf]
    %v614 = vld [vmem:[#allocation10 + $0x8] sm:$0xf]
    %v615 = vld [vmem:[#allocation10 + $0xc] sm:$0xf]
    %v616 = vld [vmem:[#allocation10 + $0x10] sm:$0xf]
    %v617 = vld [vmem:[#allocation10 + $0x14] sm:$0xf]
    %v618 = vld [vmem:[#allocation10 + $0x18] sm:$0xf]
    %v619 = vld [vmem:[#allocation10 + $0x1c] sm:$0xf]
    %v620 = vld [vmem:[#allocation10 + $0x20] sm:$0xf]
    %v621 = vld [vmem:[#allocation10 + $0x24] sm:$0xf]
    %v622 = vld [vmem:[#allocation10 + $0x28] sm:$0xf]
    %v623 = vld [vmem:[#allocation10 + $0x2c] sm:$0xf]
    %v624 = vld [vmem:[#allocation10 + $0x30] sm:$0xf]
    %v625 = vld [vmem:[#allocation10 + $0x34] sm:$0xf]
    %v626 = vld [vmem:[#allocation10 + $0x38] sm:$0xf]
    %v627 = vld [vmem:[#allocation10 + $0x3c] sm:$0xf]
    %v628 = vld [vmem:[#allocation11] sm:$0xf]
    %v629 = vld [vmem:[#allocation11 + $0x4] sm:$0xf]
    %v630 = vld [vmem:[#allocation11 + $0x8] sm:$0xf]
    %v631 = vld [vmem:[#allocation11 + $0xc] sm:$0xf]
    %v632 = vld [vmem:[#allocation11 + $0x10] sm:$0xf]
    %v633 = vld [vmem:[#allocation11 + $0x14] sm:$0xf]
    %v634 = vld [vmem:[#allocation11 + $0x18] sm:$0xf]
    %v635 = vld [vmem:[#allocation11 + $0x1c] sm:$0xf]
    %v636 = vld [vmem:[#allocation11 + $0x20] sm:$0xf]
    %v637 = vld [vmem:[#allocation11 + $0x24] sm:$0xf]
    %v638 = vld [vmem:[#allocation11 + $0x28] sm:$0xf]
    %v639 = vld [vmem:[#allocation11 + $0x2c] sm:$0xf]
    %v640 = vld [vmem:[#allocation11 + $0x30] sm:$0xf]
    %v641 = vld [vmem:[#allocation11 + $0x34] sm:$0xf]
    %v642 = vld [vmem:[#allocation11 + $0x38] sm:$0xf]
    %v643 = vld [vmem:[#allocation11 + $0x3c] sm:$0xf]
    %v644 = vlaneseq
    %v645 = vand.u32 %v644, 127
    %v646 = vsub.s32 127, %v645
    %v647 = vld [vmem:[%s2] sm:$0xff]
    %v648 = vld [vmem:[%s3] sm:$0xff]
    %v649 = vld [vmem:[%s0] sm:$0xf]
    %v682 = vunpack.c.l.b16 %v580
    %v683 = vunpack.c.h.b16 %v580
    %v684 = vunpack.c.l.b16 %v581
    %v685 = vunpack.c.h.b16 %v581
    %v686 = vunpack.c.l.b16 %v582
    %v687 = vunpack.c.h.b16 %v582
    %v688 = vunpack.c.l.b16 %v583
    %v689 = vunpack.c.h.b16 %v583
    %v690 = vunpack.c.l.b16 %v584
    %v691 = vunpack.c.h.b16 %v584
    %v692 = vunpack.c.l.b16 %v585
    %v693 = vunpack.c.h.b16 %v585
    %v694 = vunpack.c.l.b16 %v586
    %v695 = vunpack.c.h.b16 %v586
    %v696 = vunpack.c.l.b16 %v587
    %v697 = vunpack.c.h.b16 %v587
    %v698 = vunpack.c.l.b16 %v588
    %v699 = vunpack.c.h.b16 %v588
    %v700 = vunpack.c.l.b16 %v589
    %v701 = vunpack.c.h.b16 %v589
    %v702 = vunpack.c.l.b16 %v590
    %v703 = vunpack.c.h.b16 %v590
    %v704 = vunpack.c.l.b16 %v591
    %v705 = vunpack.c.h.b16 %v591
    %v706 = vunpack.c.l.b16 %v592
    %v707 = vunpack.c.h.b16 %v592
    %v708 = vunpack.c.l.b16 %v593
    %v709 = vunpack.c.h.b16 %v593
    %v710 = vunpack.c.l.b16 %v594
    %v711 = vunpack.c.h.b16 %v594
    %v712 = vunpack.c.l.b16 %v595
    %v713 = vunpack.c.h.b16 %v595
    %v714 = vunpack.c.l.b16 %v596
    %v715 = vunpack.c.h.b16 %v596
    %v716 = vunpack.c.l.b16 %v597
    %v717 = vunpack.c.h.b16 %v597
    %v718 = vunpack.c.l.b16 %v598
    %v719 = vunpack.c.h.b16 %v598
    %v720 = vunpack.c.l.b16 %v599
    %v721 = vunpack.c.h.b16 %v599
    %v722 = vunpack.c.l.b16 %v600
    %v723 = vunpack.c.h.b16 %v600
    %v724 = vunpack.c.l.b16 %v601
    %v725 = vunpack.c.h.b16 %v601
    %v726 = vunpack.c.l.b16 %v602
    %v727 = vunpack.c.h.b16 %v602
    %v728 = vunpack.c.l.b16 %v603
    %v729 = vunpack.c.h.b16 %v603
    %v730 = vunpack.c.l.b16 %v604
    %v731 = vunpack.c.h.b16 %v604
    %v732 = vunpack.c.l.b16 %v605
    %v733 = vunpack.c.h.b16 %v605
    %v734 = vunpack.c.l.b16 %v606
    %v735 = vunpack.c.h.b16 %v606
    %v736 = vunpack.c.l.b16 %v607
    %v737 = vunpack.c.h.b16 %v607
    %v738 = vunpack.c.l.b16 %v608
    %v739 = vunpack.c.h.b16 %v608
    %v740 = vunpack.c.l.b16 %v609
    %v741 = vunpack.c.h.b16 %v609
    %v742 = vunpack.c.l.b16 %v610
    %v743 = vunpack.c.h.b16 %v610
    %v744 = vunpack.c.l.b16 %v611
    %v745 = vunpack.c.h.b16 %v611
    %v746 = vpack.c.b16 %v686, %v682
    %v747 = vpack.c.b16 %v687, %v683
    %v748 = vpack.c.b16 %v688, %v684
    %v749 = vpack.c.b16 %v689, %v685
    %v750 = vpack.c.b16 %v694, %v690
    %v751 = vpack.c.b16 %v695, %v691
    %v752 = vpack.c.b16 %v696, %v692
    %v753 = vpack.c.b16 %v697, %v693
    %v754 = vpack.c.b16 %v702, %v698
    %v755 = vpack.c.b16 %v703, %v699
    %v756 = vpack.c.b16 %v704, %v700
    %v757 = vpack.c.b16 %v705, %v701
    %v758 = vpack.c.b16 %v710, %v706
    %v759 = vpack.c.b16 %v711, %v707
    %v760 = vpack.c.b16 %v712, %v708
    %v761 = vpack.c.b16 %v713, %v709
    %v762 = vpack.c.b16 %v718, %v714
    %v763 = vpack.c.b16 %v719, %v715
    %v764 = vpack.c.b16 %v720, %v716
    %v765 = vpack.c.b16 %v721, %v717
    %v766 = vpack.c.b16 %v726, %v722
    %v767 = vpack.c.b16 %v727, %v723
    %v768 = vpack.c.b16 %v728, %v724
    %v769 = vpack.c.b16 %v729, %v725
    %v770 = vpack.c.b16 %v734, %v730
    %v771 = vpack.c.b16 %v735, %v731
    %v772 = vpack.c.b16 %v736, %v732
    %v773 = vpack.c.b16 %v737, %v733
    %v774 = vpack.c.b16 %v742, %v738
    %v775 = vpack.c.b16 %v743, %v739
    %v776 = vpack.c.b16 %v744, %v740
    %v777 = vpack.c.b16 %v745, %v741
    %810 = vmatprep.subr.bf16.mxu0 %v775
    %811 = vmatpush1.bf16.msra.mxu0 %v774
    %812 = vmatprep.subr.bf16.mxu0 %v771
    %813 = vmatpush1.bf16.msra.mxu0 %v770
    %814 = vmatprep.subr.bf16.mxu0 %v767
    %815 = vmatpush1.bf16.msra.mxu0 %v766
    %816 = vmatprep.subr.bf16.mxu0 %v763
    %817 = vmatpush1.bf16.msra.mxu0 %v762
    %818 = vmatprep.subr.bf16.mxu0 %v759
    %819 = vmatpush1.bf16.msra.mxu0 %v758
    %820 = vmatprep.subr.bf16.mxu0 %v755
    %821 = vmatpush1.bf16.msra.mxu0 %v754
    %822 = vmatprep.subr.bf16.mxu0 %v751
    %823 = vmatpush1.bf16.msra.mxu0 %v750
    %824 = vmatprep.subr.bf16.mxu0 %v747
    %825 = vmatpush1.bf16.msra.mxu0 %v746
    %826 = vmatprep.subr.bf16.mxu0 0
    %827 = vmatpush2.bf16.msra.mxu0 0
    %828 = vmatprep.subr.bf16.mxu0 0
    %829 = vmatpush2.bf16.msra.mxu0 0
    %830 = vmatprep.subr.bf16.mxu0 0
    %831 = vmatpush2.bf16.msra.mxu0 0
    %832 = vmatprep.subr.bf16.mxu0 0
    %833 = vmatpush2.bf16.msra.mxu0 0
    %834 = vmatprep.subr.bf16.mxu0 0
    %835 = vmatpush2.bf16.msra.mxu0 0
    %836 = vmatprep.subr.bf16.mxu0 0
    %837 = vmatpush2.bf16.msra.mxu0 0
    %838 = vmatprep.subr.bf16.mxu0 0
    %839 = vmatpush2.bf16.msra.mxu0 0
    %840 = vmatprep.subr.bf16.mxu0 0
    %841 = vmatpush2.bf16.msra.mxu0 0
    %842 = vmatprep.mubr.bf16.mxu0 0
    %843 = vmatmul.mubr.bf16.gmra.mxu0 %v649
    %v844 = vpop.f32.mrf.mxu0
    %v845 = vadd.f32 0.0, %v844
    %v846 = vpop.f32.mrf.mxu0
    %v847 = vadd.f32 0.0, %v846
    %v848 = vpop.f32.mrf.mxu0
    %v849 = vpop.f32.mrf.mxu0
    %850 = vdwg.mxu0
    %851 = vmatprep.subr.bf16.mxu0 %v777
    %852 = vmatpush1.bf16.msra.mxu0 %v776
    %853 = vmatprep.subr.bf16.mxu0 %v773
    %854 = vmatpush1.bf16.msra.mxu0 %v772
    %855 = vmatprep.subr.bf16.mxu0 %v769
    %856 = vmatpush1.bf16.msra.mxu0 %v768
    %857 = vmatprep.subr.bf16.mxu0 %v765
    %858 = vmatpush1.bf16.msra.mxu0 %v764
    %859 = vmatprep.subr.bf16.mxu0 %v761
    %860 = vmatpush1.bf16.msra.mxu0 %v760
    %861 = vmatprep.subr.bf16.mxu0 %v757
    %862 = vmatpush1.bf16.msra.mxu0 %v756
    %863 = vmatprep.subr.bf16.mxu0 %v753
    %864 = vmatpush1.bf16.msra.mxu0 %v752
    %865 = vmatprep.subr.bf16.mxu0 %v749
    %866 = vmatpush1.bf16.msra.mxu0 %v748
    %867 = vmatprep.subr.bf16.mxu0 0
    %868 = vmatpush2.bf16.msra.mxu0 0
    %869 = vmatprep.subr.bf16.mxu0 0
    %870 = vmatpush2.bf16.msra.mxu0 0
    %871 = vmatprep.subr.bf16.mxu0 0
    %872 = vmatpush2.bf16.msra.mxu0 0
    %873 = vmatprep.subr.bf16.mxu0 0
    %874 = vmatpush2.bf16.msra.mxu0 0
    %875 = vmatprep.subr.bf16.mxu0 0
    %876 = vmatpush2.bf16.msra.mxu0 0
    %877 = vmatprep.subr.bf16.mxu0 0
    %878 = vmatpush2.bf16.msra.mxu0 0
    %879 = vmatprep.subr.bf16.mxu0 0
    %880 = vmatpush2.bf16.msra.mxu0 0
    %881 = vmatprep.subr.bf16.mxu0 0
    %882 = vmatpush2.bf16.msra.mxu0 0
    %883 = vmatprep.mubr.bf16.mxu0 0
    %884 = vmatmul.mubr.bf16.gmra.mxu0 %v649
    %v885 = vpop.f32.mrf.mxu0
    %v886 = vadd.f32 0.0, %v885
    %v887 = vpop.f32.mrf.mxu0
    %v888 = vadd.f32 0.0, %v887
    %v889 = vpop.f32.mrf.mxu0
    %v890 = vpop.f32.mrf.mxu0
    %891 = vdwg.mxu0
    %v908 = vunpack.c.l.b16 %v628
    %v909 = vunpack.c.l.b16 %v629
    %v910 = vunpack.c.l.b16 %v630
    %v911 = vunpack.c.l.b16 %v631
    %v912 = vunpack.c.l.b16 %v632
    %v913 = vunpack.c.l.b16 %v633
    %v914 = vunpack.c.l.b16 %v634
    %v915 = vunpack.c.l.b16 %v635
    %v916 = vunpack.c.l.b16 %v636
    %v917 = vunpack.c.l.b16 %v637
    %v918 = vunpack.c.l.b16 %v638
    %v919 = vunpack.c.l.b16 %v639
    %v920 = vunpack.c.l.b16 %v640
    %v921 = vunpack.c.l.b16 %v641
    %v922 = vunpack.c.l.b16 %v642
    %v923 = vunpack.c.l.b16 %v643
    %v924 = vpack.c.b16 %v909, %v908
    %v925 = vpack.c.b16 %v911, %v910
    %v926 = vpack.c.b16 %v913, %v912
    %v927 = vpack.c.b16 %v915, %v914
    %v928 = vpack.c.b16 %v917, %v916
    %v929 = vpack.c.b16 %v919, %v918
    %v930 = vpack.c.b16 %v921, %v920
    %v931 = vpack.c.b16 %v923, %v922
    %940 = vmatprep.subr.bf16.mxu0 0
    %941 = vmatpush1.bf16.msra.mxu0 %v931
    %942 = vmatprep.subr.bf16.mxu0 0
    %943 = vmatpush1.bf16.msra.mxu0 %v930
    %944 = vmatprep.subr.bf16.mxu0 0
    %945 = vmatpush1.bf16.msra.mxu0 %v929
    %946 = vmatprep.subr.bf16.mxu0 0
    %947 = vmatpush1.bf16.msra.mxu0 %v928
    %948 = vmatprep.subr.bf16.mxu0 0
    %949 = vmatpush1.bf16.msra.mxu0 %v927
    %950 = vmatprep.subr.bf16.mxu0 0
    %951 = vmatpush1.bf16.msra.mxu0 %v926
    %952 = vmatprep.subr.bf16.mxu0 0
    %953 = vmatpush1.bf16.msra.mxu0 %v925
    %954 = vmatprep.subr.bf16.mxu0 0
    %955 = vmatpush1.bf16.msra.mxu0 %v924
    %956 = vmatprep.subr.bf16.mxu0 0
    %957 = vmatpush2.bf16.msra.mxu0 0
    %958 = vmatprep.subr.bf16.mxu0 0
    %959 = vmatpush2.bf16.msra.mxu0 0
    %960 = vmatprep.subr.bf16.mxu0 0
    %961 = vmatpush2.bf16.msra.mxu0 0
    %962 = vmatprep.subr.bf16.mxu0 0
    %963 = vmatpush2.bf16.msra.mxu0 0
    %964 = vmatprep.subr.bf16.mxu0 0
    %965 = vmatpush2.bf16.msra.mxu0 0
    %966 = vmatprep.subr.bf16.mxu0 0
    %967 = vmatpush2.bf16.msra.mxu0 0
    %968 = vmatprep.subr.bf16.mxu0 0
    %969 = vmatpush2.bf16.msra.mxu0 0
    %970 = vmatprep.subr.bf16.mxu0 0
    %971 = vmatpush2.bf16.msra.mxu0 0
    %972 = vmatprep.mubr.bf16.mxu0 0
    %973 = vmatmul.mubr.bf16.gmra.mxu0 %v649
    %v974 = vpop.f32.mrf.mxu0
    %v975 = vadd.f32 0.0, %v974
    %v976 = vpop.f32.mrf.mxu0
    %v977 = vpop.f32.mrf.mxu0
    %v978 = vpop.f32.mrf.mxu0
    %979 = vdwg.mxu0
    %v980 = vadd.f32 %v390, %v845
    %v981 = vadd.f32 %v392, %v847
    %v982 = vadd.f32 %v431, %v886
    %v983 = vadd.f32 %v433, %v888
    %v984 = vpack.c.bf16 %v647, %v647
    %v1017 = vunpack.c.l.b16 %v548
    %v1018 = vunpack.c.h.b16 %v548
    %v1019 = vunpack.c.l.b16 %v549
    %v1020 = vunpack.c.h.b16 %v549
    %v1021 = vunpack.c.l.b16 %v550
    %v1022 = vunpack.c.h.b16 %v550
    %v1023 = vunpack.c.l.b16 %v551
    %v1024 = vunpack.c.h.b16 %v551
    %v1025 = vunpack.c.l.b16 %v552
    %v1026 = vunpack.c.h.b16 %v552
    %v1027 = vunpack.c.l.b16 %v553
    %v1028 = vunpack.c.h.b16 %v553
    %v1029 = vunpack.c.l.b16 %v554
    %v1030 = vunpack.c.h.b16 %v554
    %v1031 = vunpack.c.l.b16 %v555
    %v1032 = vunpack.c.h.b16 %v555
    %v1033 = vunpack.c.l.b16 %v556
    %v1034 = vunpack.c.h.b16 %v556
    %v1035 = vunpack.c.l.b16 %v557
    %v1036 = vunpack.c.h.b16 %v557
    %v1037 = vunpack.c.l.b16 %v558
    %v1038 = vunpack.c.h.b16 %v558
    %v1039 = vunpack.c.l.b16 %v559
    %v1040 = vunpack.c.h.b16 %v559
    %v1041 = vunpack.c.l.b16 %v560
    %v1042 = vunpack.c.h.b16 %v560
    %v1043 = vunpack.c.l.b16 %v561
    %v1044 = vunpack.c.h.b16 %v561
    %v1045 = vunpack.c.l.b16 %v562
    %v1046 = vunpack.c.h.b16 %v562
    %v1047 = vunpack.c.l.b16 %v563
    %v1048 = vunpack.c.h.b16 %v563
    %v1049 = vunpack.c.l.b16 %v564
    %v1050 = vunpack.c.h.b16 %v564
    %v1051 = vunpack.c.l.b16 %v565
    %v1052 = vunpack.c.h.b16 %v565
    %v1053 = vunpack.c.l.b16 %v566
    %v1054 = vunpack.c.h.b16 %v566
    %v1055 = vunpack.c.l.b16 %v567
    %v1056 = vunpack.c.h.b16 %v567
    %v1057 = vunpack.c.l.b16 %v568
    %v1058 = vunpack.c.h.b16 %v568
    %v1059 = vunpack.c.l.b16 %v569
    %v1060 = vunpack.c.h.b16 %v569
    %v1061 = vunpack.c.l.b16 %v570
    %v1062 = vunpack.c.h.b16 %v570
    %v1063 = vunpack.c.l.b16 %v571
    %v1064 = vunpack.c.h.b16 %v571
    %v1065 = vunpack.c.l.b16 %v572
    %v1066 = vunpack.c.h.b16 %v572
    %v1067 = vunpack.c.l.b16 %v573
    %v1068 = vunpack.c.h.b16 %v573
    %v1069 = vunpack.c.l.b16 %v574
    %v1070 = vunpack.c.h.b16 %v574
    %v1071 = vunpack.c.l.b16 %v575
    %v1072 = vunpack.c.h.b16 %v575
    %v1073 = vunpack.c.l.b16 %v576
    %v1074 = vunpack.c.h.b16 %v576
    %v1075 = vunpack.c.l.b16 %v577
    %v1076 = vunpack.c.h.b16 %v577
    %v1077 = vunpack.c.l.b16 %v578
    %v1078 = vunpack.c.h.b16 %v578
    %v1079 = vunpack.c.l.b16 %v579
    %v1080 = vunpack.c.h.b16 %v579
    %v1081 = vpack.c.b16 %v1021, %v1017
    %v1082 = vpack.c.b16 %v1022, %v1018
    %v1083 = vpack.c.b16 %v1023, %v1019
    %v1084 = vpack.c.b16 %v1024, %v1020
    %v1085 = vpack.c.b16 %v1029, %v1025
    %v1086 = vpack.c.b16 %v1030, %v1026
    %v1087 = vpack.c.b16 %v1031, %v1027
    %v1088 = vpack.c.b16 %v1032, %v1028
    %v1089 = vpack.c.b16 %v1037, %v1033
    %v1090 = vpack.c.b16 %v1038, %v1034
    %v1091 = vpack.c.b16 %v1039, %v1035
    %v1092 = vpack.c.b16 %v1040, %v1036
    %v1093 = vpack.c.b16 %v1045, %v1041
    %v1094 = vpack.c.b16 %v1046, %v1042
    %v1095 = vpack.c.b16 %v1047, %v1043
    %v1096 = vpack.c.b16 %v1048, %v1044
    %v1097 = vpack.c.b16 %v1053, %v1049
    %v1098 = vpack.c.b16 %v1054, %v1050
    %v1099 = vpack.c.b16 %v1055, %v1051
    %v1100 = vpack.c.b16 %v1056, %v1052
    %v1101 = vpack.c.b16 %v1061, %v1057
    %v1102 = vpack.c.b16 %v1062, %v1058
    %v1103 = vpack.c.b16 %v1063, %v1059
    %v1104 = vpack.c.b16 %v1064, %v1060
    %v1105 = vpack.c.b16 %v1069, %v1065
    %v1106 = vpack.c.b16 %v1070, %v1066
    %v1107 = vpack.c.b16 %v1071, %v1067
    %v1108 = vpack.c.b16 %v1072, %v1068
    %v1109 = vpack.c.b16 %v1077, %v1073
    %v1110 = vpack.c.b16 %v1078, %v1074
    %v1111 = vpack.c.b16 %v1079, %v1075
    %v1112 = vpack.c.b16 %v1080, %v1076
    %1145 = vmatprep.subr.bf16.mxu0 %v1110
    %1146 = vmatpush1.bf16.msra.mxu0 %v1109
    %1147 = vmatprep.subr.bf16.mxu0 %v1106
    %1148 = vmatpush1.bf16.msra.mxu0 %v1105
    %1149 = vmatprep.subr.bf16.mxu0 %v1102
    %1150 = vmatpush1.bf16.msra.mxu0 %v1101
    %1151 = vmatprep.subr.bf16.mxu0 %v1098
    %1152 = vmatpush1.bf16.msra.mxu0 %v1097
    %1153 = vmatprep.subr.bf16.mxu0 %v1094
    %1154 = vmatpush1.bf16.msra.mxu0 %v1093
    %1155 = vmatprep.subr.bf16.mxu0 %v1090
    %1156 = vmatpush1.bf16.msra.mxu0 %v1089
    %1157 = vmatprep.subr.bf16.mxu0 %v1086
    %1158 = vmatpush1.bf16.msra.mxu0 %v1085
    %1159 = vmatprep.subr.bf16.mxu0 %v1082
    %1160 = vmatpush1.bf16.msra.mxu0 %v1081
    %1161 = vmatprep.subr.bf16.mxu0 0
    %1162 = vmatpush2.bf16.msra.mxu0 0
    %1163 = vmatprep.subr.bf16.mxu0 0
    %1164 = vmatpush2.bf16.msra.mxu0 0
    %1165 = vmatprep.subr.bf16.mxu0 0
    %1166 = vmatpush2.bf16.msra.mxu0 0
    %1167 = vmatprep.subr.bf16.mxu0 0
    %1168 = vmatpush2.bf16.msra.mxu0 0
    %1169 = vmatprep.subr.bf16.mxu0 0
    %1170 = vmatpush2.bf16.msra.mxu0 0
    %1171 = vmatprep.subr.bf16.mxu0 0
    %1172 = vmatpush2.bf16.msra.mxu0 0
    %1173 = vmatprep.subr.bf16.mxu0 0
    %1174 = vmatpush2.bf16.msra.mxu0 0
    %1175 = vmatprep.subr.bf16.mxu0 0
    %1176 = vmatpush2.bf16.msra.mxu0 0
    %1177 = vmatprep.mubr.bf16.mxu0 0
    %1178 = vmatmul.mubr.bf16.gmra.mxu0 %v984
    %v1179 = vpop.f32.mrf.mxu0
    %v1180 = vadd.f32 0.0, %v1179
    %v1181 = vpop.f32.mrf.mxu0
    %v1182 = vadd.f32 0.0, %v1181
    %v1183 = vpop.f32.mrf.mxu0
    %v1184 = vpop.f32.mrf.mxu0
    %1185 = vdwg.mxu0
    %1186 = vmatprep.subr.bf16.mxu0 %v1112
    %1187 = vmatpush1.bf16.msra.mxu0 %v1111
    %1188 = vmatprep.subr.bf16.mxu0 %v1108
    %1189 = vmatpush1.bf16.msra.mxu0 %v1107
    %1190 = vmatprep.subr.bf16.mxu0 %v1104
    %1191 = vmatpush1.bf16.msra.mxu0 %v1103
    %1192 = vmatprep.subr.bf16.mxu0 %v1100
    %1193 = vmatpush1.bf16.msra.mxu0 %v1099
    %1194 = vmatprep.subr.bf16.mxu0 %v1096
    %1195 = vmatpush1.bf16.msra.mxu0 %v1095
    %1196 = vmatprep.subr.bf16.mxu0 %v1092
    %1197 = vmatpush1.bf16.msra.mxu0 %v1091
    %1198 = vmatprep.subr.bf16.mxu0 %v1088
    %1199 = vmatpush1.bf16.msra.mxu0 %v1087
    %1200 = vmatprep.subr.bf16.mxu0 %v1084
    %1201 = vmatpush1.bf16.msra.mxu0 %v1083
    %1202 = vmatprep.subr.bf16.mxu0 0
    %1203 = vmatpush2.bf16.msra.mxu0 0
    %1204 = vmatprep.subr.bf16.mxu0 0
    %1205 = vmatpush2.bf16.msra.mxu0 0
    %1206 = vmatprep.subr.bf16.mxu0 0
    %1207 = vmatpush2.bf16.msra.mxu0 0
    %1208 = vmatprep.subr.bf16.mxu0 0
    %1209 = vmatpush2.bf16.msra.mxu0 0
    %1210 = vmatprep.subr.bf16.mxu0 0
    %1211 = vmatpush2.bf16.msra.mxu0 0
    %1212 = vmatprep.subr.bf16.mxu0 0
    %1213 = vmatpush2.bf16.msra.mxu0 0
    %1214 = vmatprep.subr.bf16.mxu0 0
    %1215 = vmatpush2.bf16.msra.mxu0 0
    %1216 = vmatprep.subr.bf16.mxu0 0
    %1217 = vmatpush2.bf16.msra.mxu0 0
    %1218 = vmatprep.mubr.bf16.mxu0 0
    %1219 = vmatmul.mubr.bf16.gmra.mxu0 %v984
    %v1220 = vpop.f32.mrf.mxu0
    %v1221 = vadd.f32 0.0, %v1220
    %v1222 = vpop.f32.mrf.mxu0
    %v1223 = vadd.f32 0.0, %v1222
    %v1224 = vpop.f32.mrf.mxu0
    %v1225 = vpop.f32.mrf.mxu0
    %1226 = vdwg.mxu0
    %v1227 = vadd.f32 %v980, %v1180
    %v1228 = vadd.f32 %v981, %v1182
    %v1229 = vadd.f32 %v982, %v1221
    %v1230 = vadd.f32 %v983, %v1223
    %v1231 = vxor.u32 %v1227, 2147483648
    %v1232 = vmul.f32 %v1231, 1.442695
    %v1233 = vpow.pop %v1232
    %v1234 = vadd.f32 %v1233, 1.0
    %v1235 = vrcp.pop %v1234
    %v1236 = vmul.f32 1.0, %v1235
    %v1237 = vxor.u32 %v1228, 2147483648
    %v1238 = vmul.f32 %v1237, 1.442695
    %v1239 = vpow.pop %v1238
    %v1240 = vadd.f32 %v1239, 1.0
    %v1241 = vrcp.pop %v1240
    %v1242 = vmul.f32 1.0, %v1241
    %v1243 = vtanh.pop %v1229
    %v1244 = vxor.u32 %v1230, 2147483648
    %v1245 = vmul.f32 %v1244, 1.442695
    %v1246 = vpow.pop %v1245
    %v1247 = vadd.f32 %v1246, 1.0
    %v1248 = vrcp.pop %v1247
    %v1249 = vmul.f32 1.0, %v1248
    %v1250 = vmul.f32 %v1242, %v648
    %v1251 = vmul.f32 %v1236, %v1243
    %v1252 = vadd.f32 %v1250, %v1251
    %v1253 = vtanh.pop %v1252
    %v1254 = vmul.f32 %v1249, %v1253
    %v1255 = vadd.f32 %v543, %v975
    %v1256 = vpack.c.bf16 %v1254, %v1254
    %v1273 = vunpack.c.l.b16 %v612
    %v1274 = vunpack.c.l.b16 %v613
    %v1275 = vunpack.c.l.b16 %v614
    %v1276 = vunpack.c.l.b16 %v615
    %v1277 = vunpack.c.l.b16 %v616
    %v1278 = vunpack.c.l.b16 %v617
    %v1279 = vunpack.c.l.b16 %v618
    %v1280 = vunpack.c.l.b16 %v619
    %v1281 = vunpack.c.l.b16 %v620
    %v1282 = vunpack.c.l.b16 %v621
    %v1283 = vunpack.c.l.b16 %v622
    %v1284 = vunpack.c.l.b16 %v623
    %v1285 = vunpack.c.l.b16 %v624
    %v1286 = vunpack.c.l.b16 %v625
    %v1287 = vunpack.c.l.b16 %v626
    %v1288 = vunpack.c.l.b16 %v627
    %v1289 = vpack.c.b16 %v1274, %v1273
    %v1290 = vpack.c.b16 %v1276, %v1275
    %v1291 = vpack.c.b16 %v1278, %v1277
    %v1292 = vpack.c.b16 %v1280, %v1279
    %v1293 = vpack.c.b16 %v1282, %v1281
    %v1294 = vpack.c.b16 %v1284, %v1283
    %v1295 = vpack.c.b16 %v1286, %v1285
    %v1296 = vpack.c.b16 %v1288, %v1287
    %1305 = vmatprep.subr.bf16.mxu0 0
    %1306 = vmatpush1.bf16.msra.mxu0 %v1296
    %1307 = vmatprep.subr.bf16.mxu0 0
    %1308 = vmatpush1.bf16.msra.mxu0 %v1295
    %1309 = vmatprep.subr.bf16.mxu0 0
    %1310 = vmatpush1.bf16.msra.mxu0 %v1294
    %1311 = vmatprep.subr.bf16.mxu0 0
    %1312 = vmatpush1.bf16.msra.mxu0 %v1293
    %1313 = vmatprep.subr.bf16.mxu0 0
    %1314 = vmatpush1.bf16.msra.mxu0 %v1292
    %1315 = vmatprep.subr.bf16.mxu0 0
    %1316 = vmatpush1.bf16.msra.mxu0 %v1291
    %1317 = vmatprep.subr.bf16.mxu0 0
    %1318 = vmatpush1.bf16.msra.mxu0 %v1290
    %1319 = vmatprep.subr.bf16.mxu0 0
    %1320 = vmatpush1.bf16.msra.mxu0 %v1289
    %1321 = vmatprep.subr.bf16.mxu0 0
    %1322 = vmatpush2.bf16.msra.mxu0 0
    %1323 = vmatprep.subr.bf16.mxu0 0
    %1324 = vmatpush2.bf16.msra.mxu0 0
    %1325 = vmatprep.subr.bf16.mxu0 0
    %1326 = vmatpush2.bf16.msra.mxu0 0
    %1327 = vmatprep.subr.bf16.mxu0 0
    %1328 = vmatpush2.bf16.msra.mxu0 0
    %1329 = vmatprep.subr.bf16.mxu0 0
    %1330 = vmatpush2.bf16.msra.mxu0 0
    %1331 = vmatprep.subr.bf16.mxu0 0
    %1332 = vmatpush2.bf16.msra.mxu0 0
    %1333 = vmatprep.subr.bf16.mxu0 0
    %1334 = vmatpush2.bf16.msra.mxu0 0
    %1335 = vmatprep.subr.bf16.mxu0 0
    %1336 = vmatpush2.bf16.msra.mxu0 0
    %1337 = vmatprep.mubr.bf16.mxu0 0
    %1338 = vmatmul.mubr.bf16.gmra.mxu0 %v1256
    %v1339 = vpop.f32.mrf.mxu0
    %v1340 = vadd.f32 0.0, %v1339
    %v1341 = vpop.f32.mrf.mxu0
    %v1342 = vpop.f32.mrf.mxu0
    %v1343 = vpop.f32.mrf.mxu0
    %1344 = vdwg.mxu0
    %v1345 = vadd.f32 %v1255, %v1340
    %1346 = vst [vmem:[#allocation14] sm:$0xff] %v1345
    %vm1348 = vcmp.lt.s32.totalorder %v1345, 0
    %v1349 = vxor.u32 %v1345, 2147483647
    %v1350 = vsel %vm1348, %v1349, %v1345
    %v1351 = vand.u32 %v1350, 4294967168
    %v1352 = vor.u32 %v1351, %v646
    %v1353 = vand.u32 %v1352, 65535
    %v1354 = vshra.s32 %v1352, 16
    %v1355 = vcvt.s32.f32 %v1353
    %v1356 = vcvt.s32.f32 %v1354
    %1357 = vmax.xlane.f32.xlu0 %v1356
    %v1358 = vpop.xlane.xlu0 %1357
    %vm1359 = vcmp.eq.f32.partialorder %v1356, %v1358
    %v1360 = vsel %vm1359, %v1355, -inf
    %1361 = vmax.xlane.f32.xlu0 %v1360
    %v1362 = vpop.xlane.xlu0 %1361
    %v1363 = vcvt.f32.s32 %v1362
    %v1364 = vcvt.f32.s32 %v1358
    %v1365 = vshll.u32 %v1364, 16
    %v1366 = vadd.s32 %v1365, %v1363
    %vm1367 = vcmp.eq.s32.totalorder %v1352, %v1366
    %v1368 = vsel %vm1367, 1, 0
    %v1369 = vcvt.s32.f32 %v1368
    %v1370 = vpack.c.bf16 %v1369, %v1369
    %1371 = vmatprep.subr.bf16.mxu0 %v775
    %1372 = vmatpush1.bf16.msra.mxu0 %v774
    %1373 = vmatprep.subr.bf16.mxu0 %v771
    %1374 = vmatpush1.bf16.msra.mxu0 %v770
    %1375 = vmatprep.subr.bf16.mxu0 %v767
    %1376 = vmatpush1.bf16.msra.mxu0 %v766
    %1377 = vmatprep.subr.bf16.mxu0 %v763
    %1378 = vmatpush1.bf16.msra.mxu0 %v762
    %1379 = vmatprep.subr.bf16.mxu0 %v759
    %1380 = vmatpush1.bf16.msra.mxu0 %v758
    %1381 = vmatprep.subr.bf16.mxu0 %v755
    %1382 = vmatpush1.bf16.msra.mxu0 %v754
    %1383 = vmatprep.subr.bf16.mxu0 %v751
    %1384 = vmatpush1.bf16.msra.mxu0 %v750
    %1385 = vmatprep.subr.bf16.mxu0 %v747
    %1386 = vmatpush1.bf16.msra.mxu0 %v746
    %1387 = vmatprep.subr.bf16.mxu0 0
    %1388 = vmatpush2.bf16.msra.mxu0 0
    %1389 = vmatprep.subr.bf16.mxu0 0
    %1390 = vmatpush2.bf16.msra.mxu0 0
    %1391 = vmatprep.subr.bf16.mxu0 0
    %1392 = vmatpush2.bf16.msra.mxu0 0
    %1393 = vmatprep.subr.bf16.mxu0 0
    %1394 = vmatpush2.bf16.msra.mxu0 0
    %1395 = vmatprep.subr.bf16.mxu0 0
    %1396 = vmatpush2.bf16.msra.mxu0 0
    %1397 = vmatprep.subr.bf16.mxu0 0
    %1398 = vmatpush2.bf16.msra.mxu0 0
    %1399 = vmatprep.subr.bf16.mxu0 0
    %1400 = vmatpush2.bf16.msra.mxu0 0
    %1401 = vmatprep.subr.bf16.mxu0 0
    %1402 = vmatpush2.bf16.msra.mxu0 0
    %1403 = vmatprep.mubr.bf16.mxu0 0
    %1404 = vmatmul.mubr.bf16.gmra.mxu0 %v1370
    %v1405 = vpop.f32.mrf.mxu0
    %v1406 = vadd.f32 0.0, %v1405
    %v1407 = vpop.f32.mrf.mxu0
    %v1408 = vadd.f32 0.0, %v1407
    %v1409 = vpop.f32.mrf.mxu0
    %v1410 = vpop.f32.mrf.mxu0
    %1411 = vdwg.mxu0
    %1412 = vmatprep.subr.bf16.mxu0 %v777
    %1413 = vmatpush1.bf16.msra.mxu0 %v776
    %1414 = vmatprep.subr.bf16.mxu0 %v773
    %1415 = vmatpush1.bf16.msra.mxu0 %v772
    %1416 = vmatprep.subr.bf16.mxu0 %v769
    %1417 = vmatpush1.bf16.msra.mxu0 %v768
    %1418 = vmatprep.subr.bf16.mxu0 %v765
    %1419 = vmatpush1.bf16.msra.mxu0 %v764
    %1420 = vmatprep.subr.bf16.mxu0 %v761
    %1421 = vmatpush1.bf16.msra.mxu0 %v760
    %1422 = vmatprep.subr.bf16.mxu0 %v757
    %1423 = vmatpush1.bf16.msra.mxu0 %v756
    %1424 = vmatprep.subr.bf16.mxu0 %v753
    %1425 = vmatpush1.bf16.msra.mxu0 %v752
    %1426 = vmatprep.subr.bf16.mxu0 %v749
    %1427 = vmatpush1.bf16.msra.mxu0 %v748
    %1428 = vmatprep.subr.bf16.mxu0 0
    %1429 = vmatpush2.bf16.msra.mxu0 0
    %1430 = vmatprep.subr.bf16.mxu0 0
    %1431 = vmatpush2.bf16.msra.mxu0 0
    %1432 = vmatprep.subr.bf16.mxu0 0
    %1433 = vmatpush2.bf16.msra.mxu0 0
    %1434 = vmatprep.subr.bf16.mxu0 0
    %1435 = vmatpush2.bf16.msra.mxu0 0
    %1436 = vmatprep.subr.bf16.mxu0 0
    %1437 = vmatpush2.bf16.msra.mxu0 0
    %1438 = vmatprep.subr.bf16.mxu0 0
    %1439 = vmatpush2.bf16.msra.mxu0 0
    %1440 = vmatprep.subr.bf16.mxu0 0
    %1441 = vmatpush2.bf16.msra.mxu0 0
    %1442 = vmatprep.subr.bf16.mxu0 0
    %1443 = vmatpush2.bf16.msra.mxu0 0
    %1444 = vmatprep.mubr.bf16.mxu0 0
    %1445 = vmatmul.mubr.bf16.gmra.mxu0 %v1370
    %v1446 = vpop.f32.mrf.mxu0
    %v1447 = vadd.f32 0.0, %v1446
    %v1448 = vpop.f32.mrf.mxu0
    %v1449 = vadd.f32 0.0, %v1448
    %v1450 = vpop.f32.mrf.mxu0
    %v1451 = vpop.f32.mrf.mxu0
    %1452 = vdwg.mxu0
    %1453 = vmatprep.subr.bf16.mxu0 0
    %1454 = vmatpush1.bf16.msra.mxu0 %v931
    %1455 = vmatprep.subr.bf16.mxu0 0
    %1456 = vmatpush1.bf16.msra.mxu0 %v930
    %1457 = vmatprep.subr.bf16.mxu0 0
    %1458 = vmatpush1.bf16.msra.mxu0 %v929
    %1459 = vmatprep.subr.bf16.mxu0 0
    %1460 = vmatpush1.bf16.msra.mxu0 %v928
    %1461 = vmatprep.subr.bf16.mxu0 0
    %1462 = vmatpush1.bf16.msra.mxu0 %v927
    %1463 = vmatprep.subr.bf16.mxu0 0
    %1464 = vmatpush1.bf16.msra.mxu0 %v926
    %1465 = vmatprep.subr.bf16.mxu0 0
    %1466 = vmatpush1.bf16.msra.mxu0 %v925
    %1467 = vmatprep.subr.bf16.mxu0 0
    %1468 = vmatpush1.bf16.msra.mxu0 %v924
    %1469 = vmatprep.subr.bf16.mxu0 0
    %1470 = vmatpush2.bf16.msra.mxu0 0
    %1471 = vmatprep.subr.bf16.mxu0 0
    %1472 = vmatpush2.bf16.msra.mxu0 0
    %1473 = vmatprep.subr.bf16.mxu0 0
    %1474 = vmatpush2.bf16.msra.mxu0 0
    %1475 = vmatprep.subr.bf16.mxu0 0
    %1476 = vmatpush2.bf16.msra.mxu0 0
    %1477 = vmatprep.subr.bf16.mxu0 0
    %1478 = vmatpush2.bf16.msra.mxu0 0
    %1479 = vmatprep.subr.bf16.mxu0 0
    %1480 = vmatpush2.bf16.msra.mxu0 0
    %1481 = vmatprep.subr.bf16.mxu0 0
    %1482 = vmatpush2.bf16.msra.mxu0 0
    %1483 = vmatprep.subr.bf16.mxu0 0
    %1484 = vmatpush2.bf16.msra.mxu0 0
    %1485 = vmatprep.mubr.bf16.mxu0 0
    %1486 = vmatmul.mubr.bf16.gmra.mxu0 %v1370
    %v1487 = vpop.f32.mrf.mxu0
    %v1488 = vadd.f32 0.0, %v1487
    %v1489 = vpop.f32.mrf.mxu0
    %v1490 = vpop.f32.mrf.mxu0
    %v1491 = vpop.f32.mrf.mxu0
    %1492 = vdwg.mxu0
    %v1493 = vadd.f32 %v390, %v1406
    %v1494 = vadd.f32 %v392, %v1408
    %v1495 = vadd.f32 %v431, %v1447
    %v1496 = vadd.f32 %v433, %v1449
    %1497 = vmatprep.subr.bf16.mxu0 %v1110
    %1498 = vmatpush1.bf16.msra.mxu0 %v1109
    %1499 = vmatprep.subr.bf16.mxu0 %v1106
    %1500 = vmatpush1.bf16.msra.mxu0 %v1105
    %1501 = vmatprep.subr.bf16.mxu0 %v1102
    %1502 = vmatpush1.bf16.msra.mxu0 %v1101
    %1503 = vmatprep.subr.bf16.mxu0 %v1098
    %1504 = vmatpush1.bf16.msra.mxu0 %v1097
    %1505 = vmatprep.subr.bf16.mxu0 %v1094
    %1506 = vmatpush1.bf16.msra.mxu0 %v1093
    %1507 = vmatprep.subr.bf16.mxu0 %v1090
    %1508 = vmatpush1.bf16.msra.mxu0 %v1089
    %1509 = vmatprep.subr.bf16.mxu0 %v1086
    %1510 = vmatpush1.bf16.msra.mxu0 %v1085
    %1511 = vmatprep.subr.bf16.mxu0 %v1082
    %1512 = vmatpush1.bf16.msra.mxu0 %v1081
    %1513 = vmatprep.subr.bf16.mxu0 0
    %1514 = vmatpush2.bf16.msra.mxu0 0
    %1515 = vmatprep.subr.bf16.mxu0 0
    %1516 = vmatpush2.bf16.msra.mxu0 0
    %1517 = vmatprep.subr.bf16.mxu0 0
    %1518 = vmatpush2.bf16.msra.mxu0 0
    %1519 = vmatprep.subr.bf16.mxu0 0
    %1520 = vmatpush2.bf16.msra.mxu0 0
    %1521 = vmatprep.subr.bf16.mxu0 0
    %1522 = vmatpush2.bf16.msra.mxu0 0
    %1523 = vmatprep.subr.bf16.mxu0 0
    %1524 = vmatpush2.bf16.msra.mxu0 0
    %1525 = vmatprep.subr.bf16.mxu0 0
    %1526 = vmatpush2.bf16.msra.mxu0 0
    %1527 = vmatprep.subr.bf16.mxu0 0
    %1528 = vmatpush2.bf16.msra.mxu0 0
    %1529 = vmatprep.mubr.bf16.mxu0 0
    %1530 = vmatmul.mubr.bf16.gmra.mxu0 %v1256
    %v1531 = vpop.f32.mrf.mxu0
    %v1532 = vadd.f32 0.0, %v1531
    %v1533 = vpop.f32.mrf.mxu0
    %v1534 = vadd.f32 0.0, %v1533
    %v1535 = vpop.f32.mrf.mxu0
    %v1536 = vpop.f32.mrf.mxu0
    %1537 = vdwg.mxu0
    %1538 = vmatprep.subr.bf16.mxu0 %v1112
    %1539 = vmatpush1.bf16.msra.mxu0 %v1111
    %1540 = vmatprep.subr.bf16.mxu0 %v1108
    %1541 = vmatpush1.bf16.msra.mxu0 %v1107
    %1542 = vmatprep.subr.bf16.mxu0 %v1104
    %1543 = vmatpush1.bf16.msra.mxu0 %v1103
    %1544 = vmatprep.subr.bf16.mxu0 %v1100
    %1545 = vmatpush1.bf16.msra.mxu0 %v1099
    %1546 = vmatprep.subr.bf16.mxu0 %v1096
    %1547 = vmatpush1.bf16.msra.mxu0 %v1095
    %1548 = vmatprep.subr.bf16.mxu0 %v1092
    %1549 = vmatpush1.bf16.msra.mxu0 %v1091
    %1550 = vmatprep.subr.bf16.mxu0 %v1088
    %1551 = vmatpush1.bf16.msra.mxu0 %v1087
    %1552 = vmatprep.subr.bf16.mxu0 %v1084
    %1553 = vmatpush1.bf16.msra.mxu0 %v1083
    %1554 = vmatprep.subr.bf16.mxu0 0
    %1555 = vmatpush2.bf16.msra.mxu0 0
    %1556 = vmatprep.subr.bf16.mxu0 0
    %1557 = vmatpush2.bf16.msra.mxu0 0
    %1558 = vmatprep.subr.bf16.mxu0 0
    %1559 = vmatpush2.bf16.msra.mxu0 0
    %1560 = vmatprep.subr.bf16.mxu0 0
    %1561 = vmatpush2.bf16.msra.mxu0 0
    %1562 = vmatprep.subr.bf16.mxu0 0
    %1563 = vmatpush2.bf16.msra.mxu0 0
    %1564 = vmatprep.subr.bf16.mxu0 0
    %1565 = vmatpush2.bf16.msra.mxu0 0
    %1566 = vmatprep.subr.bf16.mxu0 0
    %1567 = vmatpush2.bf16.msra.mxu0 0
    %1568 = vmatprep.subr.bf16.mxu0 0
    %1569 = vmatpush2.bf16.msra.mxu0 0
    %1570 = vmatprep.mubr.bf16.mxu0 0
    %1571 = vmatmul.mubr.bf16.gmra.mxu0 %v1256
    %v1572 = vpop.f32.mrf.mxu0
    %v1573 = vadd.f32 0.0, %v1572
    %v1574 = vpop.f32.mrf.mxu0
    %v1575 = vadd.f32 0.0, %v1574
    %v1576 = vpop.f32.mrf.mxu0
    %v1577 = vpop.f32.mrf.mxu0
    %1578 = vdwg.mxu0
    %v1579 = vadd.f32 %v1493, %v1532
    %v1580 = vadd.f32 %v1494, %v1534
    %v1581 = vadd.f32 %v1495, %v1573
    %v1582 = vadd.f32 %v1496, %v1575
    %v1583 = vxor.u32 %v1579, 2147483648
    %v1584 = vmul.f32 %v1583, 1.442695
    %v1585 = vpow.pop %v1584
    %v1586 = vadd.f32 %v1585, 1.0
    %v1587 = vrcp.pop %v1586
    %v1588 = vmul.f32 1.0, %v1587
    %v1589 = vxor.u32 %v1580, 2147483648
    %v1590 = vmul.f32 %v1589, 1.442695
    %v1591 = vpow.pop %v1590
    %v1592 = vadd.f32 %v1591, 1.0
    %v1593 = vrcp.pop %v1592
    %v1594 = vmul.f32 1.0, %v1593
    %v1595 = vtanh.pop %v1581
    %v1596 = vxor.u32 %v1582, 2147483648
    %v1597 = vmul.f32 %v1596, 1.442695
    %v1598 = vpow.pop %v1597
    %v1599 = vadd.f32 %v1598, 1.0
    %v1600 = vrcp.pop %v1599
    %v1601 = vmul.f32 1.0, %v1600
    %v1602 = vmul.f32 %v1594, %v1252
    %v1603 = vmul.f32 %v1588, %v1595
    %v1604 = vadd.f32 %v1602, %v1603
    %v1605 = vtanh.pop %v1604
    %v1606 = vmul.f32 %v1601, %v1605
    %v1607 = vadd.f32 %v543, %v1488
    %v1608 = vpack.c.bf16 %v1606, %v1606
    %1609 = vmatprep.subr.bf16.mxu0 0
    %1610 = vmatpush1.bf16.msra.mxu0 %v1296
    %1611 = vmatprep.subr.bf16.mxu0 0
    %1612 = vmatpush1.bf16.msra.mxu0 %v1295
    %1613 = vmatprep.subr.bf16.mxu0 0
    %1614 = vmatpush1.bf16.msra.mxu0 %v1294
    %1615 = vmatprep.subr.bf16.mxu0 0
    %1616 = vmatpush1.bf16.msra.mxu0 %v1293
    %1617 = vmatprep.subr.bf16.mxu0 0
    %1618 = vmatpush1.bf16.msra.mxu0 %v1292
    %1619 = vmatprep.subr.bf16.mxu0 0
    %1620 = vmatpush1.bf16.msra.mxu0 %v1291
    %1621 = vmatprep.subr.bf16.mxu0 0
    %1622 = vmatpush1.bf16.msra.mxu0 %v1290
    %1623 = vmatprep.subr.bf16.mxu0 0
    %1624 = vmatpush1.bf16.msra.mxu0 %v1289
    %1625 = vmatprep.subr.bf16.mxu0 0
    %1626 = vmatpush2.bf16.msra.mxu0 0
    %1627 = vmatprep.subr.bf16.mxu0 0
    %1628 = vmatpush2.bf16.msra.mxu0 0
    %1629 = vmatprep.subr.bf16.mxu0 0
    %1630 = vmatpush2.bf16.msra.mxu0 0
    %1631 = vmatprep.subr.bf16.mxu0 0
    %1632 = vmatpush2.bf16.msra.mxu0 0
    %1633 = vmatprep.subr.bf16.mxu0 0
    %1634 = vmatpush2.bf16.msra.mxu0 0
    %1635 = vmatprep.subr.bf16.mxu0 0
    %1636 = vmatpush2.bf16.msra.mxu0 0
    %1637 = vmatprep.subr.bf16.mxu0 0
    %1638 = vmatpush2.bf16.msra.mxu0 0
    %1639 = vmatprep.subr.bf16.mxu0 0
    %1640 = vmatpush2.bf16.msra.mxu0 0
    %1641 = vmatprep.mubr.bf16.mxu0 0
    %1642 = vmatmul.mubr.bf16.gmra.mxu0 %v1608
    %v1643 = vpop.f32.mrf.mxu0
    %v1644 = vadd.f32 0.0, %v1643
    %v1645 = vpop.f32.mrf.mxu0
    %v1646 = vpop.f32.mrf.mxu0
    %v1647 = vpop.f32.mrf.mxu0
    %1648 = vdwg.mxu0
    %v1649 = vadd.f32 %v1607, %v1644
    %s1650 = scalar_lea.vmem [#allocation14], 8
    %1651 = vst [vmem:[%s1650] sm:$0xff] %v1649
    %vm1653 = vcmp.lt.s32.totalorder %v1649, 0
    %v1654 = vxor.u32 %v1649, 2147483647
    %v1655 = vsel %vm1653, %v1654, %v1649
    %v1656 = vand.u32 %v1655, 4294967168
    %v1657 = vor.u32 %v1656, %v646
    %v1658 = vand.u32 %v1657, 65535
    %v1659 = vshra.s32 %v1657, 16
    %v1660 = vcvt.s32.f32 %v1658
    %v1661 = vcvt.s32.f32 %v1659
    %1662 = vmax.xlane.f32.xlu0 %v1661
    %v1663 = vpop.xlane.xlu0 %1662
    %vm1664 = vcmp.eq.f32.partialorder %v1661, %v1663
    %v1665 = vsel %vm1664, %v1660, -inf
    %1666 = vmax.xlane.f32.xlu0 %v1665
    %v1667 = vpop.xlane.xlu0 %1666
    %v1668 = vcvt.f32.s32 %v1667
    %v1669 = vcvt.f32.s32 %v1663
    %v1670 = vshll.u32 %v1669, 16
    %v1671 = vadd.s32 %v1670, %v1668
    %vm1672 = vcmp.eq.s32.totalorder %v1657, %v1671
    %v1673 = vsel %vm1672, 1, 0
    %v1674 = vcvt.s32.f32 %v1673
    %v1675 = vpack.c.bf16 %v1674, %v1674
    %1676 = vmatprep.subr.bf16.mxu0 %v775
    %1677 = vmatpush1.bf16.msra.mxu0 %v774
    %1678 = vmatprep.subr.bf16.mxu0 %v771
    %1679 = vmatpush1.bf16.msra.mxu0 %v770
    %1680 = vmatprep.subr.bf16.mxu0 %v767
    %1681 = vmatpush1.bf16.msra.mxu0 %v766
    %1682 = vmatprep.subr.bf16.mxu0 %v763
    %1683 = vmatpush1.bf16.msra.mxu0 %v762
    %1684 = vmatprep.subr.bf16.mxu0 %v759
    %1685 = vmatpush1.bf16.msra.mxu0 %v758
    %1686 = vmatprep.subr.bf16.mxu0 %v755
    %1687 = vmatpush1.bf16.msra.mxu0 %v754
    %1688 = vmatprep.subr.bf16.mxu0 %v751
    %1689 = vmatpush1.bf16.msra.mxu0 %v750
    %1690 = vmatprep.subr.bf16.mxu0 %v747
    %1691 = vmatpush1.bf16.msra.mxu0 %v746
    %1692 = vmatprep.subr.bf16.mxu0 0
    %1693 = vmatpush2.bf16.msra.mxu0 0
    %1694 = vmatprep.subr.bf16.mxu0 0
    %1695 = vmatpush2.bf16.msra.mxu0 0
    %1696 = vmatprep.subr.bf16.mxu0 0
    %1697 = vmatpush2.bf16.msra.mxu0 0
    %1698 = vmatprep.subr.bf16.mxu0 0
    %1699 = vmatpush2.bf16.msra.mxu0 0
    %1700 = vmatprep.subr.bf16.mxu0 0
    %1701 = vmatpush2.bf16.msra.mxu0 0
    %1702 = vmatprep.subr.bf16.mxu0 0
    %1703 = vmatpush2.bf16.msra.mxu0 0
    %1704 = vmatprep.subr.bf16.mxu0 0
    %1705 = vmatpush2.bf16.msra.mxu0 0
    %1706 = vmatprep.subr.bf16.mxu0 0
    %1707 = vmatpush2.bf16.msra.mxu0 0
    %1708 = vmatprep.mubr.bf16.mxu0 0
    %1709 = vmatmul.mubr.bf16.gmra.mxu0 %v1675
    %v1710 = vpop.f32.mrf.mxu0
    %v1711 = vadd.f32 0.0, %v1710
    %v1712 = vpop.f32.mrf.mxu0
    %v1713 = vadd.f32 0.0, %v1712
    %v1714 = vpop.f32.mrf.mxu0
    %v1715 = vpop.f32.mrf.mxu0
    %1716 = vdwg.mxu0
    %1717 = vmatprep.subr.bf16.mxu0 %v777
    %1718 = vmatpush1.bf16.msra.mxu0 %v776
    %1719 = vmatprep.subr.bf16.mxu0 %v773
    %1720 = vmatpush1.bf16.msra.mxu0 %v772
    %1721 = vmatprep.subr.bf16.mxu0 %v769
    %1722 = vmatpush1.bf16.msra.mxu0 %v768
    %1723 = vmatprep.subr.bf16.mxu0 %v765
    %1724 = vmatpush1.bf16.msra.mxu0 %v764
    %1725 = vmatprep.subr.bf16.mxu0 %v761
    %1726 = vmatpush1.bf16.msra.mxu0 %v760
    %1727 = vmatprep.subr.bf16.mxu0 %v757
    %1728 = vmatpush1.bf16.msra.mxu0 %v756
    %1729 = vmatprep.subr.bf16.mxu0 %v753
    %1730 = vmatpush1.bf16.msra.mxu0 %v752
    %1731 = vmatprep.subr.bf16.mxu0 %v749
    %1732 = vmatpush1.bf16.msra.mxu0 %v748
    %1733 = vmatprep.subr.bf16.mxu0 0
    %1734 = vmatpush2.bf16.msra.mxu0 0
    %1735 = vmatprep.subr.bf16.mxu0 0
    %1736 = vmatpush2.bf16.msra.mxu0 0
    %1737 = vmatprep.subr.bf16.mxu0 0
    %1738 = vmatpush2.bf16.msra.mxu0 0
    %1739 = vmatprep.subr.bf16.mxu0 0
    %1740 = vmatpush2.bf16.msra.mxu0 0
    %1741 = vmatprep.subr.bf16.mxu0 0
    %1742 = vmatpush2.bf16.msra.mxu0 0
    %1743 = vmatprep.subr.bf16.mxu0 0
    %1744 = vmatpush2.bf16.msra.mxu0 0
    %1745 = vmatprep.subr.bf16.mxu0 0
    %1746 = vmatpush2.bf16.msra.mxu0 0
    %1747 = vmatprep.subr.bf16.mxu0 0
    %1748 = vmatpush2.bf16.msra.mxu0 0
    %1749 = vmatprep.mubr.bf16.mxu0 0
    %1750 = vmatmul.mubr.bf16.gmra.mxu0 %v1675
    %v1751 = vpop.f32.mrf.mxu0
    %v1752 = vadd.f32 0.0, %v1751
    %v1753 = vpop.f32.mrf.mxu0
    %v1754 = vadd.f32 0.0, %v1753
    %v1755 = vpop.f32.mrf.mxu0
    %v1756 = vpop.f32.mrf.mxu0
    %1757 = vdwg.mxu0
    %1758 = vmatprep.subr.bf16.mxu0 0
    %1759 = vmatpush1.bf16.msra.mxu0 %v931
    %1760 = vmatprep.subr.bf16.mxu0 0
    %1761 = vmatpush1.bf16.msra.mxu0 %v930
    %1762 = vmatprep.subr.bf16.mxu0 0
    %1763 = vmatpush1.bf16.msra.mxu0 %v929
    %1764 = vmatprep.subr.bf16.mxu0 0
    %1765 = vmatpush1.bf16.msra.mxu0 %v928
    %1766 = vmatprep.subr.bf16.mxu0 0
    %1767 = vmatpush1.bf16.msra.mxu0 %v927
    %1768 = vmatprep.subr.bf16.mxu0 0
    %1769 = vmatpush1.bf16.msra.mxu0 %v926
    %1770 = vmatprep.subr.bf16.mxu0 0
    %1771 = vmatpush1.bf16.msra.mxu0 %v925
    %1772 = vmatprep.subr.bf16.mxu0 0
    %1773 = vmatpush1.bf16.msra.mxu0 %v924
    %1774 = vmatprep.subr.bf16.mxu0 0
    %1775 = vmatpush2.bf16.msra.mxu0 0
    %1776 = vmatprep.subr.bf16.mxu0 0
    %1777 = vmatpush2.bf16.msra.mxu0 0
    %1778 = vmatprep.subr.bf16.mxu0 0
    %1779 = vmatpush2.bf16.msra.mxu0 0
    %1780 = vmatprep.subr.bf16.mxu0 0
    %1781 = vmatpush2.bf16.msra.mxu0 0
    %1782 = vmatprep.subr.bf16.mxu0 0
    %1783 = vmatpush2.bf16.msra.mxu0 0
    %1784 = vmatprep.subr.bf16.mxu0 0
    %1785 = vmatpush2.bf16.msra.mxu0 0
    %1786 = vmatprep.subr.bf16.mxu0 0
    %1787 = vmatpush2.bf16.msra.mxu0 0
    %1788 = vmatprep.subr.bf16.mxu0 0
    %1789 = vmatpush2.bf16.msra.mxu0 0
    %1790 = vmatprep.mubr.bf16.mxu0 0
    %1791 = vmatmul.mubr.bf16.gmra.mxu0 %v1675
    %v1792 = vpop.f32.mrf.mxu0
    %v1793 = vadd.f32 0.0, %v1792
    %v1794 = vpop.f32.mrf.mxu0
    %v1795 = vpop.f32.mrf.mxu0
    %v1796 = vpop.f32.mrf.mxu0
    %1797 = vdwg.mxu0
    %v1798 = vadd.f32 %v390, %v1711
    %v1799 = vadd.f32 %v392, %v1713
    %v1800 = vadd.f32 %v431, %v1752
    %v1801 = vadd.f32 %v433, %v1754
    %1802 = vmatprep.subr.bf16.mxu0 %v1110
    %1803 = vmatpush1.bf16.msra.mxu0 %v1109
    %1804 = vmatprep.subr.bf16.mxu0 %v1106
    %1805 = vmatpush1.bf16.msra.mxu0 %v1105
    %1806 = vmatprep.subr.bf16.mxu0 %v1102
    %1807 = vmatpush1.bf16.msra.mxu0 %v1101
    %1808 = vmatprep.subr.bf16.mxu0 %v1098
    %1809 = vmatpush1.bf16.msra.mxu0 %v1097
    %1810 = vmatprep.subr.bf16.mxu0 %v1094
    %1811 = vmatpush1.bf16.msra.mxu0 %v1093
    %1812 = vmatprep.subr.bf16.mxu0 %v1090
    %1813 = vmatpush1.bf16.msra.mxu0 %v1089
    %1814 = vmatprep.subr.bf16.mxu0 %v1086
    %1815 = vmatpush1.bf16.msra.mxu0 %v1085
    %1816 = vmatprep.subr.bf16.mxu0 %v1082
    %1817 = vmatpush1.bf16.msra.mxu0 %v1081
    %1818 = vmatprep.subr.bf16.mxu0 0
    %1819 = vmatpush2.bf16.msra.mxu0 0
    %1820 = vmatprep.subr.bf16.mxu0 0
    %1821 = vmatpush2.bf16.msra.mxu0 0
    %1822 = vmatprep.subr.bf16.mxu0 0
    %1823 = vmatpush2.bf16.msra.mxu0 0
    %1824 = vmatprep.subr.bf16.mxu0 0
    %1825 = vmatpush2.bf16.msra.mxu0 0
    %1826 = vmatprep.subr.bf16.mxu0 0
    %1827 = vmatpush2.bf16.msra.mxu0 0
    %1828 = vmatprep.subr.bf16.mxu0 0
    %1829 = vmatpush2.bf16.msra.mxu0 0
    %1830 = vmatprep.subr.bf16.mxu0 0
    %1831 = vmatpush2.bf16.msra.mxu0 0
    %1832 = vmatprep.subr.bf16.mxu0 0
    %1833 = vmatpush2.bf16.msra.mxu0 0
    %1834 = vmatprep.mubr.bf16.mxu0 0
    %1835 = vmatmul.mubr.bf16.gmra.mxu0 %v1608
    %v1836 = vpop.f32.mrf.mxu0
    %v1837 = vadd.f32 0.0, %v1836
    %v1838 = vpop.f32.mrf.mxu0
    %v1839 = vadd.f32 0.0, %v1838
    %v1840 = vpop.f32.mrf.mxu0
    %v1841 = vpop.f32.mrf.mxu0
    %1842 = vdwg.mxu0
    %1843 = vmatprep.subr.bf16.mxu0 %v1112
    %1844 = vmatpush1.bf16.msra.mxu0 %v1111
    %1845 = vmatprep.subr.bf16.mxu0 %v1108
    %1846 = vmatpush1.bf16.msra.mxu0 %v1107
    %1847 = vmatprep.subr.bf16.mxu0 %v1104
    %1848 = vmatpush1.bf16.msra.mxu0 %v1103
    %1849 = vmatprep.subr.bf16.mxu0 %v1100
    %1850 = vmatpush1.bf16.msra.mxu0 %v1099
    %1851 = vmatprep.subr.bf16.mxu0 %v1096
    %1852 = vmatpush1.bf16.msra.mxu0 %v1095
    %1853 = vmatprep.subr.bf16.mxu0 %v1092
    %1854 = vmatpush1.bf16.msra.mxu0 %v1091
    %1855 = vmatprep.subr.bf16.mxu0 %v1088
    %1856 = vmatpush1.bf16.msra.mxu0 %v1087
    %1857 = vmatprep.subr.bf16.mxu0 %v1084
    %1858 = vmatpush1.bf16.msra.mxu0 %v1083
    %1859 = vmatprep.subr.bf16.mxu0 0
    %1860 = vmatpush2.bf16.msra.mxu0 0
    %1861 = vmatprep.subr.bf16.mxu0 0
    %1862 = vmatpush2.bf16.msra.mxu0 0
    %1863 = vmatprep.subr.bf16.mxu0 0
    %1864 = vmatpush2.bf16.msra.mxu0 0
    %1865 = vmatprep.subr.bf16.mxu0 0
    %1866 = vmatpush2.bf16.msra.mxu0 0
    %1867 = vmatprep.subr.bf16.mxu0 0
    %1868 = vmatpush2.bf16.msra.mxu0 0
    %1869 = vmatprep.subr.bf16.mxu0 0
    %1870 = vmatpush2.bf16.msra.mxu0 0
    %1871 = vmatprep.subr.bf16.mxu0 0
    %1872 = vmatpush2.bf16.msra.mxu0 0
    %1873 = vmatprep.subr.bf16.mxu0 0
    %1874 = vmatpush2.bf16.msra.mxu0 0
    %1875 = vmatprep.mubr.bf16.mxu0 0
    %1876 = vmatmul.mubr.bf16.gmra.mxu0 %v1608
    %v1877 = vpop.f32.mrf.mxu0
    %v1878 = vadd.f32 0.0, %v1877
    %v1879 = vpop.f32.mrf.mxu0
    %v1880 = vadd.f32 0.0, %v1879
    %v1881 = vpop.f32.mrf.mxu0
    %v1882 = vpop.f32.mrf.mxu0
    %1883 = vdwg.mxu0
    %v1884 = vadd.f32 %v1798, %v1837
    %v1885 = vadd.f32 %v1799, %v1839
    %v1886 = vadd.f32 %v1800, %v1878
    %v1887 = vadd.f32 %v1801, %v1880
    %v1888 = vxor.u32 %v1884, 2147483648
    %v1889 = vmul.f32 %v1888, 1.442695
    %v1890 = vpow.pop %v1889
    %v1891 = vadd.f32 %v1890, 1.0
    %v1892 = vrcp.pop %v1891
    %v1893 = vmul.f32 1.0, %v1892
    %v1894 = vxor.u32 %v1885, 2147483648
    %v1895 = vmul.f32 %v1894, 1.442695
    %v1896 = vpow.pop %v1895
    %v1897 = vadd.f32 %v1896, 1.0
    %v1898 = vrcp.pop %v1897
    %v1899 = vmul.f32 1.0, %v1898
    %v1900 = vtanh.pop %v1886
    %v1901 = vxor.u32 %v1887, 2147483648
    %v1902 = vmul.f32 %v1901, 1.442695
    %v1903 = vpow.pop %v1902
    %v1904 = vadd.f32 %v1903, 1.0
    %v1905 = vrcp.pop %v1904
    %v1906 = vmul.f32 1.0, %v1905
    %v1907 = vmul.f32 %v1899, %v1604
    %v1908 = vmul.f32 %v1893, %v1900
    %v1909 = vadd.f32 %v1907, %v1908
    %v1910 = vtanh.pop %v1909
    %v1911 = vmul.f32 %v1906, %v1910
    %v1912 = vadd.f32 %v543, %v1793
    %v1913 = vpack.c.bf16 %v1911, %v1911
    %1914 = vmatprep.subr.bf16.mxu0 0
    %1915 = vmatpush1.bf16.msra.mxu0 %v1296
    %1916 = vmatprep.subr.bf16.mxu0 0
    %1917 = vmatpush1.bf16.msra.mxu0 %v1295
    %1918 = vmatprep.subr.bf16.mxu0 0
    %1919 = vmatpush1.bf16.msra.mxu0 %v1294
    %1920 = vmatprep.subr.bf16.mxu0 0
    %1921 = vmatpush1.bf16.msra.mxu0 %v1293
    %1922 = vmatprep.subr.bf16.mxu0 0
    %1923 = vmatpush1.bf16.msra.mxu0 %v1292
    %1924 = vmatprep.subr.bf16.mxu0 0
    %1925 = vmatpush1.bf16.msra.mxu0 %v1291
    %1926 = vmatprep.subr.bf16.mxu0 0
    %1927 = vmatpush1.bf16.msra.mxu0 %v1290
    %1928 = vmatprep.subr.bf16.mxu0 0
    %1929 = vmatpush1.bf16.msra.mxu0 %v1289
    %1930 = vmatprep.subr.bf16.mxu0 0
    %1931 = vmatpush2.bf16.msra.mxu0 0
    %1932 = vmatprep.subr.bf16.mxu0 0
    %1933 = vmatpush2.bf16.msra.mxu0 0
    %1934 = vmatprep.subr.bf16.mxu0 0
    %1935 = vmatpush2.bf16.msra.mxu0 0
    %1936 = vmatprep.subr.bf16.mxu0 0
    %1937 = vmatpush2.bf16.msra.mxu0 0
    %1938 = vmatprep.subr.bf16.mxu0 0
    %1939 = vmatpush2.bf16.msra.mxu0 0
    %1940 = vmatprep.subr.bf16.mxu0 0
    %1941 = vmatpush2.bf16.msra.mxu0 0
    %1942 = vmatprep.subr.bf16.mxu0 0
    %1943 = vmatpush2.bf16.msra.mxu0 0
    %1944 = vmatprep.subr.bf16.mxu0 0
    %1945 = vmatpush2.bf16.msra.mxu0 0
    %1946 = vmatprep.mubr.bf16.mxu0 0
    %1947 = vmatmul.mubr.bf16.gmra.mxu0 %v1913
    %v1948 = vpop.f32.mrf.mxu0
    %v1949 = vadd.f32 0.0, %v1948
    %v1950 = vpop.f32.mrf.mxu0
    %v1951 = vpop.f32.mrf.mxu0
    %v1952 = vpop.f32.mrf.mxu0
    %1953 = vdwg.mxu0
    %v1954 = vadd.f32 %v1912, %v1949
    %s1955 = scalar_lea.vmem [#allocation14], 16
    %1956 = vst [vmem:[%s1955] sm:$0xff] %v1954
    %vm1958 = vcmp.lt.s32.totalorder %v1954, 0
    %v1959 = vxor.u32 %v1954, 2147483647
    %v1960 = vsel %vm1958, %v1959, %v1954
    %v1961 = vand.u32 %v1960, 4294967168
    %v1962 = vor.u32 %v1961, %v646
    %v1963 = vand.u32 %v1962, 65535
    %v1964 = vshra.s32 %v1962, 16
    %v1965 = vcvt.s32.f32 %v1963
    %v1966 = vcvt.s32.f32 %v1964
    %1967 = vmax.xlane.f32.xlu0 %v1966
    %v1968 = vpop.xlane.xlu0 %1967
    %vm1969 = vcmp.eq.f32.partialorder %v1966, %v1968
    %v1970 = vsel %vm1969, %v1965, -inf
    %1971 = vmax.xlane.f32.xlu0 %v1970
    %v1972 = vpop.xlane.xlu0 %1971
    %v1973 = vcvt.f32.s32 %v1972
    %v1974 = vcvt.f32.s32 %v1968
    %v1975 = vshll.u32 %v1974, 16
    %v1976 = vadd.s32 %v1975, %v1973
    %vm1977 = vcmp.eq.s32.totalorder %v1962, %v1976
    %v1978 = vsel %vm1977, 1, 0
    %v1979 = vcvt.s32.f32 %v1978
    %v1980 = vpack.c.bf16 %v1979, %v1979
    %1981 = vmatprep.subr.bf16.mxu0 %v775
    %1982 = vmatpush1.bf16.msra.mxu0 %v774
    %1983 = vmatprep.subr.bf16.mxu0 %v771
    %1984 = vmatpush1.bf16.msra.mxu0 %v770
    %1985 = vmatprep.subr.bf16.mxu0 %v767
    %1986 = vmatpush1.bf16.msra.mxu0 %v766
    %1987 = vmatprep.subr.bf16.mxu0 %v763
    %1988 = vmatpush1.bf16.msra.mxu0 %v762
    %1989 = vmatprep.subr.bf16.mxu0 %v759
    %1990 = vmatpush1.bf16.msra.mxu0 %v758
    %1991 = vmatprep.subr.bf16.mxu0 %v755
    %1992 = vmatpush1.bf16.msra.mxu0 %v754
    %1993 = vmatprep.subr.bf16.mxu0 %v751
    %1994 = vmatpush1.bf16.msra.mxu0 %v750
    %1995 = vmatprep.subr.bf16.mxu0 %v747
    %1996 = vmatpush1.bf16.msra.mxu0 %v746
    %1997 = vmatprep.subr.bf16.mxu0 0
    %1998 = vmatpush2.bf16.msra.mxu0 0
    %1999 = vmatprep.subr.bf16.mxu0 0
    %2000 = vmatpush2.bf16.msra.mxu0 0
    %2001 = vmatprep.subr.bf16.mxu0 0
    %2002 = vmatpush2.bf16.msra.mxu0 0
    %2003 = vmatprep.subr.bf16.mxu0 0
    %2004 = vmatpush2.bf16.msra.mxu0 0
    %2005 = vmatprep.subr.bf16.mxu0 0
    %2006 = vmatpush2.bf16.msra.mxu0 0
    %2007 = vmatprep.subr.bf16.mxu0 0
    %2008 = vmatpush2.bf16.msra.mxu0 0
    %2009 = vmatprep.subr.bf16.mxu0 0
    %2010 = vmatpush2.bf16.msra.mxu0 0
    %2011 = vmatprep.subr.bf16.mxu0 0
    %2012 = vmatpush2.bf16.msra.mxu0 0
    %2013 = vmatprep.mubr.bf16.mxu0 0
    %2014 = vmatmul.mubr.bf16.gmra.mxu0 %v1980
    %v2015 = vpop.f32.mrf.mxu0
    %v2016 = vadd.f32 0.0, %v2015
    %v2017 = vpop.f32.mrf.mxu0
    %v2018 = vadd.f32 0.0, %v2017
    %v2019 = vpop.f32.mrf.mxu0
    %v2020 = vpop.f32.mrf.mxu0
    %2021 = vdwg.mxu0
    %2022 = vmatprep.subr.bf16.mxu0 %v777
    %2023 = vmatpush1.bf16.msra.mxu0 %v776
    %2024 = vmatprep.subr.bf16.mxu0 %v773
    %2025 = vmatpush1.bf16.msra.mxu0 %v772
    %2026 = vmatprep.subr.bf16.mxu0 %v769
    %2027 = vmatpush1.bf16.msra.mxu0 %v768
    %2028 = vmatprep.subr.bf16.mxu0 %v765
    %2029 = vmatpush1.bf16.msra.mxu0 %v764
    %2030 = vmatprep.subr.bf16.mxu0 %v761
    %2031 = vmatpush1.bf16.msra.mxu0 %v760
    %2032 = vmatprep.subr.bf16.mxu0 %v757
    %2033 = vmatpush1.bf16.msra.mxu0 %v756
    %2034 = vmatprep.subr.bf16.mxu0 %v753
    %2035 = vmatpush1.bf16.msra.mxu0 %v752
    %2036 = vmatprep.subr.bf16.mxu0 %v749
    %2037 = vmatpush1.bf16.msra.mxu0 %v748
    %2038 = vmatprep.subr.bf16.mxu0 0
    %2039 = vmatpush2.bf16.msra.mxu0 0
    %2040 = vmatprep.subr.bf16.mxu0 0
    %2041 = vmatpush2.bf16.msra.mxu0 0
    %2042 = vmatprep.subr.bf16.mxu0 0
    %2043 = vmatpush2.bf16.msra.mxu0 0
    %2044 = vmatprep.subr.bf16.mxu0 0
    %2045 = vmatpush2.bf16.msra.mxu0 0
    %2046 = vmatprep.subr.bf16.mxu0 0
    %2047 = vmatpush2.bf16.msra.mxu0 0
    %2048 = vmatprep.subr.bf16.mxu0 0
    %2049 = vmatpush2.bf16.msra.mxu0 0
    %2050 = vmatprep.subr.bf16.mxu0 0
    %2051 = vmatpush2.bf16.msra.mxu0 0
    %2052 = vmatprep.subr.bf16.mxu0 0
    %2053 = vmatpush2.bf16.msra.mxu0 0
    %2054 = vmatprep.mubr.bf16.mxu0 0
    %2055 = vmatmul.mubr.bf16.gmra.mxu0 %v1980
    %v2056 = vpop.f32.mrf.mxu0
    %v2057 = vadd.f32 0.0, %v2056
    %v2058 = vpop.f32.mrf.mxu0
    %v2059 = vadd.f32 0.0, %v2058
    %v2060 = vpop.f32.mrf.mxu0
    %v2061 = vpop.f32.mrf.mxu0
    %2062 = vdwg.mxu0
    %2063 = vmatprep.subr.bf16.mxu0 0
    %2064 = vmatpush1.bf16.msra.mxu0 %v931
    %2065 = vmatprep.subr.bf16.mxu0 0
    %2066 = vmatpush1.bf16.msra.mxu0 %v930
    %2067 = vmatprep.subr.bf16.mxu0 0
    %2068 = vmatpush1.bf16.msra.mxu0 %v929
    %2069 = vmatprep.subr.bf16.mxu0 0
    %2070 = vmatpush1.bf16.msra.mxu0 %v928
    %2071 = vmatprep.subr.bf16.mxu0 0
    %2072 = vmatpush1.bf16.msra.mxu0 %v927
    %2073 = vmatprep.subr.bf16.mxu0 0
    %2074 = vmatpush1.bf16.msra.mxu0 %v926
    %2075 = vmatprep.subr.bf16.mxu0 0
    %2076 = vmatpush1.bf16.msra.mxu0 %v925
    %2077 = vmatprep.subr.bf16.mxu0 0
    %2078 = vmatpush1.bf16.msra.mxu0 %v924
    %2079 = vmatprep.subr.bf16.mxu0 0
    %2080 = vmatpush2.bf16.msra.mxu0 0
    %2081 = vmatprep.subr.bf16.mxu0 0
    %2082 = vmatpush2.bf16.msra.mxu0 0
    %2083 = vmatprep.subr.bf16.mxu0 0
    %2084 = vmatpush2.bf16.msra.mxu0 0
    %2085 = vmatprep.subr.bf16.mxu0 0
    %2086 = vmatpush2.bf16.msra.mxu0 0
    %2087 = vmatprep.subr.bf16.mxu0 0
    %2088 = vmatpush2.bf16.msra.mxu0 0
    %2089 = vmatprep.subr.bf16.mxu0 0
    %2090 = vmatpush2.bf16.msra.mxu0 0
    %2091 = vmatprep.subr.bf16.mxu0 0
    %2092 = vmatpush2.bf16.msra.mxu0 0
    %2093 = vmatprep.subr.bf16.mxu0 0
    %2094 = vmatpush2.bf16.msra.mxu0 0
    %2095 = vmatprep.mubr.bf16.mxu0 0
    %2096 = vmatmul.mubr.bf16.gmra.mxu0 %v1980
    %v2097 = vpop.f32.mrf.mxu0
    %v2098 = vadd.f32 0.0, %v2097
    %v2099 = vpop.f32.mrf.mxu0
    %v2100 = vpop.f32.mrf.mxu0
    %v2101 = vpop.f32.mrf.mxu0
    %2102 = vdwg.mxu0
    %v2103 = vadd.f32 %v390, %v2016
    %v2104 = vadd.f32 %v392, %v2018
    %v2105 = vadd.f32 %v431, %v2057
    %v2106 = vadd.f32 %v433, %v2059
    %2107 = vmatprep.subr.bf16.mxu0 %v1110
    %2108 = vmatpush1.bf16.msra.mxu0 %v1109
    %2109 = vmatprep.subr.bf16.mxu0 %v1106
    %2110 = vmatpush1.bf16.msra.mxu0 %v1105
    %2111 = vmatprep.subr.bf16.mxu0 %v1102
    %2112 = vmatpush1.bf16.msra.mxu0 %v1101
    %2113 = vmatprep.subr.bf16.mxu0 %v1098
    %2114 = vmatpush1.bf16.msra.mxu0 %v1097
    %2115 = vmatprep.subr.bf16.mxu0 %v1094
    %2116 = vmatpush1.bf16.msra.mxu0 %v1093
    %2117 = vmatprep.subr.bf16.mxu0 %v1090
    %2118 = vmatpush1.bf16.msra.mxu0 %v1089
    %2119 = vmatprep.subr.bf16.mxu0 %v1086
    %2120 = vmatpush1.bf16.msra.mxu0 %v1085
    %2121 = vmatprep.subr.bf16.mxu0 %v1082
    %2122 = vmatpush1.bf16.msra.mxu0 %v1081
    %2123 = vmatprep.subr.bf16.mxu0 0
    %2124 = vmatpush2.bf16.msra.mxu0 0
    %2125 = vmatprep.subr.bf16.mxu0 0
    %2126 = vmatpush2.bf16.msra.mxu0 0
    %2127 = vmatprep.subr.bf16.mxu0 0
    %2128 = vmatpush2.bf16.msra.mxu0 0
    %2129 = vmatprep.subr.bf16.mxu0 0
    %2130 = vmatpush2.bf16.msra.mxu0 0
    %2131 = vmatprep.subr.bf16.mxu0 0
    %2132 = vmatpush2.bf16.msra.mxu0 0
    %2133 = vmatprep.subr.bf16.mxu0 0
    %2134 = vmatpush2.bf16.msra.mxu0 0
    %2135 = vmatprep.subr.bf16.mxu0 0
    %2136 = vmatpush2.bf16.msra.mxu0 0
    %2137 = vmatprep.subr.bf16.mxu0 0
    %2138 = vmatpush2.bf16.msra.mxu0 0
    %2139 = vmatprep.mubr.bf16.mxu0 0
    %2140 = vmatmul.mubr.bf16.gmra.mxu0 %v1913
    %v2141 = vpop.f32.mrf.mxu0
    %v2142 = vadd.f32 0.0, %v2141
    %v2143 = vpop.f32.mrf.mxu0
    %v2144 = vadd.f32 0.0, %v2143
    %v2145 = vpop.f32.mrf.mxu0
    %v2146 = vpop.f32.mrf.mxu0
    %2147 = vdwg.mxu0
    %2148 = vmatprep.subr.bf16.mxu0 %v1112
    %2149 = vmatpush1.bf16.msra.mxu0 %v1111
    %2150 = vmatprep.subr.bf16.mxu0 %v1108
    %2151 = vmatpush1.bf16.msra.mxu0 %v1107
    %2152 = vmatprep.subr.bf16.mxu0 %v1104
    %2153 = vmatpush1.bf16.msra.mxu0 %v1103
    %2154 = vmatprep.subr.bf16.mxu0 %v1100
    %2155 = vmatpush1.bf16.msra.mxu0 %v1099
    %2156 = vmatprep.subr.bf16.mxu0 %v1096
    %2157 = vmatpush1.bf16.msra.mxu0 %v1095
    %2158 = vmatprep.subr.bf16.mxu0 %v1092
    %2159 = vmatpush1.bf16.msra.mxu0 %v1091
    %2160 = vmatprep.subr.bf16.mxu0 %v1088
    %2161 = vmatpush1.bf16.msra.mxu0 %v1087
    %2162 = vmatprep.subr.bf16.mxu0 %v1084
    %2163 = vmatpush1.bf16.msra.mxu0 %v1083
    %2164 = vmatprep.subr.bf16.mxu0 0
    %2165 = vmatpush2.bf16.msra.mxu0 0
    %2166 = vmatprep.subr.bf16.mxu0 0
    %2167 = vmatpush2.bf16.msra.mxu0 0
    %2168 = vmatprep.subr.bf16.mxu0 0
    %2169 = vmatpush2.bf16.msra.mxu0 0
    %2170 = vmatprep.subr.bf16.mxu0 0
    %2171 = vmatpush2.bf16.msra.mxu0 0
    %2172 = vmatprep.subr.bf16.mxu0 0
    %2173 = vmatpush2.bf16.msra.mxu0 0
    %2174 = vmatprep.subr.bf16.mxu0 0
    %2175 = vmatpush2.bf16.msra.mxu0 0
    %2176 = vmatprep.subr.bf16.mxu0 0
    %2177 = vmatpush2.bf16.msra.mxu0 0
    %2178 = vmatprep.subr.bf16.mxu0 0
    %2179 = vmatpush2.bf16.msra.mxu0 0
    %2180 = vmatprep.mubr.bf16.mxu0 0
    %2181 = vmatmul.mubr.bf16.gmra.mxu0 %v1913
    %v2182 = vpop.f32.mrf.mxu0
    %v2183 = vadd.f32 0.0, %v2182
    %v2184 = vpop.f32.mrf.mxu0
    %v2185 = vadd.f32 0.0, %v2184
    %v2186 = vpop.f32.mrf.mxu0
    %v2187 = vpop.f32.mrf.mxu0
    %2188 = vdwg.mxu0
    %v2189 = vadd.f32 %v2103, %v2142
    %v2190 = vadd.f32 %v2104, %v2144
    %v2191 = vadd.f32 %v2105, %v2183
    %v2192 = vadd.f32 %v2106, %v2185
    %v2193 = vxor.u32 %v2189, 2147483648
    %v2194 = vmul.f32 %v2193, 1.442695
    %v2195 = vpow.pop %v2194
    %v2196 = vadd.f32 %v2195, 1.0
    %v2197 = vrcp.pop %v2196
    %v2198 = vmul.f32 1.0, %v2197
    %v2199 = vxor.u32 %v2190, 2147483648
    %v2200 = vmul.f32 %v2199, 1.442695
    %v2201 = vpow.pop %v2200
    %v2202 = vadd.f32 %v2201, 1.0
    %v2203 = vrcp.pop %v2202
    %v2204 = vmul.f32 1.0, %v2203
    %v2205 = vtanh.pop %v2191
    %v2206 = vxor.u32 %v2192, 2147483648
    %v2207 = vmul.f32 %v2206, 1.442695
    %v2208 = vpow.pop %v2207
    %v2209 = vadd.f32 %v2208, 1.0
    %v2210 = vrcp.pop %v2209
    %v2211 = vmul.f32 1.0, %v2210
    %v2212 = vmul.f32 %v2204, %v1909
    %v2213 = vmul.f32 %v2198, %v2205
    %v2214 = vadd.f32 %v2212, %v2213
    %v2215 = vtanh.pop %v2214
    %v2216 = vmul.f32 %v2211, %v2215
    %v2217 = vadd.f32 %v543, %v2098
    %v2218 = vpack.c.bf16 %v2216, %v2216
    %2219 = vmatprep.subr.bf16.mxu0 0
    %2220 = vmatpush1.bf16.msra.mxu0 %v1296
    %2221 = vmatprep.subr.bf16.mxu0 0
    %2222 = vmatpush1.bf16.msra.mxu0 %v1295
    %2223 = vmatprep.subr.bf16.mxu0 0
    %2224 = vmatpush1.bf16.msra.mxu0 %v1294
    %2225 = vmatprep.subr.bf16.mxu0 0
    %2226 = vmatpush1.bf16.msra.mxu0 %v1293
    %2227 = vmatprep.subr.bf16.mxu0 0
    %2228 = vmatpush1.bf16.msra.mxu0 %v1292
    %2229 = vmatprep.subr.bf16.mxu0 0
    %2230 = vmatpush1.bf16.msra.mxu0 %v1291
    %2231 = vmatprep.subr.bf16.mxu0 0
    %2232 = vmatpush1.bf16.msra.mxu0 %v1290
    %2233 = vmatprep.subr.bf16.mxu0 0
    %2234 = vmatpush1.bf16.msra.mxu0 %v1289
    %2235 = vmatprep.subr.bf16.mxu0 0
    %2236 = vmatpush2.bf16.msra.mxu0 0
    %2237 = vmatprep.subr.bf16.mxu0 0
    %2238 = vmatpush2.bf16.msra.mxu0 0
    %2239 = vmatprep.subr.bf16.mxu0 0
    %2240 = vmatpush2.bf16.msra.mxu0 0
    %2241 = vmatprep.subr.bf16.mxu0 0
    %2242 = vmatpush2.bf16.msra.mxu0 0
    %2243 = vmatprep.subr.bf16.mxu0 0
    %2244 = vmatpush2.bf16.msra.mxu0 0
    %2245 = vmatprep.subr.bf16.mxu0 0
    %2246 = vmatpush2.bf16.msra.mxu0 0
    %2247 = vmatprep.subr.bf16.mxu0 0
    %2248 = vmatpush2.bf16.msra.mxu0 0
    %2249 = vmatprep.subr.bf16.mxu0 0
    %2250 = vmatpush2.bf16.msra.mxu0 0
    %2251 = vmatprep.mubr.bf16.mxu0 0
    %2252 = vmatmul.mubr.bf16.gmra.mxu0 %v2218
    %v2253 = vpop.f32.mrf.mxu0
    %v2254 = vadd.f32 0.0, %v2253
    %v2255 = vpop.f32.mrf.mxu0
    %v2256 = vpop.f32.mrf.mxu0
    %v2257 = vpop.f32.mrf.mxu0
    %2258 = vdwg.mxu0
    %v2259 = vadd.f32 %v2217, %v2254
    %s2260 = scalar_lea.vmem [#allocation14], 24
    %2261 = vst [vmem:[%s2260] sm:$0xff] %v2259
    %vm2263 = vcmp.lt.s32.totalorder %v2259, 0
    %v2264 = vxor.u32 %v2259, 2147483647
    %v2265 = vsel %vm2263, %v2264, %v2259
    %v2266 = vand.u32 %v2265, 4294967168
    %v2267 = vor.u32 %v2266, %v646
    %v2268 = vand.u32 %v2267, 65535
    %v2269 = vshra.s32 %v2267, 16
    %v2270 = vcvt.s32.f32 %v2268
    %v2271 = vcvt.s32.f32 %v2269
    %2272 = vmax.xlane.f32.xlu0 %v2271
    %v2273 = vpop.xlane.xlu0 %2272
    %vm2274 = vcmp.eq.f32.partialorder %v2271, %v2273
    %v2275 = vsel %vm2274, %v2270, -inf
    %2276 = vmax.xlane.f32.xlu0 %v2275
    %v2277 = vpop.xlane.xlu0 %2276
    %v2278 = vcvt.f32.s32 %v2277
    %v2279 = vcvt.f32.s32 %v2273
    %v2280 = vshll.u32 %v2279, 16
    %v2281 = vadd.s32 %v2280, %v2278
    %vm2282 = vcmp.eq.s32.totalorder %v2267, %v2281
    %v2283 = vsel %vm2282, 1, 0
    %v2284 = vcvt.s32.f32 %v2283
    %v2285 = vpack.c.bf16 %v2284, %v2284
    %2286 = vmatprep.subr.bf16.mxu0 %v775
    %2287 = vmatpush1.bf16.msra.mxu0 %v774
    %2288 = vmatprep.subr.bf16.mxu0 %v771
    %2289 = vmatpush1.bf16.msra.mxu0 %v770
    %2290 = vmatprep.subr.bf16.mxu0 %v767
    %2291 = vmatpush1.bf16.msra.mxu0 %v766
    %2292 = vmatprep.subr.bf16.mxu0 %v763
    %2293 = vmatpush1.bf16.msra.mxu0 %v762
    %2294 = vmatprep.subr.bf16.mxu0 %v759
    %2295 = vmatpush1.bf16.msra.mxu0 %v758
    %2296 = vmatprep.subr.bf16.mxu0 %v755
    %2297 = vmatpush1.bf16.msra.mxu0 %v754
    %2298 = vmatprep.subr.bf16.mxu0 %v751
    %2299 = vmatpush1.bf16.msra.mxu0 %v750
    %2300 = vmatprep.subr.bf16.mxu0 %v747
    %2301 = vmatpush1.bf16.msra.mxu0 %v746
    %2302 = vmatprep.subr.bf16.mxu0 0
    %2303 = vmatpush2.bf16.msra.mxu0 0
    %2304 = vmatprep.subr.bf16.mxu0 0
    %2305 = vmatpush2.bf16.msra.mxu0 0
    %2306 = vmatprep.subr.bf16.mxu0 0
    %2307 = vmatpush2.bf16.msra.mxu0 0
    %2308 = vmatprep.subr.bf16.mxu0 0
    %2309 = vmatpush2.bf16.msra.mxu0 0
    %2310 = vmatprep.subr.bf16.mxu0 0
    %2311 = vmatpush2.bf16.msra.mxu0 0
    %2312 = vmatprep.subr.bf16.mxu0 0
    %2313 = vmatpush2.bf16.msra.mxu0 0
    %2314 = vmatprep.subr.bf16.mxu0 0
    %2315 = vmatpush2.bf16.msra.mxu0 0
    %2316 = vmatprep.subr.bf16.mxu0 0
    %2317 = vmatpush2.bf16.msra.mxu0 0
    %2318 = vmatprep.mubr.bf16.mxu0 0
    %2319 = vmatmul.mubr.bf16.gmra.mxu0 %v2285
    %v2320 = vpop.f32.mrf.mxu0
    %v2321 = vadd.f32 0.0, %v2320
    %v2322 = vpop.f32.mrf.mxu0
    %v2323 = vadd.f32 0.0, %v2322
    %v2324 = vpop.f32.mrf.mxu0
    %v2325 = vpop.f32.mrf.mxu0
    %2326 = vdwg.mxu0
    %2327 = vmatprep.subr.bf16.mxu0 %v777
    %2328 = vmatpush1.bf16.msra.mxu0 %v776
    %2329 = vmatprep.subr.bf16.mxu0 %v773
    %2330 = vmatpush1.bf16.msra.mxu0 %v772
    %2331 = vmatprep.subr.bf16.mxu0 %v769
    %2332 = vmatpush1.bf16.msra.mxu0 %v768
    %2333 = vmatprep.subr.bf16.mxu0 %v765
    %2334 = vmatpush1.bf16.msra.mxu0 %v764
    %2335 = vmatprep.subr.bf16.mxu0 %v761
    %2336 = vmatpush1.bf16.msra.mxu0 %v760
    %2337 = vmatprep.subr.bf16.mxu0 %v757
    %2338 = vmatpush1.bf16.msra.mxu0 %v756
    %2339 = vmatprep.subr.bf16.mxu0 %v753
    %2340 = vmatpush1.bf16.msra.mxu0 %v752
    %2341 = vmatprep.subr.bf16.mxu0 %v749
    %2342 = vmatpush1.bf16.msra.mxu0 %v748
    %2343 = vmatprep.subr.bf16.mxu0 0
    %2344 = vmatpush2.bf16.msra.mxu0 0
    %2345 = vmatprep.subr.bf16.mxu0 0
    %2346 = vmatpush2.bf16.msra.mxu0 0
    %2347 = vmatprep.subr.bf16.mxu0 0
    %2348 = vmatpush2.bf16.msra.mxu0 0
    %2349 = vmatprep.subr.bf16.mxu0 0
    %2350 = vmatpush2.bf16.msra.mxu0 0
    %2351 = vmatprep.subr.bf16.mxu0 0
    %2352 = vmatpush2.bf16.msra.mxu0 0
    %2353 = vmatprep.subr.bf16.mxu0 0
    %2354 = vmatpush2.bf16.msra.mxu0 0
    %2355 = vmatprep.subr.bf16.mxu0 0
    %2356 = vmatpush2.bf16.msra.mxu0 0
    %2357 = vmatprep.subr.bf16.mxu0 0
    %2358 = vmatpush2.bf16.msra.mxu0 0
    %2359 = vmatprep.mubr.bf16.mxu0 0
    %2360 = vmatmul.mubr.bf16.gmra.mxu0 %v2285
    %v2361 = vpop.f32.mrf.mxu0
    %v2362 = vadd.f32 0.0, %v2361
    %v2363 = vpop.f32.mrf.mxu0
    %v2364 = vadd.f32 0.0, %v2363
    %v2365 = vpop.f32.mrf.mxu0
    %v2366 = vpop.f32.mrf.mxu0
    %2367 = vdwg.mxu0
    %2368 = vmatprep.subr.bf16.mxu0 0
    %2369 = vmatpush1.bf16.msra.mxu0 %v931
    %2370 = vmatprep.subr.bf16.mxu0 0
    %2371 = vmatpush1.bf16.msra.mxu0 %v930
    %2372 = vmatprep.subr.bf16.mxu0 0
    %2373 = vmatpush1.bf16.msra.mxu0 %v929
    %2374 = vmatprep.subr.bf16.mxu0 0
    %2375 = vmatpush1.bf16.msra.mxu0 %v928
    %2376 = vmatprep.subr.bf16.mxu0 0
    %2377 = vmatpush1.bf16.msra.mxu0 %v927
    %2378 = vmatprep.subr.bf16.mxu0 0
    %2379 = vmatpush1.bf16.msra.mxu0 %v926
    %2380 = vmatprep.subr.bf16.mxu0 0
    %2381 = vmatpush1.bf16.msra.mxu0 %v925
    %2382 = vmatprep.subr.bf16.mxu0 0
    %2383 = vmatpush1.bf16.msra.mxu0 %v924
    %2384 = vmatprep.subr.bf16.mxu0 0
    %2385 = vmatpush2.bf16.msra.mxu0 0
    %2386 = vmatprep.subr.bf16.mxu0 0
    %2387 = vmatpush2.bf16.msra.mxu0 0
    %2388 = vmatprep.subr.bf16.mxu0 0
    %2389 = vmatpush2.bf16.msra.mxu0 0
    %2390 = vmatprep.subr.bf16.mxu0 0
    %2391 = vmatpush2.bf16.msra.mxu0 0
    %2392 = vmatprep.subr.bf16.mxu0 0
    %2393 = vmatpush2.bf16.msra.mxu0 0
    %2394 = vmatprep.subr.bf16.mxu0 0
    %2395 = vmatpush2.bf16.msra.mxu0 0
    %2396 = vmatprep.subr.bf16.mxu0 0
    %2397 = vmatpush2.bf16.msra.mxu0 0
    %2398 = vmatprep.subr.bf16.mxu0 0
    %2399 = vmatpush2.bf16.msra.mxu0 0
    %2400 = vmatprep.mubr.bf16.mxu0 0
    %2401 = vmatmul.mubr.bf16.gmra.mxu0 %v2285
    %v2402 = vpop.f32.mrf.mxu0
    %v2403 = vadd.f32 0.0, %v2402
    %v2404 = vpop.f32.mrf.mxu0
    %v2405 = vpop.f32.mrf.mxu0
    %v2406 = vpop.f32.mrf.mxu0
    %2407 = vdwg.mxu0
    %v2408 = vadd.f32 %v390, %v2321
    %v2409 = vadd.f32 %v392, %v2323
    %v2410 = vadd.f32 %v431, %v2362
    %v2411 = vadd.f32 %v433, %v2364
    %2412 = vmatprep.subr.bf16.mxu0 %v1110
    %2413 = vmatpush1.bf16.msra.mxu0 %v1109
    %2414 = vmatprep.subr.bf16.mxu0 %v1106
    %2415 = vmatpush1.bf16.msra.mxu0 %v1105
    %2416 = vmatprep.subr.bf16.mxu0 %v1102
    %2417 = vmatpush1.bf16.msra.mxu0 %v1101
    %2418 = vmatprep.subr.bf16.mxu0 %v1098
    %2419 = vmatpush1.bf16.msra.mxu0 %v1097
    %2420 = vmatprep.subr.bf16.mxu0 %v1094
    %2421 = vmatpush1.bf16.msra.mxu0 %v1093
    %2422 = vmatprep.subr.bf16.mxu0 %v1090
    %2423 = vmatpush1.bf16.msra.mxu0 %v1089
    %2424 = vmatprep.subr.bf16.mxu0 %v1086
    %2425 = vmatpush1.bf16.msra.mxu0 %v1085
    %2426 = vmatprep.subr.bf16.mxu0 %v1082
    %2427 = vmatpush1.bf16.msra.mxu0 %v1081
    %2428 = vmatprep.subr.bf16.mxu0 0
    %2429 = vmatpush2.bf16.msra.mxu0 0
    %2430 = vmatprep.subr.bf16.mxu0 0
    %2431 = vmatpush2.bf16.msra.mxu0 0
    %2432 = vmatprep.subr.bf16.mxu0 0
    %2433 = vmatpush2.bf16.msra.mxu0 0
    %2434 = vmatprep.subr.bf16.mxu0 0
    %2435 = vmatpush2.bf16.msra.mxu0 0
    %2436 = vmatprep.subr.bf16.mxu0 0
    %2437 = vmatpush2.bf16.msra.mxu0 0
    %2438 = vmatprep.subr.bf16.mxu0 0
    %2439 = vmatpush2.bf16.msra.mxu0 0
    %2440 = vmatprep.subr.bf16.mxu0 0
    %2441 = vmatpush2.bf16.msra.mxu0 0
    %2442 = vmatprep.subr.bf16.mxu0 0
    %2443 = vmatpush2.bf16.msra.mxu0 0
    %2444 = vmatprep.mubr.bf16.mxu0 0
    %2445 = vmatmul.mubr.bf16.gmra.mxu0 %v2218
    %v2446 = vpop.f32.mrf.mxu0
    %v2447 = vadd.f32 0.0, %v2446
    %v2448 = vpop.f32.mrf.mxu0
    %v2449 = vadd.f32 0.0, %v2448
    %v2450 = vpop.f32.mrf.mxu0
    %v2451 = vpop.f32.mrf.mxu0
    %2452 = vdwg.mxu0
    %2453 = vmatprep.subr.bf16.mxu0 %v1112
    %2454 = vmatpush1.bf16.msra.mxu0 %v1111
    %2455 = vmatprep.subr.bf16.mxu0 %v1108
    %2456 = vmatpush1.bf16.msra.mxu0 %v1107
    %2457 = vmatprep.subr.bf16.mxu0 %v1104
    %2458 = vmatpush1.bf16.msra.mxu0 %v1103
    %2459 = vmatprep.subr.bf16.mxu0 %v1100
    %2460 = vmatpush1.bf16.msra.mxu0 %v1099
    %2461 = vmatprep.subr.bf16.mxu0 %v1096
    %2462 = vmatpush1.bf16.msra.mxu0 %v1095
    %2463 = vmatprep.subr.bf16.mxu0 %v1092
    %2464 = vmatpush1.bf16.msra.mxu0 %v1091
    %2465 = vmatprep.subr.bf16.mxu0 %v1088
    %2466 = vmatpush1.bf16.msra.mxu0 %v1087
    %2467 = vmatprep.subr.bf16.mxu0 %v1084
    %2468 = vmatpush1.bf16.msra.mxu0 %v1083
    %2469 = vmatprep.subr.bf16.mxu0 0
    %2470 = vmatpush2.bf16.msra.mxu0 0
    %2471 = vmatprep.subr.bf16.mxu0 0
    %2472 = vmatpush2.bf16.msra.mxu0 0
    %2473 = vmatprep.subr.bf16.mxu0 0
    %2474 = vmatpush2.bf16.msra.mxu0 0
    %2475 = vmatprep.subr.bf16.mxu0 0
    %2476 = vmatpush2.bf16.msra.mxu0 0
    %2477 = vmatprep.subr.bf16.mxu0 0
    %2478 = vmatpush2.bf16.msra.mxu0 0
    %2479 = vmatprep.subr.bf16.mxu0 0
    %2480 = vmatpush2.bf16.msra.mxu0 0
    %2481 = vmatprep.subr.bf16.mxu0 0
    %2482 = vmatpush2.bf16.msra.mxu0 0
    %2483 = vmatprep.subr.bf16.mxu0 0
    %2484 = vmatpush2.bf16.msra.mxu0 0
    %2485 = vmatprep.mubr.bf16.mxu0 0
    %2486 = vmatmul.mubr.bf16.gmra.mxu0 %v2218
    %v2487 = vpop.f32.mrf.mxu0
    %v2488 = vadd.f32 0.0, %v2487
    %v2489 = vpop.f32.mrf.mxu0
    %v2490 = vadd.f32 0.0, %v2489
    %v2491 = vpop.f32.mrf.mxu0
    %v2492 = vpop.f32.mrf.mxu0
    %2493 = vdwg.mxu0
    %v2494 = vadd.f32 %v2408, %v2447
    %v2495 = vadd.f32 %v2409, %v2449
    %v2496 = vadd.f32 %v2410, %v2488
    %v2497 = vadd.f32 %v2411, %v2490
    %v2498 = vxor.u32 %v2494, 2147483648
    %v2499 = vmul.f32 %v2498, 1.442695
    %v2500 = vpow.pop %v2499
    %v2501 = vadd.f32 %v2500, 1.0
    %v2502 = vrcp.pop %v2501
    %v2503 = vmul.f32 1.0, %v2502
    %v2504 = vxor.u32 %v2495, 2147483648
    %v2505 = vmul.f32 %v2504, 1.442695
    %v2506 = vpow.pop %v2505
    %v2507 = vadd.f32 %v2506, 1.0
    %v2508 = vrcp.pop %v2507
    %v2509 = vmul.f32 1.0, %v2508
    %v2510 = vtanh.pop %v2496
    %v2511 = vxor.u32 %v2497, 2147483648
    %v2512 = vmul.f32 %v2511, 1.442695
    %v2513 = vpow.pop %v2512
    %v2514 = vadd.f32 %v2513, 1.0
    %v2515 = vrcp.pop %v2514
    %v2516 = vmul.f32 1.0, %v2515
    %v2517 = vmul.f32 %v2509, %v2214
    %v2518 = vmul.f32 %v2503, %v2510
    %v2519 = vadd.f32 %v2517, %v2518
    %v2520 = vtanh.pop %v2519
    %v2521 = vmul.f32 %v2516, %v2520
    %v2522 = vadd.f32 %v543, %v2403
    %v2523 = vpack.c.bf16 %v2521, %v2521
    %2524 = vmatprep.subr.bf16.mxu0 0
    %2525 = vmatpush1.bf16.msra.mxu0 %v1296
    %2526 = vmatprep.subr.bf16.mxu0 0
    %2527 = vmatpush1.bf16.msra.mxu0 %v1295
    %2528 = vmatprep.subr.bf16.mxu0 0
    %2529 = vmatpush1.bf16.msra.mxu0 %v1294
    %2530 = vmatprep.subr.bf16.mxu0 0
    %2531 = vmatpush1.bf16.msra.mxu0 %v1293
    %2532 = vmatprep.subr.bf16.mxu0 0
    %2533 = vmatpush1.bf16.msra.mxu0 %v1292
    %2534 = vmatprep.subr.bf16.mxu0 0
    %2535 = vmatpush1.bf16.msra.mxu0 %v1291
    %2536 = vmatprep.subr.bf16.mxu0 0
    %2537 = vmatpush1.bf16.msra.mxu0 %v1290
    %2538 = vmatprep.subr.bf16.mxu0 0
    %2539 = vmatpush1.bf16.msra.mxu0 %v1289
    %2540 = vmatprep.subr.bf16.mxu0 0
    %2541 = vmatpush2.bf16.msra.mxu0 0
    %2542 = vmatprep.subr.bf16.mxu0 0
    %2543 = vmatpush2.bf16.msra.mxu0 0
    %2544 = vmatprep.subr.bf16.mxu0 0
    %2545 = vmatpush2.bf16.msra.mxu0 0
    %2546 = vmatprep.subr.bf16.mxu0 0
    %2547 = vmatpush2.bf16.msra.mxu0 0
    %2548 = vmatprep.subr.bf16.mxu0 0
    %2549 = vmatpush2.bf16.msra.mxu0 0
    %2550 = vmatprep.subr.bf16.mxu0 0
    %2551 = vmatpush2.bf16.msra.mxu0 0
    %2552 = vmatprep.subr.bf16.mxu0 0
    %2553 = vmatpush2.bf16.msra.mxu0 0
    %2554 = vmatprep.subr.bf16.mxu0 0
    %2555 = vmatpush2.bf16.msra.mxu0 0
    %2556 = vmatprep.mubr.bf16.mxu0 0
    %2557 = vmatmul.mubr.bf16.gmra.mxu0 %v2523
    %v2558 = vpop.f32.mrf.mxu0
    %v2559 = vadd.f32 0.0, %v2558
    %v2560 = vpop.f32.mrf.mxu0
    %v2561 = vpop.f32.mrf.mxu0
    %v2562 = vpop.f32.mrf.mxu0
    %2563 = vdwg.mxu0
    %v2564 = vadd.f32 %v2522, %v2559
    %s2565 = scalar_lea.vmem [#allocation14], 32
    %2566 = vst [vmem:[%s2565] sm:$0xff] %v2564
    %vm2568 = vcmp.lt.s32.totalorder %v2564, 0
    %v2569 = vxor.u32 %v2564, 2147483647
    %v2570 = vsel %vm2568, %v2569, %v2564
    %v2571 = vand.u32 %v2570, 4294967168
    %v2572 = vor.u32 %v2571, %v646
    %v2573 = vand.u32 %v2572, 65535
    %v2574 = vshra.s32 %v2572, 16
    %v2575 = vcvt.s32.f32 %v2573
    %v2576 = vcvt.s32.f32 %v2574
    %2577 = vmax.xlane.f32.xlu0 %v2576
    %v2578 = vpop.xlane.xlu0 %2577
    %vm2579 = vcmp.eq.f32.partialorder %v2576, %v2578
    %v2580 = vsel %vm2579, %v2575, -inf
    %2581 = vmax.xlane.f32.xlu0 %v2580
    %v2582 = vpop.xlane.xlu0 %2581
    %v2583 = vcvt.f32.s32 %v2582
    %v2584 = vcvt.f32.s32 %v2578
    %v2585 = vshll.u32 %v2584, 16
    %v2586 = vadd.s32 %v2585, %v2583
    %vm2587 = vcmp.eq.s32.totalorder %v2572, %v2586
    %v2588 = vsel %vm2587, 1, 0
    %v2589 = vcvt.s32.f32 %v2588
    %v2590 = vpack.c.bf16 %v2589, %v2589
    %2591 = vmatprep.subr.bf16.mxu0 %v775
    %2592 = vmatpush1.bf16.msra.mxu0 %v774
    %2593 = vmatprep.subr.bf16.mxu0 %v771
    %2594 = vmatpush1.bf16.msra.mxu0 %v770
    %2595 = vmatprep.subr.bf16.mxu0 %v767
    %2596 = vmatpush1.bf16.msra.mxu0 %v766
    %2597 = vmatprep.subr.bf16.mxu0 %v763
    %2598 = vmatpush1.bf16.msra.mxu0 %v762
    %2599 = vmatprep.subr.bf16.mxu0 %v759
    %2600 = vmatpush1.bf16.msra.mxu0 %v758
    %2601 = vmatprep.subr.bf16.mxu0 %v755
    %2602 = vmatpush1.bf16.msra.mxu0 %v754
    %2603 = vmatprep.subr.bf16.mxu0 %v751
    %2604 = vmatpush1.bf16.msra.mxu0 %v750
    %2605 = vmatprep.subr.bf16.mxu0 %v747
    %2606 = vmatpush1.bf16.msra.mxu0 %v746
    %2607 = vmatprep.subr.bf16.mxu0 0
    %2608 = vmatpush2.bf16.msra.mxu0 0
    %2609 = vmatprep.subr.bf16.mxu0 0
    %2610 = vmatpush2.bf16.msra.mxu0 0
    %2611 = vmatprep.subr.bf16.mxu0 0
    %2612 = vmatpush2.bf16.msra.mxu0 0
    %2613 = vmatprep.subr.bf16.mxu0 0
    %2614 = vmatpush2.bf16.msra.mxu0 0
    %2615 = vmatprep.subr.bf16.mxu0 0
    %2616 = vmatpush2.bf16.msra.mxu0 0
    %2617 = vmatprep.subr.bf16.mxu0 0
    %2618 = vmatpush2.bf16.msra.mxu0 0
    %2619 = vmatprep.subr.bf16.mxu0 0
    %2620 = vmatpush2.bf16.msra.mxu0 0
    %2621 = vmatprep.subr.bf16.mxu0 0
    %2622 = vmatpush2.bf16.msra.mxu0 0
    %2623 = vmatprep.mubr.bf16.mxu0 0
    %2624 = vmatmul.mubr.bf16.gmra.mxu0 %v2590
    %v2625 = vpop.f32.mrf.mxu0
    %v2626 = vadd.f32 0.0, %v2625
    %v2627 = vpop.f32.mrf.mxu0
    %v2628 = vadd.f32 0.0, %v2627
    %v2629 = vpop.f32.mrf.mxu0
    %v2630 = vpop.f32.mrf.mxu0
    %2631 = vdwg.mxu0
    %2632 = vmatprep.subr.bf16.mxu0 %v777
    %2633 = vmatpush1.bf16.msra.mxu0 %v776
    %2634 = vmatprep.subr.bf16.mxu0 %v773
    %2635 = vmatpush1.bf16.msra.mxu0 %v772
    %2636 = vmatprep.subr.bf16.mxu0 %v769
    %2637 = vmatpush1.bf16.msra.mxu0 %v768
    %2638 = vmatprep.subr.bf16.mxu0 %v765
    %2639 = vmatpush1.bf16.msra.mxu0 %v764
    %2640 = vmatprep.subr.bf16.mxu0 %v761
    %2641 = vmatpush1.bf16.msra.mxu0 %v760
    %2642 = vmatprep.subr.bf16.mxu0 %v757
    %2643 = vmatpush1.bf16.msra.mxu0 %v756
    %2644 = vmatprep.subr.bf16.mxu0 %v753
    %2645 = vmatpush1.bf16.msra.mxu0 %v752
    %2646 = vmatprep.subr.bf16.mxu0 %v749
    %2647 = vmatpush1.bf16.msra.mxu0 %v748
    %2648 = vmatprep.subr.bf16.mxu0 0
    %2649 = vmatpush2.bf16.msra.mxu0 0
    %2650 = vmatprep.subr.bf16.mxu0 0
    %2651 = vmatpush2.bf16.msra.mxu0 0
    %2652 = vmatprep.subr.bf16.mxu0 0
    %2653 = vmatpush2.bf16.msra.mxu0 0
    %2654 = vmatprep.subr.bf16.mxu0 0
    %2655 = vmatpush2.bf16.msra.mxu0 0
    %2656 = vmatprep.subr.bf16.mxu0 0
    %2657 = vmatpush2.bf16.msra.mxu0 0
    %2658 = vmatprep.subr.bf16.mxu0 0
    %2659 = vmatpush2.bf16.msra.mxu0 0
    %2660 = vmatprep.subr.bf16.mxu0 0
    %2661 = vmatpush2.bf16.msra.mxu0 0
    %2662 = vmatprep.subr.bf16.mxu0 0
    %2663 = vmatpush2.bf16.msra.mxu0 0
    %2664 = vmatprep.mubr.bf16.mxu0 0
    %2665 = vmatmul.mubr.bf16.gmra.mxu0 %v2590
    %v2666 = vpop.f32.mrf.mxu0
    %v2667 = vadd.f32 0.0, %v2666
    %v2668 = vpop.f32.mrf.mxu0
    %v2669 = vadd.f32 0.0, %v2668
    %v2670 = vpop.f32.mrf.mxu0
    %v2671 = vpop.f32.mrf.mxu0
    %2672 = vdwg.mxu0
    %2673 = vmatprep.subr.bf16.mxu0 0
    %2674 = vmatpush1.bf16.msra.mxu0 %v931
    %2675 = vmatprep.subr.bf16.mxu0 0
    %2676 = vmatpush1.bf16.msra.mxu0 %v930
    %2677 = vmatprep.subr.bf16.mxu0 0
    %2678 = vmatpush1.bf16.msra.mxu0 %v929
    %2679 = vmatprep.subr.bf16.mxu0 0
    %2680 = vmatpush1.bf16.msra.mxu0 %v928
    %2681 = vmatprep.subr.bf16.mxu0 0
    %2682 = vmatpush1.bf16.msra.mxu0 %v927
    %2683 = vmatprep.subr.bf16.mxu0 0
    %2684 = vmatpush1.bf16.msra.mxu0 %v926
    %2685 = vmatprep.subr.bf16.mxu0 0
    %2686 = vmatpush1.bf16.msra.mxu0 %v925
    %2687 = vmatprep.subr.bf16.mxu0 0
    %2688 = vmatpush1.bf16.msra.mxu0 %v924
    %2689 = vmatprep.subr.bf16.mxu0 0
    %2690 = vmatpush2.bf16.msra.mxu0 0
    %2691 = vmatprep.subr.bf16.mxu0 0
    %2692 = vmatpush2.bf16.msra.mxu0 0
    %2693 = vmatprep.subr.bf16.mxu0 0
    %2694 = vmatpush2.bf16.msra.mxu0 0
    %2695 = vmatprep.subr.bf16.mxu0 0
    %2696 = vmatpush2.bf16.msra.mxu0 0
    %2697 = vmatprep.subr.bf16.mxu0 0
    %2698 = vmatpush2.bf16.msra.mxu0 0
    %2699 = vmatprep.subr.bf16.mxu0 0
    %2700 = vmatpush2.bf16.msra.mxu0 0
    %2701 = vmatprep.subr.bf16.mxu0 0
    %2702 = vmatpush2.bf16.msra.mxu0 0
    %2703 = vmatprep.subr.bf16.mxu0 0
    %2704 = vmatpush2.bf16.msra.mxu0 0
    %2705 = vmatprep.mubr.bf16.mxu0 0
    %2706 = vmatmul.mubr.bf16.gmra.mxu0 %v2590
    %v2707 = vpop.f32.mrf.mxu0
    %v2708 = vadd.f32 0.0, %v2707
    %v2709 = vpop.f32.mrf.mxu0
    %v2710 = vpop.f32.mrf.mxu0
    %v2711 = vpop.f32.mrf.mxu0
    %2712 = vdwg.mxu0
    %v2713 = vadd.f32 %v390, %v2626
    %v2714 = vadd.f32 %v392, %v2628
    %v2715 = vadd.f32 %v431, %v2667
    %v2716 = vadd.f32 %v433, %v2669
    %2717 = vmatprep.subr.bf16.mxu0 %v1110
    %2718 = vmatpush1.bf16.msra.mxu0 %v1109
    %2719 = vmatprep.subr.bf16.mxu0 %v1106
    %2720 = vmatpush1.bf16.msra.mxu0 %v1105
    %2721 = vmatprep.subr.bf16.mxu0 %v1102
    %2722 = vmatpush1.bf16.msra.mxu0 %v1101
    %2723 = vmatprep.subr.bf16.mxu0 %v1098
    %2724 = vmatpush1.bf16.msra.mxu0 %v1097
    %2725 = vmatprep.subr.bf16.mxu0 %v1094
    %2726 = vmatpush1.bf16.msra.mxu0 %v1093
    %2727 = vmatprep.subr.bf16.mxu0 %v1090
    %2728 = vmatpush1.bf16.msra.mxu0 %v1089
    %2729 = vmatprep.subr.bf16.mxu0 %v1086
    %2730 = vmatpush1.bf16.msra.mxu0 %v1085
    %2731 = vmatprep.subr.bf16.mxu0 %v1082
    %2732 = vmatpush1.bf16.msra.mxu0 %v1081
    %2733 = vmatprep.subr.bf16.mxu0 0
    %2734 = vmatpush2.bf16.msra.mxu0 0
    %2735 = vmatprep.subr.bf16.mxu0 0
    %2736 = vmatpush2.bf16.msra.mxu0 0
    %2737 = vmatprep.subr.bf16.mxu0 0
    %2738 = vmatpush2.bf16.msra.mxu0 0
    %2739 = vmatprep.subr.bf16.mxu0 0
    %2740 = vmatpush2.bf16.msra.mxu0 0
    %2741 = vmatprep.subr.bf16.mxu0 0
    %2742 = vmatpush2.bf16.msra.mxu0 0
    %2743 = vmatprep.subr.bf16.mxu0 0
    %2744 = vmatpush2.bf16.msra.mxu0 0
    %2745 = vmatprep.subr.bf16.mxu0 0
    %2746 = vmatpush2.bf16.msra.mxu0 0
    %2747 = vmatprep.subr.bf16.mxu0 0
    %2748 = vmatpush2.bf16.msra.mxu0 0
    %2749 = vmatprep.mubr.bf16.mxu0 0
    %2750 = vmatmul.mubr.bf16.gmra.mxu0 %v2523
    %v2751 = vpop.f32.mrf.mxu0
    %v2752 = vadd.f32 0.0, %v2751
    %v2753 = vpop.f32.mrf.mxu0
    %v2754 = vadd.f32 0.0, %v2753
    %v2755 = vpop.f32.mrf.mxu0
    %v2756 = vpop.f32.mrf.mxu0
    %2757 = vdwg.mxu0
    %2758 = vmatprep.subr.bf16.mxu0 %v1112
    %2759 = vmatpush1.bf16.msra.mxu0 %v1111
    %2760 = vmatprep.subr.bf16.mxu0 %v1108
    %2761 = vmatpush1.bf16.msra.mxu0 %v1107
    %2762 = vmatprep.subr.bf16.mxu0 %v1104
    %2763 = vmatpush1.bf16.msra.mxu0 %v1103
    %2764 = vmatprep.subr.bf16.mxu0 %v1100
    %2765 = vmatpush1.bf16.msra.mxu0 %v1099
    %2766 = vmatprep.subr.bf16.mxu0 %v1096
    %2767 = vmatpush1.bf16.msra.mxu0 %v1095
    %2768 = vmatprep.subr.bf16.mxu0 %v1092
    %2769 = vmatpush1.bf16.msra.mxu0 %v1091
    %2770 = vmatprep.subr.bf16.mxu0 %v1088
    %2771 = vmatpush1.bf16.msra.mxu0 %v1087
    %2772 = vmatprep.subr.bf16.mxu0 %v1084
    %2773 = vmatpush1.bf16.msra.mxu0 %v1083
    %2774 = vmatprep.subr.bf16.mxu0 0
    %2775 = vmatpush2.bf16.msra.mxu0 0
    %2776 = vmatprep.subr.bf16.mxu0 0
    %2777 = vmatpush2.bf16.msra.mxu0 0
    %2778 = vmatprep.subr.bf16.mxu0 0
    %2779 = vmatpush2.bf16.msra.mxu0 0
    %2780 = vmatprep.subr.bf16.mxu0 0
    %2781 = vmatpush2.bf16.msra.mxu0 0
    %2782 = vmatprep.subr.bf16.mxu0 0
    %2783 = vmatpush2.bf16.msra.mxu0 0
    %2784 = vmatprep.subr.bf16.mxu0 0
    %2785 = vmatpush2.bf16.msra.mxu0 0
    %2786 = vmatprep.subr.bf16.mxu0 0
    %2787 = vmatpush2.bf16.msra.mxu0 0
    %2788 = vmatprep.subr.bf16.mxu0 0
    %2789 = vmatpush2.bf16.msra.mxu0 0
    %2790 = vmatprep.mubr.bf16.mxu0 0
    %2791 = vmatmul.mubr.bf16.gmra.mxu0 %v2523
    %v2792 = vpop.f32.mrf.mxu0
    %v2793 = vadd.f32 0.0, %v2792
    %v2794 = vpop.f32.mrf.mxu0
    %v2795 = vadd.f32 0.0, %v2794
    %v2796 = vpop.f32.mrf.mxu0
    %v2797 = vpop.f32.mrf.mxu0
    %2798 = vdwg.mxu0
    %v2799 = vadd.f32 %v2713, %v2752
    %v2800 = vadd.f32 %v2714, %v2754
    %v2801 = vadd.f32 %v2715, %v2793
    %v2802 = vadd.f32 %v2716, %v2795
    %v2803 = vxor.u32 %v2799, 2147483648
    %v2804 = vmul.f32 %v2803, 1.442695
    %v2805 = vpow.pop %v2804
    %v2806 = vadd.f32 %v2805, 1.0
    %v2807 = vrcp.pop %v2806
    %v2808 = vmul.f32 1.0, %v2807
    %v2809 = vxor.u32 %v2800, 2147483648
    %v2810 = vmul.f32 %v2809, 1.442695
    %v2811 = vpow.pop %v2810
    %v2812 = vadd.f32 %v2811, 1.0
    %v2813 = vrcp.pop %v2812
    %v2814 = vmul.f32 1.0, %v2813
    %v2815 = vtanh.pop %v2801
    %v2816 = vxor.u32 %v2802, 2147483648
    %v2817 = vmul.f32 %v2816, 1.442695
    %v2818 = vpow.pop %v2817
    %v2819 = vadd.f32 %v2818, 1.0
    %v2820 = vrcp.pop %v2819
    %v2821 = vmul.f32 1.0, %v2820
    %v2822 = vmul.f32 %v2814, %v2519
    %v2823 = vmul.f32 %v2808, %v2815
    %v2824 = vadd.f32 %v2822, %v2823
    %v2825 = vtanh.pop %v2824
    %v2826 = vmul.f32 %v2821, %v2825
    %v2827 = vadd.f32 %v543, %v2708
    %v2828 = vpack.c.bf16 %v2826, %v2826
    %2829 = vmatprep.subr.bf16.mxu0 0
    %2830 = vmatpush1.bf16.msra.mxu0 %v1296
    %2831 = vmatprep.subr.bf16.mxu0 0
    %2832 = vmatpush1.bf16.msra.mxu0 %v1295
    %2833 = vmatprep.subr.bf16.mxu0 0
    %2834 = vmatpush1.bf16.msra.mxu0 %v1294
    %2835 = vmatprep.subr.bf16.mxu0 0
    %2836 = vmatpush1.bf16.msra.mxu0 %v1293
    %2837 = vmatprep.subr.bf16.mxu0 0
    %2838 = vmatpush1.bf16.msra.mxu0 %v1292
    %2839 = vmatprep.subr.bf16.mxu0 0
    %2840 = vmatpush1.bf16.msra.mxu0 %v1291
    %2841 = vmatprep.subr.bf16.mxu0 0
    %2842 = vmatpush1.bf16.msra.mxu0 %v1290
    %2843 = vmatprep.subr.bf16.mxu0 0
    %2844 = vmatpush1.bf16.msra.mxu0 %v1289
    %2845 = vmatprep.subr.bf16.mxu0 0
    %2846 = vmatpush2.bf16.msra.mxu0 0
    %2847 = vmatprep.subr.bf16.mxu0 0
    %2848 = vmatpush2.bf16.msra.mxu0 0
    %2849 = vmatprep.subr.bf16.mxu0 0
    %2850 = vmatpush2.bf16.msra.mxu0 0
    %2851 = vmatprep.subr.bf16.mxu0 0
    %2852 = vmatpush2.bf16.msra.mxu0 0
    %2853 = vmatprep.subr.bf16.mxu0 0
    %2854 = vmatpush2.bf16.msra.mxu0 0
    %2855 = vmatprep.subr.bf16.mxu0 0
    %2856 = vmatpush2.bf16.msra.mxu0 0
    %2857 = vmatprep.subr.bf16.mxu0 0
    %2858 = vmatpush2.bf16.msra.mxu0 0
    %2859 = vmatprep.subr.bf16.mxu0 0
    %2860 = vmatpush2.bf16.msra.mxu0 0
    %2861 = vmatprep.mubr.bf16.mxu0 0
    %2862 = vmatmul.mubr.bf16.gmra.mxu0 %v2828
    %v2863 = vpop.f32.mrf.mxu0
    %v2864 = vadd.f32 0.0, %v2863
    %v2865 = vpop.f32.mrf.mxu0
    %v2866 = vpop.f32.mrf.mxu0
    %v2867 = vpop.f32.mrf.mxu0
    %2868 = vdwg.mxu0
    %v2869 = vadd.f32 %v2827, %v2864
    %s2870 = scalar_lea.vmem [#allocation14], 40
    %2871 = vst [vmem:[%s2870] sm:$0xff] %v2869
    %vm2873 = vcmp.lt.s32.totalorder %v2869, 0
    %v2874 = vxor.u32 %v2869, 2147483647
    %v2875 = vsel %vm2873, %v2874, %v2869
    %v2876 = vand.u32 %v2875, 4294967168
    %v2877 = vor.u32 %v2876, %v646
    %v2878 = vand.u32 %v2877, 65535
    %v2879 = vshra.s32 %v2877, 16
    %v2880 = vcvt.s32.f32 %v2878
    %v2881 = vcvt.s32.f32 %v2879
    %2882 = vmax.xlane.f32.xlu0 %v2881
    %v2883 = vpop.xlane.xlu0 %2882
    %vm2884 = vcmp.eq.f32.partialorder %v2881, %v2883
    %v2885 = vsel %vm2884, %v2880, -inf
    %2886 = vmax.xlane.f32.xlu0 %v2885
    %v2887 = vpop.xlane.xlu0 %2886
    %v2888 = vcvt.f32.s32 %v2887
    %v2889 = vcvt.f32.s32 %v2883
    %v2890 = vshll.u32 %v2889, 16
    %v2891 = vadd.s32 %v2890, %v2888
    %vm2892 = vcmp.eq.s32.totalorder %v2877, %v2891
    %v2893 = vsel %vm2892, 1, 0
    %v2894 = vcvt.s32.f32 %v2893
    %v2895 = vpack.c.bf16 %v2894, %v2894
    %2896 = vmatprep.subr.bf16.mxu0 %v775
    %2897 = vmatpush1.bf16.msra.mxu0 %v774
    %2898 = vmatprep.subr.bf16.mxu0 %v771
    %2899 = vmatpush1.bf16.msra.mxu0 %v770
    %2900 = vmatprep.subr.bf16.mxu0 %v767
    %2901 = vmatpush1.bf16.msra.mxu0 %v766
    %2902 = vmatprep.subr.bf16.mxu0 %v763
    %2903 = vmatpush1.bf16.msra.mxu0 %v762
    %2904 = vmatprep.subr.bf16.mxu0 %v759
    %2905 = vmatpush1.bf16.msra.mxu0 %v758
    %2906 = vmatprep.subr.bf16.mxu0 %v755
    %2907 = vmatpush1.bf16.msra.mxu0 %v754
    %2908 = vmatprep.subr.bf16.mxu0 %v751
    %2909 = vmatpush1.bf16.msra.mxu0 %v750
    %2910 = vmatprep.subr.bf16.mxu0 %v747
    %2911 = vmatpush1.bf16.msra.mxu0 %v746
    %2912 = vmatprep.subr.bf16.mxu0 0
    %2913 = vmatpush2.bf16.msra.mxu0 0
    %2914 = vmatprep.subr.bf16.mxu0 0
    %2915 = vmatpush2.bf16.msra.mxu0 0
    %2916 = vmatprep.subr.bf16.mxu0 0
    %2917 = vmatpush2.bf16.msra.mxu0 0
    %2918 = vmatprep.subr.bf16.mxu0 0
    %2919 = vmatpush2.bf16.msra.mxu0 0
    %2920 = vmatprep.subr.bf16.mxu0 0
    %2921 = vmatpush2.bf16.msra.mxu0 0
    %2922 = vmatprep.subr.bf16.mxu0 0
    %2923 = vmatpush2.bf16.msra.mxu0 0
    %2924 = vmatprep.subr.bf16.mxu0 0
    %2925 = vmatpush2.bf16.msra.mxu0 0
    %2926 = vmatprep.subr.bf16.mxu0 0
    %2927 = vmatpush2.bf16.msra.mxu0 0
    %2928 = vmatprep.mubr.bf16.mxu0 0
    %2929 = vmatmul.mubr.bf16.gmra.mxu0 %v2895
    %v2930 = vpop.f32.mrf.mxu0
    %v2931 = vadd.f32 0.0, %v2930
    %v2932 = vpop.f32.mrf.mxu0
    %v2933 = vadd.f32 0.0, %v2932
    %v2934 = vpop.f32.mrf.mxu0
    %v2935 = vpop.f32.mrf.mxu0
    %2936 = vdwg.mxu0
    %2937 = vmatprep.subr.bf16.mxu0 %v777
    %2938 = vmatpush1.bf16.msra.mxu0 %v776
    %2939 = vmatprep.subr.bf16.mxu0 %v773
    %2940 = vmatpush1.bf16.msra.mxu0 %v772
    %2941 = vmatprep.subr.bf16.mxu0 %v769
    %2942 = vmatpush1.bf16.msra.mxu0 %v768
    %2943 = vmatprep.subr.bf16.mxu0 %v765
    %2944 = vmatpush1.bf16.msra.mxu0 %v764
    %2945 = vmatprep.subr.bf16.mxu0 %v761
    %2946 = vmatpush1.bf16.msra.mxu0 %v760
    %2947 = vmatprep.subr.bf16.mxu0 %v757
    %2948 = vmatpush1.bf16.msra.mxu0 %v756
    %2949 = vmatprep.subr.bf16.mxu0 %v753
    %2950 = vmatpush1.bf16.msra.mxu0 %v752
    %2951 = vmatprep.subr.bf16.mxu0 %v749
    %2952 = vmatpush1.bf16.msra.mxu0 %v748
    %2953 = vmatprep.subr.bf16.mxu0 0
    %2954 = vmatpush2.bf16.msra.mxu0 0
    %2955 = vmatprep.subr.bf16.mxu0 0
    %2956 = vmatpush2.bf16.msra.mxu0 0
    %2957 = vmatprep.subr.bf16.mxu0 0
    %2958 = vmatpush2.bf16.msra.mxu0 0
    %2959 = vmatprep.subr.bf16.mxu0 0
    %2960 = vmatpush2.bf16.msra.mxu0 0
    %2961 = vmatprep.subr.bf16.mxu0 0
    %2962 = vmatpush2.bf16.msra.mxu0 0
    %2963 = vmatprep.subr.bf16.mxu0 0
    %2964 = vmatpush2.bf16.msra.mxu0 0
    %2965 = vmatprep.subr.bf16.mxu0 0
    %2966 = vmatpush2.bf16.msra.mxu0 0
    %2967 = vmatprep.subr.bf16.mxu0 0
    %2968 = vmatpush2.bf16.msra.mxu0 0
    %2969 = vmatprep.mubr.bf16.mxu0 0
    %2970 = vmatmul.mubr.bf16.gmra.mxu0 %v2895
    %v2971 = vpop.f32.mrf.mxu0
    %v2972 = vadd.f32 0.0, %v2971
    %v2973 = vpop.f32.mrf.mxu0
    %v2974 = vadd.f32 0.0, %v2973
    %v2975 = vpop.f32.mrf.mxu0
    %v2976 = vpop.f32.mrf.mxu0
    %2977 = vdwg.mxu0
    %2978 = vmatprep.subr.bf16.mxu0 0
    %2979 = vmatpush1.bf16.msra.mxu0 %v931
    %2980 = vmatprep.subr.bf16.mxu0 0
    %2981 = vmatpush1.bf16.msra.mxu0 %v930
    %2982 = vmatprep.subr.bf16.mxu0 0
    %2983 = vmatpush1.bf16.msra.mxu0 %v929
    %2984 = vmatprep.subr.bf16.mxu0 0
    %2985 = vmatpush1.bf16.msra.mxu0 %v928
    %2986 = vmatprep.subr.bf16.mxu0 0
    %2987 = vmatpush1.bf16.msra.mxu0 %v927
    %2988 = vmatprep.subr.bf16.mxu0 0
    %2989 = vmatpush1.bf16.msra.mxu0 %v926
    %2990 = vmatprep.subr.bf16.mxu0 0
    %2991 = vmatpush1.bf16.msra.mxu0 %v925
    %2992 = vmatprep.subr.bf16.mxu0 0
    %2993 = vmatpush1.bf16.msra.mxu0 %v924
    %2994 = vmatprep.subr.bf16.mxu0 0
    %2995 = vmatpush2.bf16.msra.mxu0 0
    %2996 = vmatprep.subr.bf16.mxu0 0
    %2997 = vmatpush2.bf16.msra.mxu0 0
    %2998 = vmatprep.subr.bf16.mxu0 0
    %2999 = vmatpush2.bf16.msra.mxu0 0
    %3000 = vmatprep.subr.bf16.mxu0 0
    %3001 = vmatpush2.bf16.msra.mxu0 0
    %3002 = vmatprep.subr.bf16.mxu0 0
    %3003 = vmatpush2.bf16.msra.mxu0 0
    %3004 = vmatprep.subr.bf16.mxu0 0
    %3005 = vmatpush2.bf16.msra.mxu0 0
    %3006 = vmatprep.subr.bf16.mxu0 0
    %3007 = vmatpush2.bf16.msra.mxu0 0
    %3008 = vmatprep.subr.bf16.mxu0 0
    %3009 = vmatpush2.bf16.msra.mxu0 0
    %3010 = vmatprep.mubr.bf16.mxu0 0
    %3011 = vmatmul.mubr.bf16.gmra.mxu0 %v2895
    %v3012 = vpop.f32.mrf.mxu0
    %v3013 = vadd.f32 0.0, %v3012
    %v3014 = vpop.f32.mrf.mxu0
    %v3015 = vpop.f32.mrf.mxu0
    %v3016 = vpop.f32.mrf.mxu0
    %3017 = vdwg.mxu0
    %v3018 = vadd.f32 %v390, %v2931
    %v3019 = vadd.f32 %v392, %v2933
    %v3020 = vadd.f32 %v431, %v2972
    %v3021 = vadd.f32 %v433, %v2974
    %3022 = vmatprep.subr.bf16.mxu0 %v1110
    %3023 = vmatpush1.bf16.msra.mxu0 %v1109
    %3024 = vmatprep.subr.bf16.mxu0 %v1106
    %3025 = vmatpush1.bf16.msra.mxu0 %v1105
    %3026 = vmatprep.subr.bf16.mxu0 %v1102
    %3027 = vmatpush1.bf16.msra.mxu0 %v1101
    %3028 = vmatprep.subr.bf16.mxu0 %v1098
    %3029 = vmatpush1.bf16.msra.mxu0 %v1097
    %3030 = vmatprep.subr.bf16.mxu0 %v1094
    %3031 = vmatpush1.bf16.msra.mxu0 %v1093
    %3032 = vmatprep.subr.bf16.mxu0 %v1090
    %3033 = vmatpush1.bf16.msra.mxu0 %v1089
    %3034 = vmatprep.subr.bf16.mxu0 %v1086
    %3035 = vmatpush1.bf16.msra.mxu0 %v1085
    %3036 = vmatprep.subr.bf16.mxu0 %v1082
    %3037 = vmatpush1.bf16.msra.mxu0 %v1081
    %3038 = vmatprep.subr.bf16.mxu0 0
    %3039 = vmatpush2.bf16.msra.mxu0 0
    %3040 = vmatprep.subr.bf16.mxu0 0
    %3041 = vmatpush2.bf16.msra.mxu0 0
    %3042 = vmatprep.subr.bf16.mxu0 0
    %3043 = vmatpush2.bf16.msra.mxu0 0
    %3044 = vmatprep.subr.bf16.mxu0 0
    %3045 = vmatpush2.bf16.msra.mxu0 0
    %3046 = vmatprep.subr.bf16.mxu0 0
    %3047 = vmatpush2.bf16.msra.mxu0 0
    %3048 = vmatprep.subr.bf16.mxu0 0
    %3049 = vmatpush2.bf16.msra.mxu0 0
    %3050 = vmatprep.subr.bf16.mxu0 0
    %3051 = vmatpush2.bf16.msra.mxu0 0
    %3052 = vmatprep.subr.bf16.mxu0 0
    %3053 = vmatpush2.bf16.msra.mxu0 0
    %3054 = vmatprep.mubr.bf16.mxu0 0
    %3055 = vmatmul.mubr.bf16.gmra.mxu0 %v2828
    %v3056 = vpop.f32.mrf.mxu0
    %v3057 = vadd.f32 0.0, %v3056
    %v3058 = vpop.f32.mrf.mxu0
    %v3059 = vadd.f32 0.0, %v3058
    %v3060 = vpop.f32.mrf.mxu0
    %v3061 = vpop.f32.mrf.mxu0
    %3062 = vdwg.mxu0
    %3063 = vmatprep.subr.bf16.mxu0 %v1112
    %3064 = vmatpush1.bf16.msra.mxu0 %v1111
    %3065 = vmatprep.subr.bf16.mxu0 %v1108
    %3066 = vmatpush1.bf16.msra.mxu0 %v1107
    %3067 = vmatprep.subr.bf16.mxu0 %v1104
    %3068 = vmatpush1.bf16.msra.mxu0 %v1103
    %3069 = vmatprep.subr.bf16.mxu0 %v1100
    %3070 = vmatpush1.bf16.msra.mxu0 %v1099
    %3071 = vmatprep.subr.bf16.mxu0 %v1096
    %3072 = vmatpush1.bf16.msra.mxu0 %v1095
    %3073 = vmatprep.subr.bf16.mxu0 %v1092
    %3074 = vmatpush1.bf16.msra.mxu0 %v1091
    %3075 = vmatprep.subr.bf16.mxu0 %v1088
    %3076 = vmatpush1.bf16.msra.mxu0 %v1087
    %3077 = vmatprep.subr.bf16.mxu0 %v1084
    %3078 = vmatpush1.bf16.msra.mxu0 %v1083
    %3079 = vmatprep.subr.bf16.mxu0 0
    %3080 = vmatpush2.bf16.msra.mxu0 0
    %3081 = vmatprep.subr.bf16.mxu0 0
    %3082 = vmatpush2.bf16.msra.mxu0 0
    %3083 = vmatprep.subr.bf16.mxu0 0
    %3084 = vmatpush2.bf16.msra.mxu0 0
    %3085 = vmatprep.subr.bf16.mxu0 0
    %3086 = vmatpush2.bf16.msra.mxu0 0
    %3087 = vmatprep.subr.bf16.mxu0 0
    %3088 = vmatpush2.bf16.msra.mxu0 0
    %3089 = vmatprep.subr.bf16.mxu0 0
    %3090 = vmatpush2.bf16.msra.mxu0 0
    %3091 = vmatprep.subr.bf16.mxu0 0
    %3092 = vmatpush2.bf16.msra.mxu0 0
    %3093 = vmatprep.subr.bf16.mxu0 0
    %3094 = vmatpush2.bf16.msra.mxu0 0
    %3095 = vmatprep.mubr.bf16.mxu0 0
    %3096 = vmatmul.mubr.bf16.gmra.mxu0 %v2828
    %v3097 = vpop.f32.mrf.mxu0
    %v3098 = vadd.f32 0.0, %v3097
    %v3099 = vpop.f32.mrf.mxu0
    %v3100 = vadd.f32 0.0, %v3099
    %v3101 = vpop.f32.mrf.mxu0
    %v3102 = vpop.f32.mrf.mxu0
    %3103 = vdwg.mxu0
    %v3104 = vadd.f32 %v3018, %v3057
    %v3105 = vadd.f32 %v3019, %v3059
    %v3106 = vadd.f32 %v3020, %v3098
    %v3107 = vadd.f32 %v3021, %v3100
    %v3108 = vxor.u32 %v3104, 2147483648
    %v3109 = vmul.f32 %v3108, 1.442695
    %v3110 = vpow.pop %v3109
    %v3111 = vadd.f32 %v3110, 1.0
    %v3112 = vrcp.pop %v3111
    %v3113 = vmul.f32 1.0, %v3112
    %v3114 = vxor.u32 %v3105, 2147483648
    %v3115 = vmul.f32 %v3114, 1.442695
    %v3116 = vpow.pop %v3115
    %v3117 = vadd.f32 %v3116, 1.0
    %v3118 = vrcp.pop %v3117
    %v3119 = vmul.f32 1.0, %v3118
    %v3120 = vtanh.pop %v3106
    %v3121 = vxor.u32 %v3107, 2147483648
    %v3122 = vmul.f32 %v3121, 1.442695
    %v3123 = vpow.pop %v3122
    %v3124 = vadd.f32 %v3123, 1.0
    %v3125 = vrcp.pop %v3124
    %v3126 = vmul.f32 1.0, %v3125
    %v3127 = vmul.f32 %v3119, %v2824
    %v3128 = vmul.f32 %v3113, %v3120
    %v3129 = vadd.f32 %v3127, %v3128
    %v3130 = vtanh.pop %v3129
    %v3131 = vmul.f32 %v3126, %v3130
    %v3132 = vadd.f32 %v543, %v3013
    %v3133 = vpack.c.bf16 %v3131, %v3131
    %3134 = vmatprep.subr.bf16.mxu0 0
    %3135 = vmatpush1.bf16.msra.mxu0 %v1296
    %3136 = vmatprep.subr.bf16.mxu0 0
    %3137 = vmatpush1.bf16.msra.mxu0 %v1295
    %3138 = vmatprep.subr.bf16.mxu0 0
    %3139 = vmatpush1.bf16.msra.mxu0 %v1294
    %3140 = vmatprep.subr.bf16.mxu0 0
    %3141 = vmatpush1.bf16.msra.mxu0 %v1293
    %3142 = vmatprep.subr.bf16.mxu0 0
    %3143 = vmatpush1.bf16.msra.mxu0 %v1292
    %3144 = vmatprep.subr.bf16.mxu0 0
    %3145 = vmatpush1.bf16.msra.mxu0 %v1291
    %3146 = vmatprep.subr.bf16.mxu0 0
    %3147 = vmatpush1.bf16.msra.mxu0 %v1290
    %3148 = vmatprep.subr.bf16.mxu0 0
    %3149 = vmatpush1.bf16.msra.mxu0 %v1289
    %3150 = vmatprep.subr.bf16.mxu0 0
    %3151 = vmatpush2.bf16.msra.mxu0 0
    %3152 = vmatprep.subr.bf16.mxu0 0
    %3153 = vmatpush2.bf16.msra.mxu0 0
    %3154 = vmatprep.subr.bf16.mxu0 0
    %3155 = vmatpush2.bf16.msra.mxu0 0
    %3156 = vmatprep.subr.bf16.mxu0 0
    %3157 = vmatpush2.bf16.msra.mxu0 0
    %3158 = vmatprep.subr.bf16.mxu0 0
    %3159 = vmatpush2.bf16.msra.mxu0 0
    %3160 = vmatprep.subr.bf16.mxu0 0
    %3161 = vmatpush2.bf16.msra.mxu0 0
    %3162 = vmatprep.subr.bf16.mxu0 0
    %3163 = vmatpush2.bf16.msra.mxu0 0
    %3164 = vmatprep.subr.bf16.mxu0 0
    %3165 = vmatpush2.bf16.msra.mxu0 0
    %3166 = vmatprep.mubr.bf16.mxu0 0
    %3167 = vmatmul.mubr.bf16.gmra.mxu0 %v3133
    %v3168 = vpop.f32.mrf.mxu0
    %v3169 = vadd.f32 0.0, %v3168
    %v3170 = vpop.f32.mrf.mxu0
    %v3171 = vpop.f32.mrf.mxu0
    %v3172 = vpop.f32.mrf.mxu0
    %3173 = vdwg.mxu0
    %v3174 = vadd.f32 %v3132, %v3169
    %s3175 = scalar_lea.vmem [#allocation14], 48
    %3176 = vst [vmem:[%s3175] sm:$0xff] %v3174
    %3177 = vst [vmem:[#allocation15] sm:$0xff] %v3131
    %3178 = vst [vmem:[#allocation17] sm:$0xff] %v3129
    // Predicated region
    $region78: #{greedy_decode.1} parent=1 // pred_check
      _
    $region79: #{greedy_decode.1} parent=1 // pred_check_branch
      %3180 = sbr.rel (0) target = $region81
    $region80: #{greedy_decode.1} parent=1 // pred_region
      %s3182 = ssub.s32 896, 896
      %3183 = vsyncadd [#allocation4], %s3182
      %s3184 = sshll.u32 [#allocation14], 4
      %s3185 = int_to_ptr.vmem [resolvable:$true] %s3184
      %3190 = dma.vmem_to_hbm [thread:$0]  %s3185, 896, %s12, [#allocation4], 128, 128, 8
    $region81: #{greedy_decode.1} parent=1 // pred_fallthru
      _
    // Predicated region
    $region82: #{greedy_decode.1} parent=1 // pred_check
      _
    $region83: #{greedy_decode.1} parent=1 // pred_check_branch
      %3192 = sbr.rel (0) target = $region85
    $region84: #{greedy_decode.1} parent=1 // pred_region
      %s3194 = ssub.s32 128, 128
      %3195 = vsyncadd [#allocation16], %s3194
      %s3197 = sshll.u32 [#allocation15], 4
      %s3198 = int_to_ptr.vmem [resolvable:$true] %s3197
      %3200 = dma.vmem_to_hbm [thread:$0]  %s3198, 128, %s13, [#allocation16]
    $region85: #{greedy_decode.1} parent=1 // pred_fallthru
      _
    // Predicated region
    $region86: #{greedy_decode.1} parent=1 // pred_check
      _
    $region87: #{greedy_decode.1} parent=1 // pred_check_branch
      %3202 = sbr.rel (0) target = $region89
    $region88: #{greedy_decode.1} parent=1 // pred_region
      %s3204 = ssub.s32 128, 128
      %3205 = vsyncadd [#allocation16], %s3204
      %s3207 = sshll.u32 [#allocation17], 4
      %s3208 = int_to_ptr.vmem [resolvable:$true] %s3207
      %3210 = dma.vmem_to_hbm [thread:$0]  %s3208, 128, %s14, [#allocation16]
    $region89: #{greedy_decode.1} parent=1 // pred_fallthru
      _
    // Predicated region
    $region90: #{greedy_decode.1} parent=1 // pred_check
      _
    $region91: #{greedy_decode.1} parent=1 // pred_check_branch
      %3212 = sbr.rel (0) target = $region93
    $region92: #{greedy_decode.1} parent=1 // pred_region
      %3213 = dma.done [#allocation4], 896
    $region93: #{greedy_decode.1} parent=1 // pred_fallthru
      _
    // Predicated region
    $region94: #{greedy_decode.1} parent=1 // pred_check
      _
    $region95: #{greedy_decode.1} parent=1 // pred_check_branch
      %3215 = sbr.rel (0) target = $region97
    $region96: #{greedy_decode.1} parent=1 // pred_region
      %3216 = dma.done [#allocation16], 128
    $region97: #{greedy_decode.1} parent=1 // pred_fallthru
      _
    // Predicated region
    $region98: #{greedy_decode.1} parent=1 // pred_check
      _
    $region99: #{greedy_decode.1} parent=1 // pred_check_branch
      %3218 = sbr.rel (0) target = $region101
    $region100: #{greedy_decode.1} parent=1 // pred_region
      %3219 = dma.done [#allocation16], 128
    $region101: #{greedy_decode.1} parent=1 // pred_fallthru
      _
    %3220 = vsyncpa [#allocation3], 1
    %3221 = vsyncpa [#allocation6], 1
    %3222 = vsyncpa [#allocation9], 1
    %3223 = vsyncpa [#allocation12], 1
    %3224 = vsyncpa [#allocation4], 1
    %3225 = vsyncpa [#allocation16], 1

</llo_original>
